<compile_context>
chip_gen: v5e
topology: v5e:2x2
jax: 0.10.0
libtpu: 0.0.40
codegen_flags: <defaults>
</compile_context>

<pallas_src>
import math
import numpy as np
import jax
import jax.numpy as jnp
from jax.experimental import pallas as pl
from jax.experimental.pallas import tpu as pltpu

SR_FACTOR = 4
PATCH_SIZE = 16            # reference default is 48; shrunk for a small, fast test
MAX_VALUE = 1.0
GAUSS_SD = 1.5
KSZ = int(4 * GAUSS_SD + 1)   # = 7, as in sca_utils.get_gaussian_kernel(sd=1.5)
BI = 5                        # interior crop used by match_colors ([5:-5, 5:-5])
_OFF = BI - (KSZ - 1) // 2    # = 2: start offset of the interior 'valid' window

# The interior-only (no reflect padding) blur is valid only while the crop never
# touches the padded border; fail loudly if the parameters change.
assert KSZ % 2 == 1 and KSZ - 1 <= 2 * BI, "interior-only blur assumption violated"
assert PATCH_SIZE > 2 * BI

# Separable 1-D Gaussian taps; outer(G1, G1) equals the normalized 2-D kernel.
_k = np.arange(-(KSZ - 1) / 2.0, (KSZ + 1) / 2.0)
_g = np.exp(-(_k ** 2) / (2.0 * GAUSS_SD ** 2))
G1 = (_g / _g.sum()).astype(np.float32)

_VMEM_LIMIT = 64 * 1024 * 1024   # <= physical VMEM on all of v5e/v6e/v7x


def _round_up(x, m):
    return ((x + m - 1) // m) * m


def _choose_batch(n, max_b):
    """Patches per grid step: amortize per-step overhead but keep >= 2 grid steps."""
    if n <= 1:
        return 1
    return max(1, min(max_b, (n + 1) // 2))


# ----------------------------- Pallas kernels -----------------------------

def _gauss_blur_kernel(x_ref, o_ref):
    """Separable 7x7 interior Gaussian blur over lane-packed colour planes.

    x_ref: (B, P, W)       6 planes of each patch packed side-by-side along lanes
                           (band p occupies columns [p*P, (p+1)*P)), zero-padded to W.
    o_ref: (B, Pi_pad, W)  rows [0, Pi) and band columns [p*P, p*P+Pi) are valid.
    All taps are XLU rolls; roll wrap-around lands only in rows/columns that the
    wrapper never reads back.
    """
    _, P, W = x_ref.shape
    pi_pad = o_ref.shape[1]
    x = x_ref[...]
    # Vertical pass (sublane rolls): tmp[b,i,c] = sum_dy G1[dy] * x[b, i+_OFF+dy, c]
    tmp = None
    for dy in range(KSZ):
        sh = (P - (_OFF + dy)) % P
        t = pltpu.roll(x, shift=sh, axis=1)
        tmp = float(G1[dy]) * t if tmp is None else tmp + float(G1[dy]) * t
    # Horizontal pass (lane rolls): acc[b,i,j] = sum_dx G1[dx] * tmp[b, i, j+_OFF+dx]
    acc = None
    for dx in range(KSZ):
        sh = (W - (_OFF + dx)) % W
        t = pltpu.roll(tmp, shift=sh, axis=2)
        acc = float(G1[dx]) * t if acc is None else acc + float(G1[dx]) * t
    o_ref[...] = acc[:, :pi_pad, :]


def gauss_blur_interior(planes):
    """planes: (Np, C, P, P) f32 -> blurred interior means (Np, C, P-10, P-10)."""
    Np, C, P, _ = planes.shape
    Pi = P - 2 * BI
    Pi_pad = _round_up(Pi, 8)                       # unmasked sublane stores
    CP = C * P
    W = _round_up(max(CP, 128), 128)                # lane-dense, no extra shift pad
    B = _choose_batch(Np, 16)
    Np_pad = _round_up(Np, B)

    packed = jnp.transpose(planes, (0, 2, 1, 3)).reshape(Np, P, CP)
    packed = jnp.pad(packed, ((0, Np_pad - Np), (0, 0), (0, W - CP)))

    out = pl.pallas_call(
        _gauss_blur_kernel,
        out_shape=jax.ShapeDtypeStruct((Np_pad, Pi_pad, W), jnp.float32),
        grid_spec=pltpu.PrefetchScalarGridSpec(
            num_scalar_prefetch=0,
            grid=(Np_pad // B,),
            in_specs=[pl.BlockSpec((B, P, W), lambda i: (i, 0, 0))],
            out_specs=pl.BlockSpec((B, Pi_pad, W), lambda i: (i, 0, 0)),
        ),
        compiler_params=pltpu.CompilerParams(
            dimension_semantics=("parallel",),
            vmem_limit_bytes=_VMEM_LIMIT),
    )(packed)
    out = out[:Np, :Pi, :]
    # TODO(synk): larger fusion — accumulate AtA/AtB and the colour-error/valid
    # count inside this kernel instead of unpacking the bands in XLA.
    return jnp.stack([out[:, :, p * P:p * P + Pi] for p in range(C)], axis=1)


def _color_mse_kernel(cmat_ref, pred_ref, gt_ref, valid_ref, o_ref):
    """Fused per-patch 3x3 colour transform + masked SSE / valid count for B patches.

    cmat_ref : (Np_pad*9,) f32 SMEM (scalar prefetch; row-major 3x3 per patch)
    pred_ref : (B, 3, H, W) f32 VMEM   gt_ref: (B, 3, H, W) f32 VMEM
    valid_ref: (B, H, W) bf16 VMEM (exact 0/1 mask)
    o_ref    : (1, 128) f32 VMEM -- lane 2b = masked SSE of patch b, lane 2b+1 = count
    """
    step = pl.program_id(0)
    B = pred_ref.shape[0]
    lane = jax.lax.broadcasted_iota(jnp.int32, o_ref.shape, 1)
    out = jnp.zeros(o_ref.shape, jnp.float32)
    for b in range(B):
        base = (step * B + b) * 9
        c = [cmat_ref[base + k] for k in range(9)]          # hoisted scalar reads
        p0, p1, p2 = pred_ref[b, 0], pred_ref[b, 1], pred_ref[b, 2]
        v = valid_ref[b].astype(jnp.float32)
        acc = None
        for ch in range(3):                                 # stays on the VPU (no MXU)
            pm = c[0 * 3 + ch] * p0 + c[1 * 3 + ch] * p1 + c[2 * 3 + ch] * p2
            d = pm - gt_ref[b, ch]
            acc = d * d if acc is None else acc + d * d
        sse = jnp.sum(acc * v)
        cnt = jnp.sum(v)
        out = out + jnp.where(lane == 2 * b, sse, 0.0) + jnp.where(lane == 2 * b + 1, cnt, 0.0)
    o_ref[...] = out


def color_transform_masked_mse(c_mat, pred, gt, valid):
    """c_mat: (Np,3,3); pred, gt: (Np,3,H,W) f32; valid: (Np,H,W) bf16 -> (sse, count)."""
    Np, C, H, W = pred.shape
    per_patch_bytes = 2 * C * H * W * 4 + H * W * 2            # pred+gt f32, valid bf16
    max_b = max(1, min(48, (12 * 1024 * 1024) // per_patch_bytes))  # ~24 MiB double-buffered
    B = _choose_batch(Np, max_b)
    Np_pad = _round_up(Np, B)
    steps = Np_pad // B

    npad = Np_pad - Np
    pred = jnp.pad(pred, ((0, npad), (0, 0), (0, 0), (0, 0)))
    gt = jnp.pad(gt, ((0, npad), (0, 0), (0, 0), (0, 0)))
    valid = jnp.pad(valid, ((0, npad), (0, 0), (0, 0)))
    cmat_flat = jnp.pad(c_mat.astype(jnp.float32).reshape(Np, 9),
                        ((0, npad), (0, 0))).reshape(Np_pad * 9)

    out = pl.pallas_call(
        _color_mse_kernel,
        out_shape=jax.ShapeDtypeStruct((steps, 1, 128), jnp.float32),
        grid_spec=pltpu.PrefetchScalarGridSpec(
            num_scalar_prefetch=1,
            grid=(steps,),
            in_specs=[
                pl.BlockSpec((B, C, H, W), lambda i, cm: (i, 0, 0, 0)),
                pl.BlockSpec((B, C, H, W), lambda i, cm: (i, 0, 0, 0)),
                pl.BlockSpec((B, H, W), lambda i, cm: (i, 0, 0)),
            ],
            out_specs=pl.BlockSpec((None, 1, 128), lambda i, cm: (i, 0, 0)),
        ),
        compiler_params=pltpu.CompilerParams(
            dimension_semantics=("parallel",),
            vmem_limit_bytes=_VMEM_LIMIT),
    )(cmat_flat, pred, gt, valid)

    sse = out[:, 0, 0:2 * B:2].reshape(-1)[:Np]
    cnt = out[:, 0, 1:2 * B:2].reshape(-1)[:Np]
    return sse, cnt


# ------------------------------- JAX glue ---------------------------------

def torch_unfold(x, dim, size, step):
    """Equivalent of torch.Tensor.unfold: window dim appended last."""
    n = (x.shape[dim] - size) // step + 1
    idx = (np.arange(n)[:, None] * step + np.arange(size)[None, :]).reshape(-1)
    y = jnp.take(x, jnp.asarray(idx), axis=dim)
    new_shape = list(x.shape)
    new_shape[dim:dim + 1] = [n, size]
    y = y.reshape(new_shape)
    return jnp.moveaxis(y, dim + 1, -1)


def make_patches(output, labels, burst, patch_size=PATCH_SIZE):
    num_frames = burst.shape[1]
    stride = patch_size - burst.shape[-1] % patch_size
    b1 = torch_unfold(torch_unfold(burst[0], 2, patch_size, stride), 3, patch_size, stride)
    b1 = b1.reshape(num_frames, 4, b1.shape[2] * b1.shape[3], patch_size, patch_size)
    b1 = jnp.transpose(b1, (2, 0, 1, 3, 4))
    o1 = torch_unfold(torch_unfold(output, 2, patch_size * 8, stride * 8), 3, patch_size * 8, stride * 8)
    o1 = o1.reshape(3, o1.shape[2] * o1.shape[3], patch_size * 8, patch_size * 8)
    o1 = jnp.transpose(o1, (1, 0, 2, 3))
    l1 = torch_unfold(torch_unfold(labels, 2, patch_size * 8, stride * 8), 3, patch_size * 8, stride * 8)
    l1 = l1[0].reshape(3, l1.shape[2] * l1.shape[3], patch_size * 8, patch_size * 8)
    l1 = jnp.transpose(l1, (1, 0, 2, 3))
    return o1, l1, b1


def interpolate_bilinear(x, out_h, out_w, align_corners):
    """PyTorch-style F.interpolate(mode='bilinear'). x: (B, C, H, W)."""
    B, C, H, W = x.shape
    if align_corners:
        ys = jnp.arange(out_h, dtype=jnp.float32) * ((H - 1) / max(out_h - 1, 1))
        xs = jnp.arange(out_w, dtype=jnp.float32) * ((W - 1) / max(out_w - 1, 1))
    else:
        ys = jnp.maximum((jnp.arange(out_h, dtype=jnp.float32) + 0.5) * (H / out_h) - 0.5, 0.0)
        xs = jnp.maximum((jnp.arange(out_w, dtype=jnp.float32) + 0.5) * (W / out_w) - 0.5, 0.0)
    y0 = jnp.clip(jnp.floor(ys).astype(jnp.int32), 0, H - 1)
    x0 = jnp.clip(jnp.floor(xs).astype(jnp.int32), 0, W - 1)
    y1 = jnp.minimum(y0 + 1, H - 1)
    x1 = jnp.minimum(x0 + 1, W - 1)
    wy = (ys - y0.astype(jnp.float32))[None, None, :, None]
    wx = (xs - x0.astype(jnp.float32))[None, None, None, :]

    def g(iy, ix):
        return x[:, :, iy, :][:, :, :, ix]

    v00, v01 = g(y0, x0), g(y0, x1)
    v10, v11 = g(y1, x0), g(y1, x1)
    return (v00 * (1 - wy) * (1 - wx) + v01 * (1 - wy) * wx
            + v10 * wy * (1 - wx) + v11 * wy * wx)


def match_colors_batched(im_ref, im_q, hh, ww):
    """sca_utils.match_colors, batched over patches.
       im_ref, im_q: (Np, 3, P, P); (hh, ww): full-res (test image) spatial shape.
       Returns per-patch 3x3 colour transforms and bf16 validity masks at (hh, ww).
       (Applying the transform to im_test is fused into the masked-MSE kernel.)"""
    Np, _, P, _ = im_ref.shape
    planes = jnp.concatenate([im_ref, im_q], axis=1)          # (Np, 6, P, P)
    blurred = gauss_blur_interior(planes)                     # (Np, 6, Pi, Pi) Pallas
    Pi = blurred.shape[-1]
    ir = blurred[:, :3].reshape(Np, 3, Pi * Pi)
    iq = blurred[:, 3:].reshape(Np, 3, Pi * Pi)
    # least squares: iq.T @ c_mat ~= ir.T (normal equations; torch.lstsq equivalent)
    A = jnp.transpose(iq, (0, 2, 1))                          # (Np, N, 3)
    Bm = jnp.transpose(ir, (0, 2, 1))                         # (Np, N, 3)
    AtA = jnp.einsum('bni,bnj->bij', A, A)
    AtB = jnp.einsum('bni,bnj->bij', A, Bm)
    c_mat = jnp.linalg.solve(AtA, AtB)                        # (Np, 3, 3)
    iq_conv = jnp.einsum('brc,brn->bcn', c_mat, iq)           # c_mat.T @ iq
    err = jnp.sqrt(jnp.sum(((iq_conv - ir) * 255.0) ** 2, axis=1)).reshape(Np, Pi, Pi)
    valid = (err < 20.0).astype(jnp.float32)
    # Reference upsamples the (Pi x Pi) mask directly to full resolution.
    valid_up = interpolate_bilinear(valid[:, None], hh, ww, align_corners=False)
    valid_up = (valid_up > 0.9).astype(jnp.bfloat16)          # exact 0/1; halves mask HBM bytes
    return c_mat, valid_up[:, 0]                              # (Np,3,3), (Np,hh,ww) bf16


def aligned_l2_batched(pred_p, gt_p, burst_p, sr_factor=SR_FACTOR, boundary_ignore=None):
    # pred_p, gt_p: (Np, 3, 8P, 8P); burst_p: (Np, nf, 4, P, P)
    # TODO(synk): alignment_net is an external optical-flow CNN (no weights given);
    # use a deterministic zero-flow stand-in, so warp() reduces to identity.
    pred_warped = pred_p
    ds_factor = 1.0 / (2.0 * float(sr_factor))
    out_h = int(math.floor(gt_p.shape[-2] * ds_factor))
    out_w = int(math.floor(gt_p.shape[-1] * ds_factor))
    burst_0 = jnp.take(burst_p[:, 0], jnp.array([0, 1, 3]), axis=1)     # (Np,3,P,P)
    burst_0_warped = burst_0                                            # zero flow
    frame_gt_ds = interpolate_bilinear(gt_p, out_h, out_w, align_corners=True)
    c_mat, valid = match_colors_batched(frame_gt_ds, burst_0_warped,
                                        gt_p.shape[-2], gt_p.shape[-1])
    # boundary_ignore is None in this configuration (module default): no cropping.
    sse, valid_sum = color_transform_masked_mse(c_mat, pred_warped, gt_p, valid)
    elem_ratio = float(pred_p.shape[1])                                 # 3 ch / 1 mask ch
    mse = sse / (valid_sum * elem_ratio + 1e-12)
    return mse                                                          # (Np,)


@jax.jit
def aligned_psnr(pred, gt, burst_input):
    pred_p, gt_p, burst_p = make_patches(pred, gt, burst_input, PATCH_SIZE)
    mse = aligned_l2_batched(pred_p, gt_p, burst_p) + 1e-12
    psnr = 20.0 * math.log10(MAX_VALUE) - 10.0 * jnp.log10(mse)
    return jnp.mean(psnr)


# --------------------------------- main ------------------------------------

if __name__ == "__main__":
    key = jax.random.PRNGKey(0)
    k1, k2, k3, k4, k5 = jax.random.split(key, 5)

    P = PATCH_SIZE
    H = W = 2 * P                      # burst raw spatial 32x32 -> 2x2 = 4 patches
    nf = 2
    gt = jax.random.uniform(k1, (1, 3, 8 * H, 8 * W), dtype=jnp.float32)
    pred = jnp.clip(gt + 0.05 * jax.random.normal(k2, gt.shape, dtype=jnp.float32), 0.0, 1.0)

    # burst frame 0 channels [0,1,3] roughly match the (8x) downsampled gt so the
    # color-matching / validity path is exercised meaningfully.
    gt_pool = gt.reshape(1, 3, H, 8, W, 8).mean(axis=(3, 5))          # (1,3,H,W)
    b013 = jnp.clip(gt_pool + 0.02 * jax.random.normal(k3, gt_pool.shape, dtype=jnp.float32), 0.0, 1.0)
    g2 = jnp.clip(gt_pool[:, 1:2] + 0.02 * jax.random.normal(k4, (1, 1, H, W), dtype=jnp.float32), 0.0, 1.0)
    frame0 = jnp.concatenate([b013[:, 0:1], b013[:, 1:2], g2, b013[:, 2:3]], axis=1)  # (1,4,H,W)
    other_frames = jax.random.uniform(k5, (1, nf - 1, 4, H, W), dtype=jnp.float32)
    burst = jnp.concatenate([frame0[:, None], other_frames], axis=1)  # (1,nf,4,H,W)

    psnr = aligned_psnr(pred, gt, burst)
    jax.block_until_ready(psnr)
    print("KERNEL_OK")
</pallas_src>

<mosaic_0001>
module attributes {stable_mosaic.version = 11 : i64} {
  func.func @_gauss_blur_kernel(%arg0: i32, %arg1: memref<2x16x128xf32, #tpu.memory_space<vmem>>, %arg2: memref<2x8x128xf32, #tpu.memory_space<vmem>>) attributes {dimension_semantics = [#tpu.dimension_semantics<parallel>], iteration_bounds = array<i64: 2>, scalar_prefetch = 0 : i64, scratch_operands = 0 : i64, tpu.core_type = #tpu.core_type<tc>, window_params = [{transform_indices = @transform_0, window_bounds = array<i64: 2, 16, 128>}, {transform_indices = @transform_1, window_bounds = array<i64: 2, 8, 128>}]} {
    %c0 = arith.constant 0 : index
    %c0_0 = arith.constant 0 : index
    %c0_1 = arith.constant 0 : index
    %0 = vector.load %arg1[%c0, %c0_0, %c0_1] : memref<2x16x128xf32, #tpu.memory_space<vmem>>, vector<2x16x128xf32>
    %c14_i32 = arith.constant 14 : i32
    %1 = tpu.dynamic_rotate %0 by %c14_i32 dim 1 : vector<2x16x128xf32>, i32 -> vector<2x16x128xf32>
    %cst = arith.constant 0.036632847 : f32
    %2 = vector.broadcast %cst : f32 to vector<2x16x128xf32>
    %3 = arith.mulf %2, %1 : vector<2x16x128xf32>
    %c13_i32 = arith.constant 13 : i32
    %4 = tpu.dynamic_rotate %0 by %c13_i32 dim 1 : vector<2x16x128xf32>, i32 -> vector<2x16x128xf32>
    %cst_2 = arith.constant 0.111280762 : f32
    %5 = vector.broadcast %cst_2 : f32 to vector<2x16x128xf32>
    %6 = arith.mulf %5, %4 : vector<2x16x128xf32>
    %7 = arith.addf %3, %6 : vector<2x16x128xf32>
    %c12_i32 = arith.constant 12 : i32
    %8 = tpu.dynamic_rotate %0 by %c12_i32 dim 1 : vector<2x16x128xf32>, i32 -> vector<2x16x128xf32>
    %cst_3 = arith.constant 0.216745317 : f32
    %9 = vector.broadcast %cst_3 : f32 to vector<2x16x128xf32>
    %10 = arith.mulf %9, %8 : vector<2x16x128xf32>
    %11 = arith.addf %7, %10 : vector<2x16x128xf32>
    %c11_i32 = arith.constant 11 : i32
    %12 = tpu.dynamic_rotate %0 by %c11_i32 dim 1 : vector<2x16x128xf32>, i32 -> vector<2x16x128xf32>
    %cst_4 = arith.constant 0.270682156 : f32
    %13 = vector.broadcast %cst_4 : f32 to vector<2x16x128xf32>
    %14 = arith.mulf %13, %12 : vector<2x16x128xf32>
    %15 = arith.addf %11, %14 : vector<2x16x128xf32>
    %c10_i32 = arith.constant 10 : i32
    %16 = tpu.dynamic_rotate %0 by %c10_i32 dim 1 : vector<2x16x128xf32>, i32 -> vector<2x16x128xf32>
    %cst_5 = arith.constant 0.216745317 : f32
    %17 = vector.broadcast %cst_5 : f32 to vector<2x16x128xf32>
    %18 = arith.mulf %17, %16 : vector<2x16x128xf32>
    %19 = arith.addf %15, %18 : vector<2x16x128xf32>
    %c9_i32 = arith.constant 9 : i32
    %20 = tpu.dynamic_rotate %0 by %c9_i32 dim 1 : vector<2x16x128xf32>, i32 -> vector<2x16x128xf32>
    %cst_6 = arith.constant 0.111280762 : f32
    %21 = vector.broadcast %cst_6 : f32 to vector<2x16x128xf32>
    %22 = arith.mulf %21, %20 : vector<2x16x128xf32>
    %23 = arith.addf %19, %22 : vector<2x16x128xf32>
    %c8_i32 = arith.constant 8 : i32
    %24 = tpu.dynamic_rotate %0 by %c8_i32 dim 1 : vector<2x16x128xf32>, i32 -> vector<2x16x128xf32>
    %cst_7 = arith.constant 0.036632847 : f32
    %25 = vector.broadcast %cst_7 : f32 to vector<2x16x128xf32>
    %26 = arith.mulf %25, %24 : vector<2x16x128xf32>
    %27 = arith.addf %23, %26 : vector<2x16x128xf32>
    %c126_i32 = arith.constant 126 : i32
    %28 = tpu.dynamic_rotate %27 by %c126_i32 dim 2 : vector<2x16x128xf32>, i32 -> vector<2x16x128xf32>
    %cst_8 = arith.constant 0.036632847 : f32
    %29 = vector.broadcast %cst_8 : f32 to vector<2x16x128xf32>
    %30 = arith.mulf %29, %28 : vector<2x16x128xf32>
    %c125_i32 = arith.constant 125 : i32
    %31 = tpu.dynamic_rotate %27 by %c125_i32 dim 2 : vector<2x16x128xf32>, i32 -> vector<2x16x128xf32>
    %cst_9 = arith.constant 0.111280762 : f32
    %32 = vector.broadcast %cst_9 : f32 to vector<2x16x128xf32>
    %33 = arith.mulf %32, %31 : vector<2x16x128xf32>
    %34 = arith.addf %30, %33 : vector<2x16x128xf32>
    %c124_i32 = arith.constant 124 : i32
    %35 = tpu.dynamic_rotate %27 by %c124_i32 dim 2 : vector<2x16x128xf32>, i32 -> vector<2x16x128xf32>
    %cst_10 = arith.constant 0.216745317 : f32
    %36 = vector.broadcast %cst_10 : f32 to vector<2x16x128xf32>
    %37 = arith.mulf %36, %35 : vector<2x16x128xf32>
    %38 = arith.addf %34, %37 : vector<2x16x128xf32>
    %c123_i32 = arith.constant 123 : i32
    %39 = tpu.dynamic_rotate %27 by %c123_i32 dim 2 : vector<2x16x128xf32>, i32 -> vector<2x16x128xf32>
    %cst_11 = arith.constant 0.270682156 : f32
    %40 = vector.broadcast %cst_11 : f32 to vector<2x16x128xf32>
    %41 = arith.mulf %40, %39 : vector<2x16x128xf32>
    %42 = arith.addf %38, %41 : vector<2x16x128xf32>
    %c122_i32 = arith.constant 122 : i32
    %43 = tpu.dynamic_rotate %27 by %c122_i32 dim 2 : vector<2x16x128xf32>, i32 -> vector<2x16x128xf32>
    %cst_12 = arith.constant 0.216745317 : f32
    %44 = vector.broadcast %cst_12 : f32 to vector<2x16x128xf32>
    %45 = arith.mulf %44, %43 : vector<2x16x128xf32>
    %46 = arith.addf %42, %45 : vector<2x16x128xf32>
    %c121_i32 = arith.constant 121 : i32
    %47 = tpu.dynamic_rotate %27 by %c121_i32 dim 2 : vector<2x16x128xf32>, i32 -> vector<2x16x128xf32>
    %cst_13 = arith.constant 0.111280762 : f32
    %48 = vector.broadcast %cst_13 : f32 to vector<2x16x128xf32>
    %49 = arith.mulf %48, %47 : vector<2x16x128xf32>
    %50 = arith.addf %46, %49 : vector<2x16x128xf32>
    %c120_i32 = arith.constant 120 : i32
    %51 = tpu.dynamic_rotate %27 by %c120_i32 dim 2 : vector<2x16x128xf32>, i32 -> vector<2x16x128xf32>
    %cst_14 = arith.constant 0.036632847 : f32
    %52 = vector.broadcast %cst_14 : f32 to vector<2x16x128xf32>
    %53 = arith.mulf %52, %51 : vector<2x16x128xf32>
    %54 = arith.addf %50, %53 : vector<2x16x128xf32>
    %55 = vector.extract_strided_slice %54 {offsets = [0, 0, 0], sizes = [2, 8, 128], strides = [1, 1, 1]} : vector<2x16x128xf32> to vector<2x8x128xf32>
    %c0_15 = arith.constant 0 : index
    %c0_16 = arith.constant 0 : index
    %c0_17 = arith.constant 0 : index
    %56 = vector.load %arg2[%c0_15, %c0_16, %c0_17] : memref<2x8x128xf32, #tpu.memory_space<vmem>>, vector<2x8x128xf32>
    tpu.vector_store %arg2[%c0_15, %c0_16, %c0_17], %55 {strides = array<i32>} : memref<2x8x128xf32, #tpu.memory_space<vmem>>, vector<2x8x128xf32>,
    return
  }
  func.func @transform_0(%arg0: i32) -> (i32, i32, i32) {
    %c0_i32 = arith.constant 0 : i32
    %c0_i32_0 = arith.constant 0 : i32
    %c0_i32_1 = arith.constant 0 : i32
    return %arg0, %c0_i32, %c0_i32_0 : i32, i32, i32
  }
  func.func @transform_1(%arg0: i32) -> (i32, i32, i32) {
    %c0_i32 = arith.constant 0 : i32
    %c0_i32_0 = arith.constant 0 : i32
    %c0_i32_1 = arith.constant 0 : i32
    return %arg0, %c0_i32, %c0_i32_0 : i32, i32, i32
  }
}

module attributes {stable_mosaic.version = 11 : i64} {
  func.func @_color_mse_kernel(%arg0: i32, %arg1: memref<36xf32, #tpu.memory_space<smem>>, %arg2: memref<2x3x128x128xf32, #tpu.memory_space<vmem>>, %arg3: memref<2x3x128x128xf32, #tpu.memory_space<vmem>>, %arg4: memref<2x128x128xbf16, #tpu.memory_space<vmem>>, %arg5: memref<1x1x128xf32, #tpu.memory_space<vmem>>) attributes {dimension_semantics = [#tpu.dimension_semantics<parallel>], iteration_bounds = array<i64: 2>, scalar_prefetch = 1 : i64, scratch_operands = 0 : i64, tpu.core_type = #tpu.core_type<tc>, window_params = [{transform_indices = @transform_0, window_bounds = array<i64: 2, 3, 128, 128>}, {transform_indices = @transform_1, window_bounds = array<i64: 2, 3, 128, 128>}, {transform_indices = @transform_2, window_bounds = array<i64: 2, 128, 128>}, {transform_indices = @transform_3, window_bounds = array<i64: 1, 1, 128>}]} {
    %0 = tpu.iota {dimensions = array<i32: 1>} : vector<1x128xi32>
    %cst = arith.constant 0.000000e+00 : f32
    %1 = vector.broadcast %cst : f32 to vector<1x128xf32>
    %c2_i32 = arith.constant 2 : i32
    %2 = arith.muli %arg0, %c2_i32 : i32
    %c0_i32 = arith.constant 0 : i32
    %3 = arith.addi %2, %c0_i32 : i32
    %c9_i32 = arith.constant 9 : i32
    %4 = arith.muli %3, %c9_i32 : i32
    %c0_i32_0 = arith.constant 0 : i32
    %5 = arith.addi %4, %c0_i32_0 : i32
    %6 = arith.index_cast %5 : i32 to index
    %7 = memref.load %arg1[%6] : memref<36xf32, #tpu.memory_space<smem>>
    %c1_i32 = arith.constant 1 : i32
    %8 = arith.addi %4, %c1_i32 : i32
    %9 = arith.index_cast %8 : i32 to index
    %10 = memref.load %arg1[%9] : memref<36xf32, #tpu.memory_space<smem>>
    %c2_i32_1 = arith.constant 2 : i32
    %11 = arith.addi %4, %c2_i32_1 : i32
    %12 = arith.index_cast %11 : i32 to index
    %13 = memref.load %arg1[%12] : memref<36xf32, #tpu.memory_space<smem>>
    %c3_i32 = arith.constant 3 : i32
    %14 = arith.addi %4, %c3_i32 : i32
    %15 = arith.index_cast %14 : i32 to index
    %16 = memref.load %arg1[%15] : memref<36xf32, #tpu.memory_space<smem>>
    %c4_i32 = arith.constant 4 : i32
    %17 = arith.addi %4, %c4_i32 : i32
    %18 = arith.index_cast %17 : i32 to index
    %19 = memref.load %arg1[%18] : memref<36xf32, #tpu.memory_space<smem>>
    %c5_i32 = arith.constant 5 : i32
    %20 = arith.addi %4, %c5_i32 : i32
    %21 = arith.index_cast %20 : i32 to index
    %22 = memref.load %arg1[%21] : memref<36xf32, #tpu.memory_space<smem>>
    %c6_i32 = arith.constant 6 : i32
    %23 = arith.addi %4, %c6_i32 : i32
    %24 = arith.index_cast %23 : i32 to index
    %25 = memref.load %arg1[%24] : memref<36xf32, #tpu.memory_space<smem>>
    %c7_i32 = arith.constant 7 : i32
    %26 = arith.addi %4, %c7_i32 : i32
    %27 = arith.index_cast %26 : i32 to index
    %28 = memref.load %arg1[%27] : memref<36xf32, #tpu.memory_space<smem>>
    %c8_i32 = arith.constant 8 : i32
    %29 = arith.addi %4, %c8_i32 : i32
    %30 = arith.index_cast %29 : i32 to index
    %31 = memref.load %arg1[%30] : memref<36xf32, #tpu.memory_space<smem>>
    %c0 = arith.constant 0 : index
    %c0_2 = arith.constant 0 : index
    %c0_3 = arith.constant 0 : index
    %c0_4 = arith.constant 0 : index
    %32 = vector.load %arg2[%c0, %c0_2, %c0_3, %c0_4] : memref<2x3x128x128xf32, #tpu.memory_space<vmem>>, vector<1x1x128x128xf32>
    %33 = vector.shape_cast %32 : vector<1x1x128x128xf32> to vector<128x128xf32>
    %c0_5 = arith.constant 0 : index
    %c1 = arith.constant 1 : index
    %c0_6 = arith.constant 0 : index
    %c0_7 = arith.constant 0 : index
    %34 = vector.load %arg2[%c0_5, %c1, %c0_6, %c0_7] : memref<2x3x128x128xf32, #tpu.memory_space<vmem>>, vector<1x1x128x128xf32>
    %35 = vector.shape_cast %34 : vector<1x1x128x128xf32> to vector<128x128xf32>
    %c0_8 = arith.constant 0 : index
    %c2 = arith.constant 2 : index
    %c0_9 = arith.constant 0 : index
    %c0_10 = arith.constant 0 : index
    %36 = vector.load %arg2[%c0_8, %c2, %c0_9, %c0_10] : memref<2x3x128x128xf32, #tpu.memory_space<vmem>>, vector<1x1x128x128xf32>
    %37 = vector.shape_cast %36 : vector<1x1x128x128xf32> to vector<128x128xf32>
    %c0_11 = arith.constant 0 : index
    %c0_12 = arith.constant 0 : index
    %c0_13 = arith.constant 0 : index
    %38 = vector.load %arg4[%c0_11, %c0_12, %c0_13] : memref<2x128x128xbf16, #tpu.memory_space<vmem>>, vector<1x128x128xbf16>
    %39 = vector.shape_cast %38 : vector<1x128x128xbf16> to vector<128x128xbf16>
    %40 = arith.extf %39 : vector<128x128xbf16> to vector<128x128xf32>
    %41 = vector.broadcast %7 : f32 to vector<128x128xf32>
    %42 = arith.mulf %41, %33 : vector<128x128xf32>
    %43 = vector.broadcast %16 : f32 to vector<128x128xf32>
    %44 = arith.mulf %43, %35 : vector<128x128xf32>
    %45 = arith.addf %42, %44 : vector<128x128xf32>
    %46 = vector.broadcast %25 : f32 to vector<128x128xf32>
    %47 = arith.mulf %46, %37 : vector<128x128xf32>
    %48 = arith.addf %45, %47 : vector<128x128xf32>
    %c0_14 = arith.constant 0 : index
    %c0_15 = arith.constant 0 : index
    %c0_16 = arith.constant 0 : index
    %c0_17 = arith.constant 0 : index
    %49 = vector.load %arg3[%c0_14, %c0_15, %c0_16, %c0_17] : memref<2x3x128x128xf32, #tpu.memory_space<vmem>>, vector<1x1x128x128xf32>
    %50 = vector.shape_cast %49 : vector<1x1x128x128xf32> to vector<128x128xf32>
    %51 = arith.subf %48, %50 : vector<128x128xf32>
    %52 = arith.mulf %51, %51 : vector<128x128xf32>
    %53 = vector.broadcast %10 : f32 to vector<128x128xf32>
    %54 = arith.mulf %53, %33 : vector<128x128xf32>
    %55 = vector.broadcast %19 : f32 to vector<128x128xf32>
    %56 = arith.mulf %55, %35 : vector<128x128xf32>
    %57 = arith.addf %54, %56 : vector<128x128xf32>
    %58 = vector.broadcast %28 : f32 to vector<128x128xf32>
    %59 = arith.mulf %58, %37 : vector<128x128xf32>
    %60 = arith.addf %57, %59 : vector<128x128xf32>
    %c0_18 = arith.constant 0 : index
    %c1_19 = arith.constant 1 : index
    %c0_20 = arith.constant 0 : index
    %c0_21 = arith.constant 0 : index
    %61 = vector.load %arg3[%c0_18, %c1_19, %c0_20, %c0_21] : memref<2x3x128x128xf32, #tpu.memory_space<vmem>>, vector<1x1x128x128xf32>
    %62 = vector.shape_cast %61 : vector<1x1x128x128xf32> to vector<128x128xf32>
    %63 = arith.subf %60, %62 : vector<128x128xf32>
    %64 = arith.mulf %63, %63 : vector<128x128xf32>
    %65 = arith.addf %52, %64 : vector<128x128xf32>
    %66 = vector.broadcast %13 : f32 to vector<128x128xf32>
    %67 = arith.mulf %66, %33 : vector<128x128xf32>
    %68 = vector.broadcast %22 : f32 to vector<128x128xf32>
    %69 = arith.mulf %68, %35 : vector<128x128xf32>
    %70 = arith.addf %67, %69 : vector<128x128xf32>
    %71 = vector.broadcast %31 : f32 to vector<128x128xf32>
    %72 = arith.mulf %71, %37 : vector<128x128xf32>
    %73 = arith.addf %70, %72 : vector<128x128xf32>
    %c0_22 = arith.constant 0 : index
    %c2_23 = arith.constant 2 : index
    %c0_24 = arith.constant 0 : index
    %c0_25 = arith.constant 0 : index
    %74 = vector.load %arg3[%c0_22, %c2_23, %c0_24, %c0_25] : memref<2x3x128x128xf32, #tpu.memory_space<vmem>>, vector<1x1x128x128xf32>
    %75 = vector.shape_cast %74 : vector<1x1x128x128xf32> to vector<128x128xf32>
    %76 = arith.subf %73, %75 : vector<128x128xf32>
    %77 = arith.mulf %76, %76 : vector<128x128xf32>
    %78 = arith.addf %65, %77 : vector<128x128xf32>
    %79 = arith.mulf %78, %40 : vector<128x128xf32>
    %80 = vector.shape_cast %79 : vector<128x128xf32> to vector<1x128x128xf32>
    %cst_26 = arith.constant dense<0.000000e+00> : vector<1xf32>
    %81 = vector.multi_reduction <add>, %80, %cst_26 [1, 2] : vector<1x128x128xf32> to vector<1xf32>
    %82 = vector.shape_cast %81 : vector<1xf32> to vector<1x1x1xf32>
    %83 = vector.extract %82[0, 0, 0] : f32 from vector<1x1x1xf32>
    %84 = vector.shape_cast %40 : vector<128x128xf32> to vector<1x128x128xf32>
    %cst_27 = arith.constant dense<0.000000e+00> : vector<1xf32>
    %85 = vector.multi_reduction <add>, %84, %cst_27 [1, 2] : vector<1x128x128xf32> to vector<1xf32>
    %86 = vector.shape_cast %85 : vector<1xf32> to vector<1x1x1xf32>
    %87 = vector.extract %86[0, 0, 0] : f32 from vector<1x1x1xf32>
    %c0_i32_28 = arith.constant 0 : i32
    %88 = vector.broadcast %c0_i32_28 : i32 to vector<1x128xi32>
    %89 = arith.cmpi eq, %0, %88 : vector<1x128xi32>
    %cst_29 = arith.constant 0.000000e+00 : f32
    %90 = vector.broadcast %83 : f32 to vector<1x128xf32>
    %91 = vector.broadcast %cst_29 : f32 to vector<1x128xf32>
    %92 = arith.select %89, %90, %91 : vector<1x128xi1>, vector<1x128xf32>
    %93 = arith.addf %1, %92 : vector<1x128xf32>
    %c1_i32_30 = arith.constant 1 : i32
    %94 = vector.broadcast %c1_i32_30 : i32 to vector<1x128xi32>
    %95 = arith.cmpi eq, %0, %94 : vector<1x128xi32>
    %cst_31 = arith.constant 0.000000e+00 : f32
    %96 = vector.broadcast %87 : f32 to vector<1x128xf32>
    %97 = vector.broadcast %cst_31 : f32 to vector<1x128xf32>
    %98 = arith.select %95, %96, %97 : vector<1x128xi1>, vector<1x128xf32>
    %99 = arith.addf %93, %98 : vector<1x128xf32>
    %c2_i32_32 = arith.constant 2 : i32
    %100 = arith.muli %arg0, %c2_i32_32 : i32
    %c1_i32_33 = arith.constant 1 : i32
    %101 = arith.addi %100, %c1_i32_33 : i32
    %c9_i32_34 = arith.constant 9 : i32
    %102 = arith.muli %101, %c9_i32_34 : i32
    %c0_i32_35 = arith.constant 0 : i32
    %103 = arith.addi %102, %c0_i32_35 : i32
    %104 = arith.index_cast %103 : i32 to index
    %105 = memref.load %arg1[%104] : memref<36xf32, #tpu.memory_space<smem>>
    %c1_i32_36 = arith.constant 1 : i32
    %106 = arith.addi %102, %c1_i32_36 : i32
    %107 = arith.index_cast %106 : i32 to index
    %108 = memref.load %arg1[%107] : memref<36xf32, #tpu.memory_space<smem>>
    %c2_i32_37 = arith.constant 2 : i32
    %109 = arith.addi %102, %c2_i32_37 : i32
    %110 = arith.index_cast %109 : i32 to index
    %111 = memref.load %arg1[%110] : memref<36xf32, #tpu.memory_space<smem>>
    %c3_i32_38 = arith.constant 3 : i32
    %112 = arith.addi %102, %c3_i32_38 : i32
    %113 = arith.index_cast %112 : i32 to index
    %114 = memref.load %arg1[%113] : memref<36xf32, #tpu.memory_space<smem>>
    %c4_i32_39 = arith.constant 4 : i32
    %115 = arith.addi %102, %c4_i32_39 : i32
    %116 = arith.index_cast %115 : i32 to index
    %117 = memref.load %arg1[%116] : memref<36xf32, #tpu.memory_space<smem>>
    %c5_i32_40 = arith.constant 5 : i32
    %118 = arith.addi %102, %c5_i32_40 : i32
    %119 = arith.index_cast %118 : i32 to index
    %120 = memref.load %arg1[%119] : memref<36xf32, #tpu.memory_space<smem>>
    %c6_i32_41 = arith.constant 6 : i32
    %121 = arith.addi %102, %c6_i32_41 : i32
    %122 = arith.index_cast %121 : i32 to index
    %123 = memref.load %arg1[%122] : memref<36xf32, #tpu.memory_space<smem>>
    %c7_i32_42 = arith.constant 7 : i32
    %124 = arith.addi %102, %c7_i32_42 : i32
    %125 = arith.index_cast %124 : i32 to index
    %126 = memref.load %arg1[%125] : memref<36xf32, #tpu.memory_space<smem>>
    %c8_i32_43 = arith.constant 8 : i32
    %127 = arith.addi %102, %c8_i32_43 : i32
    %128 = arith.index_cast %127 : i32 to index
    %129 = memref.load %arg1[%128] : memref<36xf32, #tpu.memory_space<smem>>
    %c1_44 = arith.constant 1 : index
    %c0_45 = arith.constant 0 : index
    %c0_46 = arith.constant 0 : index
    %c0_47 = arith.constant 0 : index
    %130 = vector.load %arg2[%c1_44, %c0_45, %c0_46, %c0_47] : memref<2x3x128x128xf32, #tpu.memory_space<vmem>>, vector<1x1x128x128xf32>
    %131 = vector.shape_cast %130 : vector<1x1x128x128xf32> to vector<128x128xf32>
    %c1_48 = arith.constant 1 : index
    %c1_49 = arith.constant 1 : index
    %c0_50 = arith.constant 0 : index
    %c0_51 = arith.constant 0 : index
    %132 = vector.load %arg2[%c1_48, %c1_49, %c0_50, %c0_51] : memref<2x3x128x128xf32, #tpu.memory_space<vmem>>, vector<1x1x128x128xf32>
    %133 = vector.shape_cast %132 : vector<1x1x128x128xf32> to vector<128x128xf32>
    %c1_52 = arith.constant 1 : index
    %c2_53 = arith.constant 2 : index
    %c0_54 = arith.constant 0 : index
    %c0_55 = arith.constant 0 : index
    %134 = vector.load %arg2[%c1_52, %c2_53, %c0_54, %c0_55] : memref<2x3x128x128xf32, #tpu.memory_space<vmem>>, vector<1x1x128x128xf32>
    %135 = vector.shape_cast %134 : vector<1x1x128x128xf32> to vector<128x128xf32>
    %c1_56 = arith.constant 1 : index
    %c0_57 = arith.constant 0 : index
    %c0_58 = arith.constant 0 : index
    %136 = vector.load %arg4[%c1_56, %c0_57, %c0_58] : memref<2x128x128xbf16, #tpu.memory_space<vmem>>, vector<1x128x128xbf16>
    %137 = vector.shape_cast %136 : vector<1x128x128xbf16> to vector<128x128xbf16>
    %138 = arith.extf %137 : vector<128x128xbf16> to vector<128x128xf32>
    %139 = vector.broadcast %105 : f32 to vector<128x128xf32>
    %140 = arith.mulf %139, %131 : vector<128x128xf32>
    %141 = vector.broadcast %114 : f32 to vector<128x128xf32>
    %142 = arith.mulf %141, %133 : vector<128x128xf32>
    %143 = arith.addf %140, %142 : vector<128x128xf32>
    %144 = vector.broadcast %123 : f32 to vector<128x128xf32>
    %145 = arith.mulf %144, %135 : vector<128x128xf32>
    %146 = arith.addf %143, %145 : vector<128x128xf32>
    %c1_59 = arith.constant 1 : index
    %c0_60 = arith.constant 0 : index
    %c0_61 = arith.constant 0 : index
    %c0_62 = arith.constant 0 : index
    %147 = vector.load %arg3[%c1_59, %c0_60, %c0_61, %c0_62] : memref<2x3x128x128xf32, #tpu.memory_space<vmem>>, vector<1x1x128x128xf32>
    %148 = vector.shape_cast %147 : vector<1x1x128x128xf32> to vector<128x128xf32>
    %149 = arith.subf %146, %148 : vector<128x128xf32>
    %150 = arith.mulf %149, %149 : vector<128x128xf32>
    %151 = vector.broadcast %108 : f32 to vector<128x128xf32>
    %152 = arith.mulf %151, %131 : vector<128x128xf32>
    %153 = vector.broadcast %117 : f32 to vector<128x128xf32>
    %154 = arith.mulf %153, %133 : vector<128x128xf32>
    %155 = arith.addf %152, %154 : vector<128x128xf32>
    %156 = vector.broadcast %126 : f32 to vector<128x128xf32>
    %157 = arith.mulf %156, %135 : vector<128x128xf32>
    %158 = arith.addf %155, %157 : vector<128x128xf32>
    %c1_63 = arith.constant 1 : index
    %c1_64 = arith.constant 1 : index
    %c0_65 = arith.constant 0 : index
    %c0_66 = arith.constant 0 : index
    %159 = vector.load %arg3[%c1_63, %c1_64, %c0_65, %c0_66] : memref<2x3x128x128xf32, #tpu.memory_space<vmem>>, vector<1x1x128x128xf32>
    %160 = vector.shape_cast %159 : vector<1x1x128x128xf32> to vector<128x128xf32>
    %161 = arith.subf %158, %160 : vector<128x128xf32>
    %162 = arith.mulf %161, %161 : vector<128x128xf32>
    %163 = arith.addf %150, %162 : vector<128x128xf32>
    %164 = vector.broadcast %111 : f32 to vector<128x128xf32>
    %165 = arith.mulf %164, %131 : vector<128x128xf32>
    %166 = vector.broadcast %120 : f32 to vector<128x128xf32>
    %167 = arith.mulf %166, %133 : vector<128x128xf32>
    %168 = arith.addf %165, %167 : vector<128x128xf32>
    %169 = vector.broadcast %129 : f32 to vector<128x128xf32>
    %170 = arith.mulf %169, %135 : vector<128x128xf32>
    %171 = arith.addf %168, %170 : vector<128x128xf32>
    %c1_67 = arith.constant 1 : index
    %c2_68 = arith.constant 2 : index
    %c0_69 = arith.constant 0 : index
    %c0_70 = arith.constant 0 : index
    %172 = vector.load %arg3[%c1_67, %c2_68, %c0_69, %c0_70] : memref<2x3x128x128xf32, #tpu.memory_space<vmem>>, vector<1x1x128x128xf32>
    %173 = vector.shape_cast %172 : vector<1x1x128x128xf32> to vector<128x128xf32>
    %174 = arith.subf %171, %173 : vector<128x128xf32>
    %175 = arith.mulf %174, %174 : vector<128x128xf32>
    %176 = arith.addf %163, %175 : vector<128x128xf32>
    %177 = arith.mulf %176, %138 : vector<128x128xf32>
    %178 = vector.shape_cast %177 : vector<128x128xf32> to vector<1x128x128xf32>
    %cst_71 = arith.constant dense<0.000000e+00> : vector<1xf32>
    %179 = vector.multi_reduction <add>, %178, %cst_71 [1, 2] : vector<1x128x128xf32> to vector<1xf32>
    %180 = vector.shape_cast %179 : vector<1xf32> to vector<1x1x1xf32>
    %181 = vector.extract %180[0, 0, 0] : f32 from vector<1x1x1xf32>
    %182 = vector.shape_cast %138 : vector<128x128xf32> to vector<1x128x128xf32>
    %cst_72 = arith.constant dense<0.000000e+00> : vector<1xf32>
    %183 = vector.multi_reduction <add>, %182, %cst_72 [1, 2] : vector<1x128x128xf32> to vector<1xf32>
    %184 = vector.shape_cast %183 : vector<1xf32> to vector<1x1x1xf32>
    %185 = vector.extract %184[0, 0, 0] : f32 from vector<1x1x1xf32>
    %c2_i32_73 = arith.constant 2 : i32
    %186 = vector.broadcast %c2_i32_73 : i32 to vector<1x128xi32>
    %187 = arith.cmpi eq, %0, %186 : vector<1x128xi32>
    %cst_74 = arith.constant 0.000000e+00 : f32
    %188 = vector.broadcast %181 : f32 to vector<1x128xf32>
    %189 = vector.broadcast %cst_74 : f32 to vector<1x128xf32>
    %190 = arith.select %187, %188, %189 : vector<1x128xi1>, vector<1x128xf32>
    %191 = arith.addf %99, %190 : vector<1x128xf32>
    %c3_i32_75 = arith.constant 3 : i32
    %192 = vector.broadcast %c3_i32_75 : i32 to vector<1x128xi32>
    %193 = arith.cmpi eq, %0, %192 : vector<1x128xi32>
    %cst_76 = arith.constant 0.000000e+00 : f32
    %194 = vector.broadcast %185 : f32 to vector<1x128xf32>
    %195 = vector.broadcast %cst_76 : f32 to vector<1x128xf32>
    %196 = arith.select %193, %194, %195 : vector<1x128xi1>, vector<1x128xf32>
    %197 = arith.addf %191, %196 : vector<1x128xf32>
    %c0_77 = arith.constant 0 : index
    %c0_78 = arith.constant 0 : index
    %c0_79 = arith.constant 0 : index
    %198 = vector.load %arg5[%c0_77, %c0_78, %c0_79] : memref<1x1x128xf32, #tpu.memory_space<vmem>>, vector<1x1x128xf32>
    %199 = vector.shape_cast %198 : vector<1x1x128xf32> to vector<1x128xf32>
    %200 = vector.shape_cast %197 : vector<1x128xf32> to vector<1x1x128xf32>
    tpu.vector_store %arg5[%c0_77, %c0_78, %c0_79], %200 {strides = array<i32>} : memref<1x1x128xf32, #tpu.memory_space<vmem>>, vector<1x1x128xf32>,
    return
  }
  func.func @transform_0(%arg0: i32, %arg1: memref<36xf32, #tpu.memory_space<smem>>) -> (i32, i32, i32, i32) {
    %c0_i32 = arith.constant 0 : i32
    %c0_i32_0 = arith.constant 0 : i32
    %c0_i32_1 = arith.constant 0 : i32
    %c0_i32_2 = arith.constant 0 : i32
    return %arg0, %c0_i32, %c0_i32_0, %c0_i32_1 : i32, i32, i32, i32
  }
  func.func @transform_1(%arg0: i32, %arg1: memref<36xf32, #tpu.memory_space<smem>>) -> (i32, i32, i32, i32) {
    %c0_i32 = arith.constant 0 : i32
    %c0_i32_0 = arith.constant 0 : i32
    %c0_i32_1 = arith.constant 0 : i32
    %c0_i32_2 = arith.constant 0 : i32
    return %arg0, %c0_i32, %c0_i32_0, %c0_i32_1 : i32, i32, i32, i32
  }
  func.func @transform_2(%arg0: i32, %arg1: memref<36xf32, #tpu.memory_space<smem>>) -> (i32, i32, i32) {
    %c0_i32 = arith.constant 0 : i32
    %c0_i32_0 = arith.constant 0 : i32
    %c0_i32_1 = arith.constant 0 : i32
    return %arg0, %c0_i32, %c0_i32_0 : i32, i32, i32
  }
  func.func @transform_3(%arg0: i32, %arg1: memref<36xf32, #tpu.memory_space<smem>>) -> (i32, i32, i32) {
    %c0_i32 = arith.constant 0 : i32
    %c0_i32_0 = arith.constant 0 : i32
    %c0_i32_1 = arith.constant 0 : i32
    return %arg0, %c0_i32, %c0_i32_0 : i32, i32, i32
  }
}

</mosaic_0001>

<llo_original>
// kernel: custom-call.8
$region0: #{custom-call.8}
  %s0 = inlined_call_operand.vmem [shape: f32[4,3,3], index: 0, kind: input, shape index: {}]
  %s1 = inlined_call_operand.vmem [shape: f32[4,3,3], index: 1, kind: output, shape index: {0}]
  %s2 = inlined_call_operand.hbm [shape: s32[4,3], index: 2, kind: output, shape index: {1}]
  %s3 = inlined_call_operand.vmem [shape: s32[4,3], index: 3, kind: output, shape index: {2}]
  %4 = xla_tuple %s1, %s2, %s3
  $region1: #{custom-call.8} parent=0
    #allocation0 [shape = 'u8[4096]{0}', space=vmem, size = 0x1000, scoped, tag = 'operand span for operand 0']
    #allocation1 [shape = 'u8[4096]{0}', space=vmem, size = 0x1000, scoped, tag = 'packed  for operand 0']
    #allocation2 [shape = 'u8[4096]{0}', space=vmem, size = 0x1000, scoped, tag = 'operand span for operand 1']
    #allocation3 [shape = 'u8[4096]{0}', space=vmem, size = 0x1000, scoped, tag = 'packed  for operand 1']
    #allocation4 [shape = 'u8[4096]{0}', space=vmem, size = 0x1000, scoped, tag = 'operand span for operand 2']
    #allocation5 [shape = 'u8[4096]{0}', space=vmem, size = 0x1000, scoped, tag = 'packed  for operand 2']
    #allocation6 [shape = 's32[2]{0}', space=sflag, size = 0x8, scoped, tag = 'scoped memory for custom-call.8']
    #allocation7 [shape = 'u8[4096]{0}', space=vmem, size = 0x1000, scoped, tag = 'operand span for operand 3']
    #allocation8 [shape = 'u8[4096]{0}', space=vmem, size = 0x1000, scoped, tag = 'packed  for operand 3']
    %5 = vsyncpa [#allocation6], 0
    %s6 = scalar_lea.sflag [#allocation6], 1
    %7 = vsyncpa %s6, 0
    loop: start=0, step=1, limit=6
    $region2: #{custom-call.8} parent=1 // loop_pre_header
      _
    $region3: #{custom-call.8} parent=1 // loop_header
      %s9 = sphi 0, %s13
      %p10 = scmp.ge.s32.totalorder %s9, 6
      %s21 = sphi 0, %s23
      %s24 = sphi 0, %s21
      %s25 = sphi 0, %s24
      %s41 = sphi 0, %s25
      %s49 = sphi 0, %s51
      %s52 = sphi 0, %s49
      %s53 = sphi 0, %s52
      %s69 = sphi 0, %s53
    $region4: #{custom-call.8} parent=1 // loop_header_branch
      %12 = sbr.rel (%p10) target = $region8
    $region5: #{custom-call.8} parent=1 // loop_body
      %s14 = ssub.s32 %s9, 1
      %s15 = ssub.s32 %s9, 2
      %s16 = sadd.s32 %s9, 1
      %s17 = sshrl.u32 %s9, 3
      %s18 = sshrl.u32 %s16, 3
      %s19 = ssub.s32 %s17, %s18
      %p20 = scmp.eq.s32.totalorder %s19, 0
      %s22 = sadd.s32 %s21, 1
      %s23 = scalar_select %p20, %s21, %s22
      %p26 = pneg %p20
      %p27 = scmp.eq.s32.totalorder %s9, 3
      %p28 = por %p26, %p27
      %p29 = scmp.ne.s32.totalorder %s21, %s24
      %p30 = scmp.eq.s32.totalorder %s9, 0
      %p31 = por %p29, %p30
      %p32 = scmp.ne.s32.totalorder %s21, %s24
      %p33 = scmp.eq.s32.totalorder %s14, 3
      %p34 = por %p32, %p33
      %p35 = scmp.ne.s32.totalorder %s24, %s25
      %p36 = scmp.eq.s32.totalorder %s14, 0
      %p37 = por %p35, %p36
      %p38 = scmp.ne.s32.totalorder %s24, %s25
      %p39 = scmp.eq.s32.totalorder %s15, 3
      %p40 = por %p38, %p39
      %p42 = scmp.ne.s32.totalorder %s25, %s41
      %p43 = scmp.eq.s32.totalorder %s15, 0
      %p44 = por %p42, %p43
      %s45 = sshrl.u32 %s9, 3
      %s46 = sshrl.u32 %s16, 3
      %s47 = ssub.s32 %s45, %s46
      %p48 = scmp.eq.s32.totalorder %s47, 0
      %s50 = sadd.s32 %s49, 1
      %s51 = scalar_select %p48, %s49, %s50
      %p54 = pneg %p48
      %p55 = scmp.eq.s32.totalorder %s9, 3
      %p56 = por %p54, %p55
      %p57 = scmp.ne.s32.totalorder %s49, %s52
      %p58 = scmp.eq.s32.totalorder %s9, 0
      %p59 = por %p57, %p58
      %p60 = scmp.ne.s32.totalorder %s49, %s52
      %p61 = scmp.eq.s32.totalorder %s14, 3
      %p62 = por %p60, %p61
      %p63 = scmp.ne.s32.totalorder %s52, %s53
      %p64 = scmp.eq.s32.totalorder %s14, 0
      %p65 = por %p63, %p64
      %p66 = scmp.ne.s32.totalorder %s52, %s53
      %p67 = scmp.eq.s32.totalorder %s15, 3
      %p68 = por %p66, %p67
      %p70 = scmp.ne.s32.totalorder %s53, %s69
      %p71 = scmp.eq.s32.totalorder %s15, 0
      %p72 = por %p70, %p71
      %p73 = scmp.le.s32.totalorder 1, %s9
      %p74 = scmp.lt.s32.totalorder %s9, 5
      %p75 = pnand %p73, %p74
      %p76 = pneg %p75
      // Predicated region
      $region9: #{custom-call.8} parent=5 // pred_check
        _
      $region10: #{custom-call.8} parent=5 // pred_check_branch
        %78 = sbr.rel (%p75) target = $region12
      $region11: #{custom-call.8} parent=5 // pred_region
        %s79 = ssub.s32 %s9, 1
      $region12: #{custom-call.8} parent=5 // pred_fallthru
        _
      %p80 = scmp.lt.s32.totalorder %s9, 4
      // Predicated region
      $region13: #{custom-call.8} parent=5 // pred_check
        %p81 = pneg %p80
      $region14: #{custom-call.8} parent=5 // pred_check_branch
        %83 = sbr.rel (%p81) target = $region16
      $region15: #{custom-call.8} parent=5 // pred_region
        %s84 = sand.u32 %s9, 1
        %s85 = sand.u32 %s9, 1
        %s86 = smul.addr %s85, 4
        %s87 = scalar_lea.vmem [#allocation1], %s86
        %s88 = smul.addr %s9, 4
        %s89 = scalar_lea.vmem %s0, %s88
        // Predicated region
        $region17: #{custom-call.8} parent=15 // pred_check
          _
        $region18: #{custom-call.8} parent=15 // pred_check_branch
          %91 = sbr.rel (0) target = $region20
        $region19: #{custom-call.8} parent=15 // pred_region
          // Predicated region
          $region21: #{custom-call.8} parent=19 // pred_check
            _
          $region22: #{custom-call.8} parent=19 // pred_check_branch
            %93 = sbr.rel target = $region24
          $region23: #{custom-call.8} parent=19 // pred_region
            // Predicated region
            $region36: #{custom-call.8} parent=23 // pred_check
              _
            $region37: #{custom-call.8} parent=23 // pred_check_branch
              %109 = sbr.rel (0) target = $region39
            $region38: #{custom-call.8} parent=23 // pred_region
              %s111 = ssub.s32 16, 1
              loop: start=0, step=1, limit=1
              $region40: #{custom-call.8} parent=38 // loop_pre_header
                _
              $region41: #{custom-call.8} parent=38 // loop_header
                %s113 = sphi 0, %s117
                %p114 = scmp.ge.s32.totalorder %s113, 1
                %s118 = sphi %s89, %s89
                %s119 = sphi %s87, %s87
              $region42: #{custom-call.8} parent=38 // loop_header_branch
                %116 = sbr.rel (%p114) target = $region46
              $region43: #{custom-call.8} parent=38 // loop_body
                %v120 = vld [vmem:[%s118] sm:%s111]
                %121 = vst [vmem:[%s119] sm:%s111] %v120
              $region44: #{custom-call.8} parent=38 // loop_footer
                %s117 = sadd.s32 1, %s113
              $region45: #{custom-call.8} parent=38 // loop_footer_branch
                %112 = sbr.rel target = $region41
              $region46: #{custom-call.8} parent=38 // loop_exit
                _
            $region39: #{custom-call.8} parent=23 // pred_fallthru
              _
          $region24: #{custom-call.8} parent=19 // pred_fallthru
            _
          // Predicated region
          $region25: #{custom-call.8} parent=19 // pred_check
            _
          $region26: #{custom-call.8} parent=19 // pred_check_branch
            %95 = sbr.rel (0) target = $region28
          $region27: #{custom-call.8} parent=19 // pred_region
            %s97 = ssub.s32 16, 1
            loop: start=0, step=1, limit=1
            $region29: #{custom-call.8} parent=27 // loop_pre_header
              _
            $region30: #{custom-call.8} parent=27 // loop_header
              %s99 = sphi 0, %s103
              %p100 = scmp.ge.s32.totalorder %s99, 1
              %s104 = sphi %s89, %s89
              %s105 = sphi %s87, %s87
            $region31: #{custom-call.8} parent=27 // loop_header_branch
              %102 = sbr.rel (%p100) target = $region35
            $region32: #{custom-call.8} parent=27 // loop_body
              %v106 = vld [vmem:[%s104] sm:%s97]
              %107 = vst [vmem:[%s105] sm:%s97] %v106
            $region33: #{custom-call.8} parent=27 // loop_footer
              %s103 = sadd.s32 1, %s99
            $region34: #{custom-call.8} parent=27 // loop_footer_branch
              %98 = sbr.rel target = $region30
            $region35: #{custom-call.8} parent=27 // loop_exit
              _
          $region28: #{custom-call.8} parent=19 // pred_fallthru
            _
        $region20: #{custom-call.8} parent=15 // pred_fallthru
          _
        %122 = vnop
      $region16: #{custom-call.8} parent=5 // pred_fallthru
        _
      %p123 = scmp.le.s32.totalorder 1, %s9
      %p124 = scmp.lt.s32.totalorder %s9, 5
      %p125 = pnand %p123, %p124
      %p126 = pneg %p125
      // Predicated region
      $region47: #{custom-call.8} parent=5 // pred_check
        _
      $region48: #{custom-call.8} parent=5 // pred_check_branch
        %128 = sbr.rel (%p125) target = $region50
      $region49: #{custom-call.8} parent=5 // pred_region
        #allocation9 [shape = 's32[3,128]{1,0}', space=vmem, size = 0x1000, scoped, tag = 'scratch for permutations']
        %s129 = ssub.s32 %s9, 1
        %s130 = sand.u32 %s14, 1
        %s131 = sand.u32 %s14, 1
        %s132 = smul.addr %s131, 4
        %s133 = scalar_lea.vmem [#allocation1], %s132
        %s134 = sand.u32 %s14, 1
        %s135 = sand.u32 %s14, 1
        %s136 = smul.addr %s135, 4
        %s137 = scalar_lea.vmem [#allocation1], %s136
        %s138 = sand.u32 %s14, 1
        %s139 = sand.u32 %s14, 1
        %s140 = smul.addr %s139, 4
        %s141 = scalar_lea.vmem [#allocation3], %s140
        %p142 = pneg %p37
        %p143 = pneg %p34
        %s144 = sand.u32 %s24, 1
        %s145 = scalar_lea.sflag [#allocation6], %s144
        %s146 = sand.u32 %s24, 1
        %s147 = smul.addr %s146, 4
        %s148 = scalar_lea.vmem [#allocation5], %s147
        %p149 = pneg %p65
        %p150 = pneg %p62
        %s151 = sand.u32 %s52, 1
        %s152 = sand.u32 %s52, 1
        %s153 = smul.addr %s152, 4
        %s154 = scalar_lea.vmem [#allocation8], %s153
        %s156 = ssub.s32 16, 1
        %v157 = vld [vmem:[%s137] sm:%s156]
        %158 = vst [vmem:[#allocation0] sm:%s156] %v157
        %s159 = sshrl.u32 %s14, 3
        %s160 = sshrl.u32 %s14, 3
        %v161 = vld [vmem:[#allocation0] sm:$0xff]
        %162 = vst [vmem:[#allocation2] sm:$0xff] %v161
        %s163 = sand.u32 %s14, 7
        %s164 = scalar_lea.vmem [#allocation4], %s163
        %s165 = sand.u32 %s14, 7
        %s166 = scalar_lea.vmem [#allocation7], %s165
        %167 = vst [vmem:[%s164] sm:$0x1] 0
        %v168 = vlaneseq
        %v169 = vshrl.u32 %v168, 7
        %v170 = vmov %v169
        %172 = vst [vmem:[#allocation9] sm:$0xff] %v170
        loop: start=0, step=1, limit=3
        $region52: #{custom-call.8} parent=49 // loop_pre_header
          _
        $region53: #{custom-call.8} parent=49 // loop_header
          %s174 = sphi 0, %s178
          %p175 = scmp.ge.s32.totalorder %s174, 3
        $region54: #{custom-call.8} parent=49 // loop_header_branch
          %177 = sbr.rel (%p175) target = $region58
        $region55: #{custom-call.8} parent=49 // loop_body
          %v179 = vstv %s174
          %v180 = vlaneseq
          %v181 = vshrl.u32 %v180, 7
          %v182 = vmov %v181
          %v183 = vld [vmem:[#allocation2] sm:$0xff]
          %v184 = vand.u32 2147483647, %v183
          %v186 = vstv %s174
          %vm187 = vcmp.ge.s32.totalorder %v182, %v186
          %vm188 = vcmp.lt.s32.totalorder %v182, 3
          %vm189 = vmand %vm187, %vm188
          %vm190 = vcmp.lt.f32.partialorder -inf, %v184
          %vm191 = vmand %vm189, %vm190
          %v192 = vsel %vm191, %v182, %v179
          %v193 = vsel %vm191, %v184, -inf
          %v194 = vrot.slane %v193, 1
          %v195 = vrot.slane %v192, 1
          %vm196 = vcmp.ge.f32.partialorder %v194, %v193
          %v197 = vsel %vm196, %v194, %v193
          %v198 = vsel %vm196, %v195, %v192
          %v199 = vrot.slane %v194, 1
          %v200 = vrot.slane %v195, 1
          %vm201 = vcmp.ge.f32.partialorder %v199, %v197
          %v202 = vsel %vm201, %v199, %v197
          %v203 = vsel %vm201, %v200, %v198
          %v204 = vrot.slane %v199, 1
          %v205 = vrot.slane %v200, 1
          %vm206 = vcmp.ge.f32.partialorder %v204, %v202
          %v207 = vsel %vm206, %v204, %v202
          %v208 = vsel %vm206, %v205, %v203
          %v209 = vrot.slane %v204, 1
          %v210 = vrot.slane %v205, 1
          %vm211 = vcmp.ge.f32.partialorder %v209, %v207
          %v212 = vsel %vm211, %v209, %v207
          %v213 = vsel %vm211, %v210, %v208
          %v214 = vrot.slane %v209, 1
          %v215 = vrot.slane %v210, 1
          %vm216 = vcmp.ge.f32.partialorder %v214, %v212
          %v217 = vsel %vm216, %v214, %v212
          %v218 = vsel %vm216, %v215, %v213
          %v219 = vrot.slane %v214, 1
          %v220 = vrot.slane %v215, 1
          %vm221 = vcmp.ge.f32.partialorder %v219, %v217
          %v222 = vsel %vm221, %v219, %v217
          %v223 = vsel %vm221, %v220, %v218
          %v224 = vrot.slane %v219, 1
          %v225 = vrot.slane %v220, 1
          %vm226 = vcmp.ge.f32.partialorder %v224, %v222
          %v227 = vsel %vm226, %v224, %v222
          %v228 = vsel %vm226, %v225, %v223
          %s229 = ssub.s32 128, %s174
          %230 = vrot.lane.b32.xlu0 %v228, %s229
          %v231 = vpop.permute.xlu0 %230
          %s232 = vtos %v231
          %v233 = vstv %s174
          %v234 = vlaneseq
          %v235 = vand.u32 %v234, 127
          %vm236 = vcmp.eq.s32.totalorder %v235, %v233
          %v237 = vstv %s232
          %v238 = vld [vmem:[%s164] ss:$0 sm:$0xff]
          %v239 = vsel %vm236, %v237, %v238
          %240 = vst [vmem:[%s164] sm:$0x1] %v239
          %s241 = scalar_lea.vmem [#allocation2], %s174
          %s242 = scalar_lea.vmem [#allocation2], %s232
          %v243 = vld [vmem:[%s241] ss:$0 sm:$0xff]
          %v244 = vld [vmem:[%s242] ss:$0 sm:$0xff]
          %245 = vst [vmem:[%s242] sm:$0x1] %v243
          %246 = vst [vmem:[%s241] sm:$0x1] %v244
          %s247 = scalar_lea.vmem [#allocation9], %s174
          %s248 = scalar_lea.vmem [#allocation9], %s232
          %v249 = vld [vmem:[%s247] ss:$0 sm:$0xff]
          %v250 = vld [vmem:[%s248] ss:$0 sm:$0xff]
          %251 = vst [vmem:[%s248] sm:$0x1] %v249
          %252 = vst [vmem:[%s247] sm:$0x1] %v250
          %vm253 = vcmp.ne.f32.partialorder %v244, 0.0
          %vm254 = vmand %vm236, %vm253
          %v255 = vsel %vm254, %v244, 1.0
          %v256 = vlaneseq
          %v257 = vand.u32 %v256, 127
          %v258 = vstv %s174
          %vm259 = vcmp.gt.s32.totalorder %v257, %v258
          %v260 = vsel %vm259, %v244, 0.0
          %v261 = vlaneseq
          %v262 = vshrl.u32 %v261, 7
          %v263 = vmov %v262
          %v264 = vld [vmem:[#allocation2] sm:$0xff]
          %v266 = vstv %s174
          %vm267 = vcmp.gt.s32.totalorder %v263, %v266
          %v268 = vsel %vm267, %v255, 1.0
          %v269 = vrcp.pop %v268
          %v270 = vmul.f32 %v268, %v269
          %v271 = vsub.f32 1.0, %v270
          %v272 = vmul.f32 %v269, %v271
          %v273 = vadd.f32 %v269, %v272
          %vm274 = vweird.f32 %v268
          %vm275 = vweird.f32 %v269
          %vm276 = vmor %vm274, %vm275
          %v277 = vsel %vm276, %v269, %v273
          %v278 = vand.u32 2147483647, %v268
          %vm279 = vcmp.eq.f32.partialorder %v278, 8.507059e+37
          %v280 = vand.u32 %v268, 2147483648
          %v281 = vor.u32 1.1754944e-38, %v280
          %v282 = vsel %vm279, %v281, %v277
          %v283 = vmul.f32 %v264, %v282
          %vm284 = vmand %vm267, %vm236
          %v285 = vsel %vm284, %v283, 0.0
          %286 = vadd.xlane.f32.xlu0 %v285
          %v287 = vpop.xlane.xlu0 %286
          %v288 = vmul.f32 %v287, %v260
          %v289 = vsub.f32 %v283, %v288
          %290 = vst [vmem:[#allocation2] sm:$0xff] %v289
        $region56: #{custom-call.8} parent=49 // loop_footer
          %s178 = sadd.s32 1, %s174
        $region57: #{custom-call.8} parent=49 // loop_footer_branch
          %173 = sbr.rel target = $region53
        $region58: #{custom-call.8} parent=49 // loop_exit
          _
        %v291 = vld [vmem:[#allocation9] sm:$0xff]
        %s292 = scalar_lea.vmem [#allocation9], 8
        %s293 = scalar_lea.vmem [#allocation9], 16
        %s294 = scalar_lea.vmem [#allocation9], 24
        %s295 = scalar_lea.vmem [#allocation9], 32
        %s296 = scalar_lea.vmem [#allocation9], 40
        %s297 = scalar_lea.vmem [#allocation9], 48
        %s298 = scalar_lea.vmem [#allocation9], 56
        %s299 = scalar_lea.vmem [#allocation9], 64
        %s300 = scalar_lea.vmem [#allocation9], 72
        %s301 = scalar_lea.vmem [#allocation9], 80
        %s302 = scalar_lea.vmem [#allocation9], 88
        %s303 = scalar_lea.vmem [#allocation9], 96
        %s304 = scalar_lea.vmem [#allocation9], 104
        %s305 = scalar_lea.vmem [#allocation9], 112
        %s306 = scalar_lea.vmem [#allocation9], 120
        %307 = vxpose.xlu0.b32.start [1/16] %v291, 128
        %308 = vxpose.xlu0.b32.cont [2/16] 0, 128
        %309 = vxpose.xlu0.b32.cont [3/16] 0, 128
        %310 = vxpose.xlu0.b32.cont [4/16] 0, 128
        %311 = vxpose.xlu0.b32.cont [5/16] 0, 128
        %312 = vxpose.xlu0.b32.cont [6/16] 0, 128
        %313 = vxpose.xlu0.b32.cont [7/16] 0, 128
        %314 = vxpose.xlu0.b32.cont [8/16] 0, 128
        %315 = vxpose.xlu0.b32.cont [9/16] 0, 128
        %316 = vxpose.xlu0.b32.cont [10/16] 0, 128
        %317 = vxpose.xlu0.b32.cont [11/16] 0, 128
        %318 = vxpose.xlu0.b32.cont [12/16] 0, 128
        %319 = vxpose.xlu0.b32.cont [13/16] 0, 128
        %320 = vxpose.xlu0.b32.cont [14/16] 0, 128
        %321 = vxpose.xlu0.b32.cont [15/16] 0, 128
        %322 = vxpose.xlu0.b32.end [16/16] 0, 128
        %v323 = vpop.trf.xlu0
        %v324 = vpop.trf.xlu0
        %v325 = vpop.trf.xlu0
        %v326 = vpop.trf.xlu0
        %v327 = vpop.trf.xlu0
        %v328 = vpop.trf.xlu0
        %v329 = vpop.trf.xlu0
        %v330 = vpop.trf.xlu0
        %v331 = vpop.trf.xlu0
        %v332 = vpop.trf.xlu0
        %v333 = vpop.trf.xlu0
        %v334 = vpop.trf.xlu0
        %v335 = vpop.trf.xlu0
        %v336 = vpop.trf.xlu0
        %v337 = vpop.trf.xlu0
        %v338 = vpop.trf.xlu0
        %339 = vst [vmem:[%s166] sm:$0x1] %v323
        %s341 = ssub.s32 16, 1
        %v342 = vld [vmem:[#allocation2] sm:%s341]
        %s344 = ssub.s32 16, 1
        %345 = vst [vmem:[%s141] sm:%s344] %v342
        %s347 = ssub.s32 16, 1
        %v348 = vld [vmem:[#allocation4] sm:%s347]
        %s350 = ssub.s32 16, 1
        %351 = vst [vmem:[%s148] sm:%s350] %v348
        %s353 = ssub.s32 16, 1
        %v354 = vld [vmem:[#allocation7] sm:%s353]
        %s356 = ssub.s32 16, 1
        %357 = vst [vmem:[%s154] sm:%s356] %v354
        %s358 = sand.u32 %s14, 1
        %s359 = sand.u32 %s14, 1
        %s360 = smul.addr %s359, 4
        %s361 = scalar_lea.vmem [#allocation3], %s360
        %s362 = sand.u32 %s24, 1
        %s363 = scalar_lea.sflag [#allocation6], %s362
        %s364 = sand.u32 %s24, 1
        %s365 = smul.addr %s364, 4
        %s366 = scalar_lea.vmem [#allocation5], %s365
        %s367 = sand.u32 %s52, 1
        %s368 = sand.u32 %s52, 1
        %s369 = smul.addr %s368, 4
        %s370 = scalar_lea.vmem [#allocation8], %s369
        %s371 = smul.addr %s14, 4
        %s372 = scalar_lea.vmem %s1, %s371
        // Predicated region
        $region59: #{custom-call.8} parent=49 // pred_check
          _
        $region60: #{custom-call.8} parent=49 // pred_check_branch
          %374 = sbr.rel (0) target = $region62
        $region61: #{custom-call.8} parent=49 // pred_region
          // Predicated region
          $region63: #{custom-call.8} parent=61 // pred_check
            _
          $region64: #{custom-call.8} parent=61 // pred_check_branch
            %376 = sbr.rel target = $region66
          $region65: #{custom-call.8} parent=61 // pred_region
            // Predicated region
            $region78: #{custom-call.8} parent=65 // pred_check
              _
            $region79: #{custom-call.8} parent=65 // pred_check_branch
              %392 = sbr.rel (0) target = $region81
            $region80: #{custom-call.8} parent=65 // pred_region
              %s394 = ssub.s32 16, 1
              loop: start=0, step=1, limit=1
              $region82: #{custom-call.8} parent=80 // loop_pre_header
                _
              $region83: #{custom-call.8} parent=80 // loop_header
                %s396 = sphi 0, %s400
                %p397 = scmp.ge.s32.totalorder %s396, 1
                %s401 = sphi %s361, %s361
                %s402 = sphi %s372, %s372
              $region84: #{custom-call.8} parent=80 // loop_header_branch
                %399 = sbr.rel (%p397) target = $region88
              $region85: #{custom-call.8} parent=80 // loop_body
                %v403 = vld [vmem:[%s401] sm:%s394]
                %404 = vst [vmem:[%s402] sm:%s394] %v403
              $region86: #{custom-call.8} parent=80 // loop_footer
                %s400 = sadd.s32 1, %s396
              $region87: #{custom-call.8} parent=80 // loop_footer_branch
                %395 = sbr.rel target = $region83
              $region88: #{custom-call.8} parent=80 // loop_exit
                _
            $region81: #{custom-call.8} parent=65 // pred_fallthru
              _
          $region66: #{custom-call.8} parent=61 // pred_fallthru
            _
          // Predicated region
          $region67: #{custom-call.8} parent=61 // pred_check
            _
          $region68: #{custom-call.8} parent=61 // pred_check_branch
            %378 = sbr.rel (0) target = $region70
          $region69: #{custom-call.8} parent=61 // pred_region
            %s380 = ssub.s32 16, 1
            loop: start=0, step=1, limit=1
            $region71: #{custom-call.8} parent=69 // loop_pre_header
              _
            $region72: #{custom-call.8} parent=69 // loop_header
              %s382 = sphi 0, %s386
              %p383 = scmp.ge.s32.totalorder %s382, 1
              %s387 = sphi %s361, %s361
              %s388 = sphi %s372, %s372
            $region73: #{custom-call.8} parent=69 // loop_header_branch
              %385 = sbr.rel (%p383) target = $region77
            $region74: #{custom-call.8} parent=69 // loop_body
              %v389 = vld [vmem:[%s387] sm:%s380]
              %390 = vst [vmem:[%s388] sm:%s380] %v389
            $region75: #{custom-call.8} parent=69 // loop_footer
              %s386 = sadd.s32 1, %s382
            $region76: #{custom-call.8} parent=69 // loop_footer_branch
              %381 = sbr.rel target = $region72
            $region77: #{custom-call.8} parent=69 // loop_exit
              _
          $region70: #{custom-call.8} parent=61 // pred_fallthru
            _
        $region62: #{custom-call.8} parent=49 // pred_fallthru
          _
        %405 = vnop
        // Predicated region
        $region89: #{custom-call.8} parent=49 // pred_check
          %p406 = pneg %p34
        $region90: #{custom-call.8} parent=49 // pred_check_branch
          %408 = sbr.rel (%p406) target = $region92
        $region91: #{custom-call.8} parent=49 // pred_region
          %s409 = sshrl.u32 %s14, 3
          %411 = vsyncadd %s363, 0
          %s412 = smul.addr %s409, 4
          %s413 = scalar_lea.hbm %s2, %s412
          %s415 = sshll.u32 %s366, 4
          %s416 = int_to_ptr.vmem [resolvable:$true] %s415
          %s417 = sshll.u32 %s413, 4
          %s418 = int_to_ptr.hbm [resolvable:$true] %s417
          %420 = dma.vmem_to_hbm [thread:$0]  %s416, 64, %s418, %s363
        $region92: #{custom-call.8} parent=49 // pred_fallthru
          _
        // Predicated region
        $region93: #{custom-call.8} parent=49 // pred_check
          %p421 = pneg %p62
        $region94: #{custom-call.8} parent=49 // pred_check_branch
          %423 = sbr.rel (%p421) target = $region96
        $region95: #{custom-call.8} parent=49 // pred_region
          %s424 = sshrl.u32 %s14, 3
          %s425 = smul.addr %s424, 4
          %s426 = scalar_lea.vmem %s3, %s425
          // Predicated region
          $region97: #{custom-call.8} parent=95 // pred_check
            _
          $region98: #{custom-call.8} parent=95 // pred_check_branch
            %428 = sbr.rel (0) target = $region100
          $region99: #{custom-call.8} parent=95 // pred_region
            // Predicated region
            $region101: #{custom-call.8} parent=99 // pred_check
              _
            $region102: #{custom-call.8} parent=99 // pred_check_branch
              %430 = sbr.rel target = $region104
            $region103: #{custom-call.8} parent=99 // pred_region
              // Predicated region
              $region116: #{custom-call.8} parent=103 // pred_check
                _
              $region117: #{custom-call.8} parent=103 // pred_check_branch
                %446 = sbr.rel (0) target = $region119
              $region118: #{custom-call.8} parent=103 // pred_region
                %s448 = ssub.s32 16, 1
                loop: start=0, step=1, limit=1
                $region120: #{custom-call.8} parent=118 // loop_pre_header
                  _
                $region121: #{custom-call.8} parent=118 // loop_header
                  %s450 = sphi 0, %s454
                  %p451 = scmp.ge.s32.totalorder %s450, 1
                  %s455 = sphi %s370, %s370
                  %s456 = sphi %s426, %s426
                $region122: #{custom-call.8} parent=118 // loop_header_branch
                  %453 = sbr.rel (%p451) target = $region126
                $region123: #{custom-call.8} parent=118 // loop_body
                  %v457 = vld [vmem:[%s455] sm:%s448]
                  %458 = vst [vmem:[%s456] sm:%s448] %v457
                $region124: #{custom-call.8} parent=118 // loop_footer
                  %s454 = sadd.s32 1, %s450
                $region125: #{custom-call.8} parent=118 // loop_footer_branch
                  %449 = sbr.rel target = $region121
                $region126: #{custom-call.8} parent=118 // loop_exit
                  _
              $region119: #{custom-call.8} parent=103 // pred_fallthru
                _
            $region104: #{custom-call.8} parent=99 // pred_fallthru
              _
            // Predicated region
            $region105: #{custom-call.8} parent=99 // pred_check
              _
            $region106: #{custom-call.8} parent=99 // pred_check_branch
              %432 = sbr.rel (0) target = $region108
            $region107: #{custom-call.8} parent=99 // pred_region
              %s434 = ssub.s32 16, 1
              loop: start=0, step=1, limit=1
              $region109: #{custom-call.8} parent=107 // loop_pre_header
                _
              $region110: #{custom-call.8} parent=107 // loop_header
                %s436 = sphi 0, %s440
                %p437 = scmp.ge.s32.totalorder %s436, 1
                %s441 = sphi %s370, %s370
                %s442 = sphi %s426, %s426
              $region111: #{custom-call.8} parent=107 // loop_header_branch
                %439 = sbr.rel (%p437) target = $region115
              $region112: #{custom-call.8} parent=107 // loop_body
                %v443 = vld [vmem:[%s441] sm:%s434]
                %444 = vst [vmem:[%s442] sm:%s434] %v443
              $region113: #{custom-call.8} parent=107 // loop_footer
                %s440 = sadd.s32 1, %s436
              $region114: #{custom-call.8} parent=107 // loop_footer_branch
                %435 = sbr.rel target = $region110
              $region115: #{custom-call.8} parent=107 // loop_exit
                _
            $region108: #{custom-call.8} parent=99 // pred_fallthru
              _
          $region100: #{custom-call.8} parent=95 // pred_fallthru
            _
          %459 = vnop
        $region96: #{custom-call.8} parent=49 // pred_fallthru
          _
      $region50: #{custom-call.8} parent=5 // pred_fallthru
        _
      %p460 = scmp.le.s32.totalorder 2, %s9
      // Predicated region
      $region127: #{custom-call.8} parent=5 // pred_check
        %p461 = pneg %p460
      $region128: #{custom-call.8} parent=5 // pred_check_branch
        %463 = sbr.rel (%p461) target = $region130
      $region129: #{custom-call.8} parent=5 // pred_region
        %s464 = ssub.s32 %s9, 2
        %s465 = sand.u32 %s15, 1
        %s466 = sand.u32 %s15, 1
        %s467 = smul.addr %s466, 4
        %s468 = scalar_lea.vmem [#allocation3], %s467
        // Predicated region
        $region131: #{custom-call.8} parent=129 // pred_check
          %p469 = pneg %p40
        $region132: #{custom-call.8} parent=129 // pred_check_branch
          %471 = sbr.rel (%p469) target = $region134
        $region133: #{custom-call.8} parent=129 // pred_region
          %s472 = sand.u32 %s25, 1
          %s473 = scalar_lea.sflag [#allocation6], %s472
          %s474 = sand.u32 %s25, 1
          %s475 = smul.addr %s474, 4
          %s476 = scalar_lea.vmem [#allocation5], %s475
          %478 = dma.done %s473, 64
        $region134: #{custom-call.8} parent=129 // pred_fallthru
          _
        // Predicated region
        $region135: #{custom-call.8} parent=129 // pred_check
          %p479 = pneg %p68
        $region136: #{custom-call.8} parent=129 // pred_check_branch
          %481 = sbr.rel (%p479) target = $region138
        $region137: #{custom-call.8} parent=129 // pred_region
          %s482 = sand.u32 %s53, 1
          %s483 = sand.u32 %s53, 1
          %s484 = smul.addr %s483, 4
          %s485 = scalar_lea.vmem [#allocation8], %s484
        $region138: #{custom-call.8} parent=129 // pred_fallthru
          _
      $region130: #{custom-call.8} parent=5 // pred_fallthru
        _
    $region6: #{custom-call.8} parent=1 // loop_footer
      %s13 = sadd.s32 1, %s9
    $region7: #{custom-call.8} parent=1 // loop_footer_branch
      %8 = sbr.rel target = $region3
    $region8: #{custom-call.8} parent=1 // loop_exit
      _
    %486 = vsyncpa [#allocation6], 1
    %s487 = scalar_lea.sflag [#allocation6], 1
    %488 = vsyncpa %s487, 1

// kernel: aligned_psnr.2
$region0: #{aligned_psnr.2}
  #allocation0 [shape = 'u32[]', space=smem, size = 0x4, offset = 0x4, fixed_abs, tag = 'smem constant byte address 0x4 - core index']
  #allocation1 [shape = 'u32[72,128]{1,0:T(1,128)}', space=vmem, size = 0x9000, scoped, tag = 'internal scratch']
  %s0 = inlined_call_operand.vmem [shape: f32[4,16,128], index: 0, kind: input, shape index: {}]
  %s1 = inlined_call_operand.vmem [shape: f32[4,8,128], index: 1, kind: output, shape index: {}]
  %s2 = sld [smem:[#allocation0]]
  $region37: #{aligned_psnr.2} parent=0
    _
  %s4 = ssub.s32 1, %s2
  %s5 = scalar_select 0, %s4, %s2
  loop: start=0, step=1, limit=4
  $region2: #{aligned_psnr.2} parent=0 // loop_pre_header
    _
  $region3: #{aligned_psnr.2} parent=0 // loop_header
    %s7 = sphi 0, %s11
    %p8 = scmp.ge.s32.totalorder %s7, 4
    %s17 = sphi 0, %s19
    %s20 = sphi 0, %s17
    %s21 = sphi 0, %s20
    %s37 = sphi 0, %s21
    %s43 = sphi 0, %s45
    %s46 = sphi 0, %s43
    %s47 = sphi 0, %s46
    %s63 = sphi 0, %s47
  $region4: #{aligned_psnr.2} parent=0 // loop_header_branch
    %10 = sbr.rel (%p8) target = $region8
  $region5: #{aligned_psnr.2} parent=0 // loop_body
    %s12 = ssub.s32 %s7, 1
    %s13 = ssub.s32 %s7, 2
    %s14 = sadd.s32 %s7, 1
    %s15 = ssub.s32 %s7, %s14
    %p16 = scmp.eq.s32.totalorder %s15, 0
    %s18 = sadd.s32 %s17, 1
    %s19 = scalar_select %p16, %s17, %s18
    %p22 = pneg %p16
    %p23 = scmp.eq.s32.totalorder %s7, 1
    %p24 = por %p22, %p23
    %p25 = scmp.ne.s32.totalorder %s17, %s20
    %p26 = scmp.eq.s32.totalorder %s7, 0
    %p27 = por %p25, %p26
    %p28 = scmp.ne.s32.totalorder %s17, %s20
    %p29 = scmp.eq.s32.totalorder %s12, 1
    %p30 = por %p28, %p29
    %p31 = scmp.ne.s32.totalorder %s20, %s21
    %p32 = scmp.eq.s32.totalorder %s12, 0
    %p33 = por %p31, %p32
    %p34 = scmp.ne.s32.totalorder %s20, %s21
    %p35 = scmp.eq.s32.totalorder %s13, 1
    %p36 = por %p34, %p35
    %p38 = scmp.ne.s32.totalorder %s21, %s37
    %p39 = scmp.eq.s32.totalorder %s13, 0
    %p40 = por %p38, %p39
    %s41 = ssub.s32 %s7, %s14
    %p42 = scmp.eq.s32.totalorder %s41, 0
    %s44 = sadd.s32 %s43, 1
    %s45 = scalar_select %p42, %s43, %s44
    %p48 = pneg %p42
    %p49 = scmp.eq.s32.totalorder %s7, 1
    %p50 = por %p48, %p49
    %p51 = scmp.ne.s32.totalorder %s43, %s46
    %p52 = scmp.eq.s32.totalorder %s7, 0
    %p53 = por %p51, %p52
    %p54 = scmp.ne.s32.totalorder %s43, %s46
    %p55 = scmp.eq.s32.totalorder %s12, 1
    %p56 = por %p54, %p55
    %p57 = scmp.ne.s32.totalorder %s46, %s47
    %p58 = scmp.eq.s32.totalorder %s12, 0
    %p59 = por %p57, %p58
    %p60 = scmp.ne.s32.totalorder %s46, %s47
    %p61 = scmp.eq.s32.totalorder %s13, 1
    %p62 = por %p60, %p61
    %p64 = scmp.ne.s32.totalorder %s47, %s63
    %p65 = scmp.eq.s32.totalorder %s13, 0
    %p66 = por %p64, %p65
    %p67 = scmp.le.s32.totalorder 1, %s7
    %p68 = scmp.lt.s32.totalorder %s7, 3
    %p69 = pnand %p67, %p68
    %p70 = pneg %p69
    // Predicated region
    $region9: #{aligned_psnr.2} parent=5 // pred_check
      _
    $region10: #{aligned_psnr.2} parent=5 // pred_check_branch
      %72 = sbr.rel (%p69) target = $region12
    $region11: #{aligned_psnr.2} parent=5 // pred_region
      %s73 = ssub.s32 %s7, 1
    $region12: #{aligned_psnr.2} parent=5 // pred_fallthru
      _
    %p74 = scmp.lt.s32.totalorder %s7, 2
    // Predicated region
    $region13: #{aligned_psnr.2} parent=5 // pred_check
      %p75 = pneg %p74
    $region14: #{aligned_psnr.2} parent=5 // pred_check_branch
      %77 = sbr.rel (%p75) target = $region16
    $region15: #{aligned_psnr.2} parent=5 // pred_region
      // Predicated region
      $region17: #{aligned_psnr.2} parent=15 // pred_check
        %p78 = pneg %p27
      $region18: #{aligned_psnr.2} parent=15 // pred_check_branch
        %80 = sbr.rel (%p78) target = $region20
      $region19: #{aligned_psnr.2} parent=15 // pred_region
        %s81 = smul.u32 2, %s7
        %p82 = scmp.lt.s32.totalorder %s81, 3
        %s83 = scalar_select %p82, %s81, 3
        %s84 = smul.addr %s83, 2
        %s85 = smul.addr %s84, 8
        %s86 = scalar_lea.vmem %s0, %s85
        %s87 = smul.u32 2, %s7
      $region20: #{aligned_psnr.2} parent=15 // pred_fallthru
        _
    $region16: #{aligned_psnr.2} parent=5 // pred_fallthru
      _
    %p88 = scmp.le.s32.totalorder 1, %s7
    %p89 = scmp.lt.s32.totalorder %s7, 3
    %p90 = pnand %p88, %p89
    %p91 = pneg %p90
    // Predicated region
    $region21: #{aligned_psnr.2} parent=5 // pred_check
      _
    $region22: #{aligned_psnr.2} parent=5 // pred_check_branch
      %93 = sbr.rel (%p90) target = $region24
    $region23: #{aligned_psnr.2} parent=5 // pred_region
      %s94 = ssub.s32 %s7, 1
      %s95 = smul.u32 2, %s12
      %p96 = scmp.lt.s32.totalorder %s95, 3
      %s97 = scalar_select %p96, %s95, 3
      %s98 = smul.addr %s97, 2
      %s99 = smul.addr %s98, 8
      %s100 = scalar_lea.vmem %s0, %s99
      %p101 = pneg %p33
      %p102 = pneg %p30
      %p103 = pneg %p59
      %p104 = pneg %p56
      %s105 = smul.u32 2, %s12
      %p106 = scmp.lt.s32.totalorder %s105, 3
      %s107 = scalar_select %p106, %s105, 3
      %s108 = smul.addr %s107, 8
      %s109 = scalar_lea.vmem %s1, %s108
      %s110 = smul.u32 2, %s12
      %p111 = scmp.lt.s32.totalorder %s110, 3
      %s112 = scalar_select %p111, %s110, 3
      %s113 = smul.addr %s112, 2
      %s114 = smul.addr %s113, 8
      %s115 = scalar_lea.vmem %s0, %s114
      %s116 = smul.u32 2, %s12
      %s117 = smul.u32 2, %s12
      %p118 = scmp.lt.s32.totalorder %s117, 3
      %s119 = scalar_select %p118, %s117, 3
      %s120 = smul.addr %s119, 8
      %s121 = scalar_lea.vmem %s1, %s120
      %s122 = smul.u32 2, %s12
      %v123 = vld [vmem:[%s115] sm:$0xff]
      %v124 = vld [vmem:[%s115 + $0x8] sm:$0xff]
      %v125 = vld [vmem:[%s115 + $0x10] sm:$0xff]
      %v126 = vld [vmem:[%s115 + $0x18] sm:$0xff]
      %v127 = vrot.slane %v123, 2
      %v128 = vrot.slane %v125, 2
      %v129 = vrot.slane %v124, 2
      %v130 = vrot.slane %v126, 2
      %v131 = vlaneseq
      %v132 = vshrl.u32 %v131, 7
      %vm133 = vcmp.lt.s32.totalorder %v132, 6
      %v134 = vsel %vm133, %v127, %v129
      %v135 = vsel %vm133, %v128, %v130
      %v136 = vmul.f32 %v134, 0.036632847
      %v137 = vmul.f32 %v135, 0.036632847
      %v138 = vrot.slane %v123, 3
      %v139 = vrot.slane %v125, 3
      %v140 = vrot.slane %v124, 3
      %v141 = vrot.slane %v126, 3
      %vm142 = vcmp.lt.s32.totalorder %v132, 5
      %v143 = vsel %vm142, %v138, %v140
      %v144 = vsel %vm142, %v139, %v141
      %v145 = vmul.f32 %v143, 0.11128076
      %v146 = vmul.f32 %v144, 0.11128076
      %v147 = vadd.f32 %v136, %v145
      %v148 = vadd.f32 %v137, %v146
      %v149 = vrot.slane %v123, 4
      %v150 = vrot.slane %v125, 4
      %v151 = vrot.slane %v124, 4
      %v152 = vrot.slane %v126, 4
      %vm153 = vcmp.lt.s32.totalorder %v132, 4
      %v154 = vsel %vm153, %v149, %v151
      %v155 = vsel %vm153, %v150, %v152
      %v156 = vmul.f32 %v154, 0.21674532
      %v157 = vmul.f32 %v155, 0.21674532
      %v158 = vadd.f32 %v147, %v156
      %v159 = vadd.f32 %v148, %v157
      %v160 = vrot.slane %v123, 5
      %v161 = vrot.slane %v125, 5
      %v162 = vrot.slane %v124, 5
      %v163 = vrot.slane %v126, 5
      %vm164 = vcmp.lt.s32.totalorder %v132, 3
      %v165 = vsel %vm164, %v160, %v162
      %v166 = vsel %vm164, %v161, %v163
      %v167 = vmul.f32 %v165, 0.27068216
      %v168 = vmul.f32 %v166, 0.27068216
      %v169 = vadd.f32 %v158, %v167
      %v170 = vadd.f32 %v159, %v168
      %v171 = vrot.slane %v123, 6
      %v172 = vrot.slane %v125, 6
      %v173 = vrot.slane %v124, 6
      %v174 = vrot.slane %v126, 6
      %vm175 = vcmp.lt.s32.totalorder %v132, 2
      %v176 = vsel %vm175, %v171, %v173
      %v177 = vsel %vm175, %v172, %v174
      %v178 = vmul.f32 %v176, 0.21674532
      %v179 = vmul.f32 %v177, 0.21674532
      %v180 = vadd.f32 %v169, %v178
      %v181 = vadd.f32 %v170, %v179
      %v182 = vrot.slane %v123, 7
      %v183 = vrot.slane %v125, 7
      %v184 = vrot.slane %v124, 7
      %v185 = vrot.slane %v126, 7
      %vm186 = vcmp.lt.s32.totalorder %v132, 1
      %v187 = vsel %vm186, %v182, %v184
      %v188 = vsel %vm186, %v183, %v185
      %v189 = vmul.f32 %v187, 0.11128076
      %v190 = vmul.f32 %v188, 0.11128076
      %v191 = vadd.f32 %v180, %v189
      %v192 = vadd.f32 %v181, %v190
      %v193 = vmul.f32 %v124, 0.036632847
      %v194 = vmul.f32 %v126, 0.036632847
      %v195 = vadd.f32 %v191, %v193
      %v196 = vadd.f32 %v192, %v194
      %197 = vrot.lane.b32.xlu0 %v195, 126
      %v198 = vpop.permute.xlu0 %197
      %199 = vrot.lane.b32.xlu0 %v196, 126
      %v200 = vpop.permute.xlu0 %199
      %v201 = vmul.f32 %v198, 0.036632847
      %v202 = vmul.f32 %v200, 0.036632847
      %203 = vrot.lane.b32.xlu0 %v195, 125
      %v204 = vpop.permute.xlu0 %203
      %205 = vrot.lane.b32.xlu0 %v196, 125
      %v206 = vpop.permute.xlu0 %205
      %v207 = vmul.f32 %v204, 0.11128076
      %v208 = vmul.f32 %v206, 0.11128076
      %v209 = vadd.f32 %v201, %v207
      %v210 = vadd.f32 %v202, %v208
      %211 = vrot.lane.b32.xlu0 %v195, 124
      %v212 = vpop.permute.xlu0 %211
      %213 = vrot.lane.b32.xlu0 %v196, 124
      %v214 = vpop.permute.xlu0 %213
      %v215 = vmul.f32 %v212, 0.21674532
      %v216 = vmul.f32 %v214, 0.21674532
      %v217 = vadd.f32 %v209, %v215
      %v218 = vadd.f32 %v210, %v216
      %219 = vrot.lane.b32.xlu0 %v195, 123
      %v220 = vpop.permute.xlu0 %219
      %221 = vrot.lane.b32.xlu0 %v196, 123
      %v222 = vpop.permute.xlu0 %221
      %v223 = vmul.f32 %v220, 0.27068216
      %v224 = vmul.f32 %v222, 0.27068216
      %v225 = vadd.f32 %v217, %v223
      %v226 = vadd.f32 %v218, %v224
      %227 = vrot.lane.b32.xlu0 %v195, 122
      %v228 = vpop.permute.xlu0 %227
      %229 = vrot.lane.b32.xlu0 %v196, 122
      %v230 = vpop.permute.xlu0 %229
      %v231 = vmul.f32 %v228, 0.21674532
      %v232 = vmul.f32 %v230, 0.21674532
      %v233 = vadd.f32 %v225, %v231
      %v234 = vadd.f32 %v226, %v232
      %235 = vrot.lane.b32.xlu0 %v195, 121
      %v236 = vpop.permute.xlu0 %235
      %237 = vrot.lane.b32.xlu0 %v196, 121
      %v238 = vpop.permute.xlu0 %237
      %v239 = vmul.f32 %v236, 0.11128076
      %v240 = vmul.f32 %v238, 0.11128076
      %v241 = vadd.f32 %v233, %v239
      %v242 = vadd.f32 %v234, %v240
      %243 = vrot.lane.b32.xlu0 %v195, 120
      %v244 = vpop.permute.xlu0 %243
      %245 = vrot.lane.b32.xlu0 %v196, 120
      %v246 = vpop.permute.xlu0 %245
      %v247 = vmul.f32 %v244, 0.036632847
      %v248 = vmul.f32 %v246, 0.036632847
      %v249 = vadd.f32 %v241, %v247
      %v250 = vadd.f32 %v242, %v248
      %251 = vst [vmem:[%s121] sm:$0xff] %v249
      %252 = vst [vmem:[%s121 + $0x8] sm:$0xff] %v250
      %s253 = smul.u32 2, %s12
      %p254 = scmp.lt.s32.totalorder %s253, 3
      %s255 = scalar_select %p254, %s253, 3
      %s256 = smul.addr %s255, 8
      %s257 = scalar_lea.vmem %s1, %s256
      // Predicated region
      $region25: #{aligned_psnr.2} parent=23 // pred_check
        %p258 = pneg %p56
      $region26: #{aligned_psnr.2} parent=23 // pred_check_branch
        %260 = sbr.rel (%p258) target = $region28
      $region27: #{aligned_psnr.2} parent=23 // pred_region
        %s261 = smul.u32 2, %s12
      $region28: #{aligned_psnr.2} parent=23 // pred_fallthru
        _
    $region24: #{aligned_psnr.2} parent=5 // pred_fallthru
      _
    %p262 = scmp.le.s32.totalorder 2, %s7
    // Predicated region
    $region29: #{aligned_psnr.2} parent=5 // pred_check
      %p263 = pneg %p262
    $region30: #{aligned_psnr.2} parent=5 // pred_check_branch
      %265 = sbr.rel (%p263) target = $region32
    $region31: #{aligned_psnr.2} parent=5 // pred_region
      %s266 = ssub.s32 %s7, 2
      // Predicated region
      $region33: #{aligned_psnr.2} parent=31 // pred_check
        %p267 = pneg %p62
      $region34: #{aligned_psnr.2} parent=31 // pred_check_branch
        %269 = sbr.rel (%p267) target = $region36
      $region35: #{aligned_psnr.2} parent=31 // pred_region
        %s270 = smul.u32 2, %s13
        %p271 = scmp.lt.s32.totalorder %s270, 3
        %s272 = scalar_select %p271, %s270, 3
        %s273 = smul.addr %s272, 8
        %s274 = scalar_lea.vmem %s1, %s273
      $region36: #{aligned_psnr.2} parent=31 // pred_fallthru
        _
    $region32: #{aligned_psnr.2} parent=5 // pred_fallthru
      _
  $region6: #{aligned_psnr.2} parent=0 // loop_footer
    %s11 = sadd.s32 1, %s7
  $region7: #{aligned_psnr.2} parent=0 // loop_footer_branch
    %6 = sbr.rel target = $region3
  $region8: #{aligned_psnr.2} parent=0 // loop_exit
    _

// kernel: custom-call.9
$region0: #{custom-call.9}
  %s0 = inlined_call_operand.vmem [shape: f32[4,1,3,3], index: 0, kind: input, shape index: {}]
  %s1 = inlined_call_operand.vmem [shape: f32[4,1,3,3], index: 1, kind: output, shape index: {}]
  $region1: #{custom-call.9} parent=0
    #allocation0 [shape = 'u8[4096]{0}', space=vmem, size = 0x1000, scoped, tag = 'operand span for operand 0']
    #allocation1 [shape = 'u8[4096]{0}', space=vmem, size = 0x1000, scoped, tag = 'packed  for operand 0']
    #allocation2 [shape = 'u8[4096]{0}', space=vmem, size = 0x1000, scoped, tag = 'operand span for operand 1']
    #allocation3 [shape = 'u8[4096]{0}', space=vmem, size = 0x1000, scoped, tag = 'packed  for operand 1']
    loop: start=0, step=1, limit=6
    $region2: #{custom-call.9} parent=1 // loop_pre_header
      _
    $region3: #{custom-call.9} parent=1 // loop_header
      %s3 = sphi 0, %s7
      %p4 = scmp.ge.s32.totalorder %s3, 6
      %s10 = sphi 0, %s36
      %s11 = sphi 0, %s32
      %s12 = sphi 0, %s28
      %s13 = sphi 0, %s24
      %s14 = sphi 0, %s10
      %s15 = sphi 0, %s11
      %s16 = sphi 0, %s12
      %s17 = sphi 0, %s13
      %s18 = sphi 0, %s14
      %s19 = sphi 0, %s15
      %s20 = sphi 0, %s16
      %s21 = sphi 0, %s17
    $region4: #{custom-call.9} parent=1 // loop_header_branch
      %6 = sbr.rel (%p4) target = $region8
    $region5: #{custom-call.9} parent=1 // loop_body
      %s8 = ssub.s32 %s3, 1
      %s9 = ssub.s32 %s3, 2
      %s22 = sadd.s32 1, %s13
      %p23 = scmp.ge.s32.totalorder %s22, 1
      %s24 = scalar_select %p23, 0, %s22
      %s25 = sadd.s32 1, %s12
      %s26 = scalar_select %p23, %s25, %s12
      %p27 = scmp.ge.s32.totalorder %s26, 1
      %s28 = scalar_select %p27, 0, %s26
      %s29 = sadd.s32 1, %s11
      %s30 = scalar_select %p27, %s29, %s11
      %p31 = scmp.ge.s32.totalorder %s30, 1
      %s32 = scalar_select %p31, 0, %s30
      %s33 = sadd.s32 1, %s10
      %s34 = scalar_select %p31, %s33, %s10
      %p35 = scmp.ge.s32.totalorder %s34, 4
      %s36 = scalar_select %p35, 0, %s34
      %p37 = scmp.le.s32.totalorder 1, %s3
      %p38 = scmp.lt.s32.totalorder %s3, 5
      %p39 = pnand %p37, %p38
      %p40 = pneg %p39
      // Predicated region
      $region9: #{custom-call.9} parent=5 // pred_check
        _
      $region10: #{custom-call.9} parent=5 // pred_check_branch
        %42 = sbr.rel (%p39) target = $region12
      $region11: #{custom-call.9} parent=5 // pred_region
        %s43 = ssub.s32 %s3, 1
      $region12: #{custom-call.9} parent=5 // pred_fallthru
        _
      %p44 = scmp.lt.s32.totalorder %s3, 4
      // Predicated region
      $region13: #{custom-call.9} parent=5 // pred_check
        %p45 = pneg %p44
      $region14: #{custom-call.9} parent=5 // pred_check_branch
        %47 = sbr.rel (%p45) target = $region16
      $region15: #{custom-call.9} parent=5 // pred_region
        %s48 = sand.u32 %s3, 1
        %s49 = sand.u32 %s3, 1
        %s50 = smul.addr %s49, 4
        %s51 = scalar_lea.vmem [#allocation1], %s50
        %s52 = sadd.s32 %s13, %s12
        %s53 = sadd.s32 %s52, %s11
        %s54 = sadd.s32 %s53, %s10
        %s55 = smul.addr %s54, 4
        %s56 = scalar_lea.vmem %s0, %s55
        // Predicated region
        $region17: #{custom-call.9} parent=15 // pred_check
          _
        $region18: #{custom-call.9} parent=15 // pred_check_branch
          %58 = sbr.rel (0) target = $region20
        $region19: #{custom-call.9} parent=15 // pred_region
          // Predicated region
          $region21: #{custom-call.9} parent=19 // pred_check
            _
          $region22: #{custom-call.9} parent=19 // pred_check_branch
            %60 = sbr.rel target = $region24
          $region23: #{custom-call.9} parent=19 // pred_region
            // Predicated region
            $region36: #{custom-call.9} parent=23 // pred_check
              _
            $region37: #{custom-call.9} parent=23 // pred_check_branch
              %76 = sbr.rel (0) target = $region39
            $region38: #{custom-call.9} parent=23 // pred_region
              %s78 = ssub.s32 16, 1
              loop: start=0, step=1, limit=1
              $region40: #{custom-call.9} parent=38 // loop_pre_header
                _
              $region41: #{custom-call.9} parent=38 // loop_header
                %s80 = sphi 0, %s84
                %p81 = scmp.ge.s32.totalorder %s80, 1
                %s85 = sphi %s56, %s56
                %s86 = sphi %s51, %s51
              $region42: #{custom-call.9} parent=38 // loop_header_branch
                %83 = sbr.rel (%p81) target = $region46
              $region43: #{custom-call.9} parent=38 // loop_body
                %v87 = vld [vmem:[%s85] sm:%s78]
                %88 = vst [vmem:[%s86] sm:%s78] %v87
              $region44: #{custom-call.9} parent=38 // loop_footer
                %s84 = sadd.s32 1, %s80
              $region45: #{custom-call.9} parent=38 // loop_footer_branch
                %79 = sbr.rel target = $region41
              $region46: #{custom-call.9} parent=38 // loop_exit
                _
            $region39: #{custom-call.9} parent=23 // pred_fallthru
              _
          $region24: #{custom-call.9} parent=19 // pred_fallthru
            _
          // Predicated region
          $region25: #{custom-call.9} parent=19 // pred_check
            _
          $region26: #{custom-call.9} parent=19 // pred_check_branch
            %62 = sbr.rel (0) target = $region28
          $region27: #{custom-call.9} parent=19 // pred_region
            %s64 = ssub.s32 16, 1
            loop: start=0, step=1, limit=1
            $region29: #{custom-call.9} parent=27 // loop_pre_header
              _
            $region30: #{custom-call.9} parent=27 // loop_header
              %s66 = sphi 0, %s70
              %p67 = scmp.ge.s32.totalorder %s66, 1
              %s71 = sphi %s56, %s56
              %s72 = sphi %s51, %s51
            $region31: #{custom-call.9} parent=27 // loop_header_branch
              %69 = sbr.rel (%p67) target = $region35
            $region32: #{custom-call.9} parent=27 // loop_body
              %v73 = vld [vmem:[%s71] sm:%s64]
              %74 = vst [vmem:[%s72] sm:%s64] %v73
            $region33: #{custom-call.9} parent=27 // loop_footer
              %s70 = sadd.s32 1, %s66
            $region34: #{custom-call.9} parent=27 // loop_footer_branch
              %65 = sbr.rel target = $region30
            $region35: #{custom-call.9} parent=27 // loop_exit
              _
          $region28: #{custom-call.9} parent=19 // pred_fallthru
            _
        $region20: #{custom-call.9} parent=15 // pred_fallthru
          _
        %89 = vnop
      $region16: #{custom-call.9} parent=5 // pred_fallthru
        _
      %p90 = scmp.le.s32.totalorder 1, %s3
      %p91 = scmp.lt.s32.totalorder %s3, 5
      %p92 = pnand %p90, %p91
      %p93 = pneg %p92
      // Predicated region
      $region47: #{custom-call.9} parent=5 // pred_check
        _
      $region48: #{custom-call.9} parent=5 // pred_check_branch
        %95 = sbr.rel (%p92) target = $region50
      $region49: #{custom-call.9} parent=5 // pred_region
        #allocation4 [shape = 'f32[3,3]{1,0}', space=vmem, size = 0x1000, scoped, tag = 'rescaled input a']
        %s96 = ssub.s32 %s3, 1
        %s97 = sand.u32 %s8, 1
        %s98 = sand.u32 %s8, 1
        %s99 = smul.addr %s98, 4
        %s100 = scalar_lea.vmem [#allocation1], %s99
        %s101 = sand.u32 %s8, 1
        %s102 = sand.u32 %s8, 1
        %s103 = smul.addr %s102, 4
        %s104 = scalar_lea.vmem [#allocation1], %s103
        %s105 = sand.u32 %s8, 1
        %s106 = sand.u32 %s8, 1
        %s107 = smul.addr %s106, 4
        %s108 = scalar_lea.vmem [#allocation3], %s107
        %s110 = ssub.s32 16, 1
        %v111 = vld [vmem:[%s104] sm:%s110]
        %112 = vst [vmem:[#allocation0] sm:%s110] %v111
        %v113 = vlaneseq
        %v114 = vand.u32 %v113, 127
        %vm115 = vcmp.lt.s32.totalorder %v114, 3
        %v116 = vlaneseq
        %v117 = vshrl.u32 %v116, 7
        %vm119 = vcmp.eq.s32.totalorder %v117, %v114
        %v120 = vld [vmem:[#allocation0] sm:$0xff]
        %v121 = vsel %vm119, %v120, 0.0
        %122 = vadd.xlane.f32.xlu0 %v121
        %v123 = vpop.xlane.xlu0 %122
        %vm124 = vcmp.le.s32.totalorder %v117, %v114
        %vm125 = vmand %vm124, %vm115
        %v126 = vsel %vm125, %v120, 0.0
        %v127 = vrcp.pop %v123
        %v128 = vmul.f32 %v123, %v127
        %v129 = vsub.f32 1.0, %v128
        %v130 = vmul.f32 %v127, %v129
        %v131 = vadd.f32 %v127, %v130
        %vm132 = vweird.f32 %v123
        %vm133 = vweird.f32 %v127
        %vm134 = vmor %vm132, %vm133
        %v135 = vsel %vm134, %v127, %v131
        %v136 = vand.u32 2147483647, %v123
        %vm137 = vcmp.eq.f32.partialorder %v136, 8.507059e+37
        %v138 = vand.u32 %v123, 2147483648
        %v139 = vor.u32 1.1754944e-38, %v138
        %v140 = vsel %vm137, %v139, %v135
        %v141 = vmul.f32 %v126, %v140
        %142 = vst [vmem:[#allocation4] sm:$0xff] %v141
        %v143 = vlaneseq
        %v144 = vand.u32 %v143, 127
        %v145 = vlaneseq
        %v146 = vshrl.u32 %v145, 7
        %vm148 = vcmp.eq.s32.totalorder %v144, %v146
        %v149 = vlaneseq
        %v150 = vand.u32 %v149, 127
        %vm151 = vcmp.eq.s32.totalorder %v150, 2
        %v152 = vsel %vm151, 1.0, -1.0
        %v153 = vsel %vm148, %v152, 0.0
        %s154 = scalar_lea.vmem [#allocation4], 1
        %v155 = vld [vmem:[%s154] ss:$0 sm:$0xff]
        %v156 = vxor.u32 %v155, 2147483648
        %v157 = vlaneseq
        %v158 = vand.u32 %v157, 127
        %vm159 = vcmp.eq.s32.totalorder %v158, 1
        %v160 = vmul.f32 %v156, %v153
        %161 = vadd.xlane.f32.xlu0 %v160
        %v162 = vpop.xlane.xlu0 %161
        %v163 = vsel %vm159, %v162, %v153
        %v164 = vld [vmem:[#allocation4] ss:$0 sm:$0xff]
        %v165 = vxor.u32 %v164, 2147483648
        %v166 = vlaneseq
        %v167 = vand.u32 %v166, 127
        %vm168 = vcmp.eq.s32.totalorder %v167, 0
        %v169 = vmul.f32 %v165, %v163
        %170 = vadd.xlane.f32.xlu0 %v169
        %v171 = vpop.xlane.xlu0 %170
        %v172 = vsel %vm168, %v171, %v163
        %v173 = vrcp.pop %v123
        %v174 = vmul.f32 %v123, %v173
        %v175 = vsub.f32 1.0, %v174
        %v176 = vmul.f32 %v173, %v175
        %v177 = vadd.f32 %v173, %v176
        %vm178 = vweird.f32 %v123
        %vm179 = vweird.f32 %v173
        %vm180 = vmor %vm178, %vm179
        %v181 = vsel %vm180, %v173, %v177
        %v182 = vand.u32 2147483647, %v123
        %vm183 = vcmp.eq.f32.partialorder %v182, 8.507059e+37
        %v184 = vand.u32 %v123, 2147483648
        %v185 = vor.u32 1.1754944e-38, %v184
        %v186 = vsel %vm183, %v185, %v181
        %v187 = vmul.f32 %v172, %v186
        %vm188 = vweird.f32 %v123
        %v189 = vsel %vm188, %v172, %v187
        %190 = vst [vmem:[#allocation2] sm:$0xff] %v189
        %s192 = ssub.s32 16, 1
        %v193 = vld [vmem:[#allocation2] sm:%s192]
        %s195 = ssub.s32 16, 1
        %196 = vst [vmem:[%s108] sm:%s195] %v193
        %s197 = sand.u32 %s8, 1
        %s198 = sand.u32 %s8, 1
        %s199 = smul.addr %s198, 4
        %s200 = scalar_lea.vmem [#allocation3], %s199
        %s201 = sadd.s32 %s17, %s16
        %s202 = sadd.s32 %s201, %s15
        %s203 = sadd.s32 %s202, %s14
        %s204 = smul.addr %s203, 4
        %s205 = scalar_lea.vmem %s1, %s204
        // Predicated region
        $region51: #{custom-call.9} parent=49 // pred_check
          _
        $region52: #{custom-call.9} parent=49 // pred_check_branch
          %207 = sbr.rel (0) target = $region54
        $region53: #{custom-call.9} parent=49 // pred_region
          // Predicated region
          $region55: #{custom-call.9} parent=53 // pred_check
            _
          $region56: #{custom-call.9} parent=53 // pred_check_branch
            %209 = sbr.rel target = $region58
          $region57: #{custom-call.9} parent=53 // pred_region
            // Predicated region
            $region70: #{custom-call.9} parent=57 // pred_check
              _
            $region71: #{custom-call.9} parent=57 // pred_check_branch
              %225 = sbr.rel (0) target = $region73
            $region72: #{custom-call.9} parent=57 // pred_region
              %s227 = ssub.s32 16, 1
              loop: start=0, step=1, limit=1
              $region74: #{custom-call.9} parent=72 // loop_pre_header
                _
              $region75: #{custom-call.9} parent=72 // loop_header
                %s229 = sphi 0, %s233
                %p230 = scmp.ge.s32.totalorder %s229, 1
                %s234 = sphi %s200, %s200
                %s235 = sphi %s205, %s205
              $region76: #{custom-call.9} parent=72 // loop_header_branch
                %232 = sbr.rel (%p230) target = $region80
              $region77: #{custom-call.9} parent=72 // loop_body
                %v236 = vld [vmem:[%s234] sm:%s227]
                %237 = vst [vmem:[%s235] sm:%s227] %v236
              $region78: #{custom-call.9} parent=72 // loop_footer
                %s233 = sadd.s32 1, %s229
              $region79: #{custom-call.9} parent=72 // loop_footer_branch
                %228 = sbr.rel target = $region75
              $region80: #{custom-call.9} parent=72 // loop_exit
                _
            $region73: #{custom-call.9} parent=57 // pred_fallthru
              _
          $region58: #{custom-call.9} parent=53 // pred_fallthru
            _
          // Predicated region
          $region59: #{custom-call.9} parent=53 // pred_check
            _
          $region60: #{custom-call.9} parent=53 // pred_check_branch
            %211 = sbr.rel (0) target = $region62
          $region61: #{custom-call.9} parent=53 // pred_region
            %s213 = ssub.s32 16, 1
            loop: start=0, step=1, limit=1
            $region63: #{custom-call.9} parent=61 // loop_pre_header
              _
            $region64: #{custom-call.9} parent=61 // loop_header
              %s215 = sphi 0, %s219
              %p216 = scmp.ge.s32.totalorder %s215, 1
              %s220 = sphi %s200, %s200
              %s221 = sphi %s205, %s205
            $region65: #{custom-call.9} parent=61 // loop_header_branch
              %218 = sbr.rel (%p216) target = $region69
            $region66: #{custom-call.9} parent=61 // loop_body
              %v222 = vld [vmem:[%s220] sm:%s213]
              %223 = vst [vmem:[%s221] sm:%s213] %v222
            $region67: #{custom-call.9} parent=61 // loop_footer
              %s219 = sadd.s32 1, %s215
            $region68: #{custom-call.9} parent=61 // loop_footer_branch
              %214 = sbr.rel target = $region64
            $region69: #{custom-call.9} parent=61 // loop_exit
              _
          $region62: #{custom-call.9} parent=53 // pred_fallthru
            _
        $region54: #{custom-call.9} parent=49 // pred_fallthru
          _
        %238 = vnop
      $region50: #{custom-call.9} parent=5 // pred_fallthru
        _
      %p239 = scmp.le.s32.totalorder 2, %s3
      // Predicated region
      $region81: #{custom-call.9} parent=5 // pred_check
        %p240 = pneg %p239
      $region82: #{custom-call.9} parent=5 // pred_check_branch
        %242 = sbr.rel (%p240) target = $region84
      $region83: #{custom-call.9} parent=5 // pred_region
        %s243 = ssub.s32 %s3, 2
        %s244 = sand.u32 %s9, 1
        %s245 = sand.u32 %s9, 1
        %s246 = smul.addr %s245, 4
        %s247 = scalar_lea.vmem [#allocation3], %s246
      $region84: #{custom-call.9} parent=5 // pred_fallthru
        _
    $region6: #{custom-call.9} parent=1 // loop_footer
      %s7 = sadd.s32 1, %s3
    $region7: #{custom-call.9} parent=1 // loop_footer_branch
      %2 = sbr.rel target = $region3
    $region8: #{custom-call.9} parent=1 // loop_exit
      _

// kernel: custom-call.10
$region0: #{custom-call.10}
  %s0 = inlined_call_operand.vmem [shape: f32[4,1,3,3], index: 0, kind: input, shape index: {}]
  %s1 = inlined_call_operand.vmem [shape: f32[4,1,3,3], index: 1, kind: output, shape index: {}]
  $region1: #{custom-call.10} parent=0
    #allocation0 [shape = 'u8[4096]{0}', space=vmem, size = 0x1000, scoped, tag = 'operand span for operand 0']
    #allocation1 [shape = 'u8[4096]{0}', space=vmem, size = 0x1000, scoped, tag = 'packed  for operand 0']
    #allocation2 [shape = 'u8[4096]{0}', space=vmem, size = 0x1000, scoped, tag = 'operand span for operand 1']
    #allocation3 [shape = 'u8[4096]{0}', space=vmem, size = 0x1000, scoped, tag = 'packed  for operand 1']
    loop: start=0, step=1, limit=6
    $region2: #{custom-call.10} parent=1 // loop_pre_header
      _
    $region3: #{custom-call.10} parent=1 // loop_header
      %s3 = sphi 0, %s7
      %p4 = scmp.ge.s32.totalorder %s3, 6
      %s10 = sphi 0, %s36
      %s11 = sphi 0, %s32
      %s12 = sphi 0, %s28
      %s13 = sphi 0, %s24
      %s14 = sphi 0, %s10
      %s15 = sphi 0, %s11
      %s16 = sphi 0, %s12
      %s17 = sphi 0, %s13
      %s18 = sphi 0, %s14
      %s19 = sphi 0, %s15
      %s20 = sphi 0, %s16
      %s21 = sphi 0, %s17
    $region4: #{custom-call.10} parent=1 // loop_header_branch
      %6 = sbr.rel (%p4) target = $region8
    $region5: #{custom-call.10} parent=1 // loop_body
      %s8 = ssub.s32 %s3, 1
      %s9 = ssub.s32 %s3, 2
      %s22 = sadd.s32 1, %s13
      %p23 = scmp.ge.s32.totalorder %s22, 1
      %s24 = scalar_select %p23, 0, %s22
      %s25 = sadd.s32 1, %s12
      %s26 = scalar_select %p23, %s25, %s12
      %p27 = scmp.ge.s32.totalorder %s26, 1
      %s28 = scalar_select %p27, 0, %s26
      %s29 = sadd.s32 1, %s11
      %s30 = scalar_select %p27, %s29, %s11
      %p31 = scmp.ge.s32.totalorder %s30, 1
      %s32 = scalar_select %p31, 0, %s30
      %s33 = sadd.s32 1, %s10
      %s34 = scalar_select %p31, %s33, %s10
      %p35 = scmp.ge.s32.totalorder %s34, 4
      %s36 = scalar_select %p35, 0, %s34
      %p37 = scmp.le.s32.totalorder 1, %s3
      %p38 = scmp.lt.s32.totalorder %s3, 5
      %p39 = pnand %p37, %p38
      %p40 = pneg %p39
      // Predicated region
      $region9: #{custom-call.10} parent=5 // pred_check
        _
      $region10: #{custom-call.10} parent=5 // pred_check_branch
        %42 = sbr.rel (%p39) target = $region12
      $region11: #{custom-call.10} parent=5 // pred_region
        %s43 = ssub.s32 %s3, 1
      $region12: #{custom-call.10} parent=5 // pred_fallthru
        _
      %p44 = scmp.lt.s32.totalorder %s3, 4
      // Predicated region
      $region13: #{custom-call.10} parent=5 // pred_check
        %p45 = pneg %p44
      $region14: #{custom-call.10} parent=5 // pred_check_branch
        %47 = sbr.rel (%p45) target = $region16
      $region15: #{custom-call.10} parent=5 // pred_region
        %s48 = sand.u32 %s3, 1
        %s49 = sand.u32 %s3, 1
        %s50 = smul.addr %s49, 4
        %s51 = scalar_lea.vmem [#allocation1], %s50
        %s52 = sadd.s32 %s13, %s12
        %s53 = sadd.s32 %s52, %s11
        %s54 = sadd.s32 %s53, %s10
        %s55 = smul.addr %s54, 4
        %s56 = scalar_lea.vmem %s0, %s55
        // Predicated region
        $region17: #{custom-call.10} parent=15 // pred_check
          _
        $region18: #{custom-call.10} parent=15 // pred_check_branch
          %58 = sbr.rel (0) target = $region20
        $region19: #{custom-call.10} parent=15 // pred_region
          // Predicated region
          $region21: #{custom-call.10} parent=19 // pred_check
            _
          $region22: #{custom-call.10} parent=19 // pred_check_branch
            %60 = sbr.rel target = $region24
          $region23: #{custom-call.10} parent=19 // pred_region
            // Predicated region
            $region36: #{custom-call.10} parent=23 // pred_check
              _
            $region37: #{custom-call.10} parent=23 // pred_check_branch
              %76 = sbr.rel (0) target = $region39
            $region38: #{custom-call.10} parent=23 // pred_region
              %s78 = ssub.s32 16, 1
              loop: start=0, step=1, limit=1
              $region40: #{custom-call.10} parent=38 // loop_pre_header
                _
              $region41: #{custom-call.10} parent=38 // loop_header
                %s80 = sphi 0, %s84
                %p81 = scmp.ge.s32.totalorder %s80, 1
                %s85 = sphi %s56, %s56
                %s86 = sphi %s51, %s51
              $region42: #{custom-call.10} parent=38 // loop_header_branch
                %83 = sbr.rel (%p81) target = $region46
              $region43: #{custom-call.10} parent=38 // loop_body
                %v87 = vld [vmem:[%s85] sm:%s78]
                %88 = vst [vmem:[%s86] sm:%s78] %v87
              $region44: #{custom-call.10} parent=38 // loop_footer
                %s84 = sadd.s32 1, %s80
              $region45: #{custom-call.10} parent=38 // loop_footer_branch
                %79 = sbr.rel target = $region41
              $region46: #{custom-call.10} parent=38 // loop_exit
                _
            $region39: #{custom-call.10} parent=23 // pred_fallthru
              _
          $region24: #{custom-call.10} parent=19 // pred_fallthru
            _
          // Predicated region
          $region25: #{custom-call.10} parent=19 // pred_check
            _
          $region26: #{custom-call.10} parent=19 // pred_check_branch
            %62 = sbr.rel (0) target = $region28
          $region27: #{custom-call.10} parent=19 // pred_region
            %s64 = ssub.s32 16, 1
            loop: start=0, step=1, limit=1
            $region29: #{custom-call.10} parent=27 // loop_pre_header
              _
            $region30: #{custom-call.10} parent=27 // loop_header
              %s66 = sphi 0, %s70
              %p67 = scmp.ge.s32.totalorder %s66, 1
              %s71 = sphi %s56, %s56
              %s72 = sphi %s51, %s51
            $region31: #{custom-call.10} parent=27 // loop_header_branch
              %69 = sbr.rel (%p67) target = $region35
            $region32: #{custom-call.10} parent=27 // loop_body
              %v73 = vld [vmem:[%s71] sm:%s64]
              %74 = vst [vmem:[%s72] sm:%s64] %v73
            $region33: #{custom-call.10} parent=27 // loop_footer
              %s70 = sadd.s32 1, %s66
            $region34: #{custom-call.10} parent=27 // loop_footer_branch
              %65 = sbr.rel target = $region30
            $region35: #{custom-call.10} parent=27 // loop_exit
              _
          $region28: #{custom-call.10} parent=19 // pred_fallthru
            _
        $region20: #{custom-call.10} parent=15 // pred_fallthru
          _
        %89 = vnop
      $region16: #{custom-call.10} parent=5 // pred_fallthru
        _
      %p90 = scmp.le.s32.totalorder 1, %s3
      %p91 = scmp.lt.s32.totalorder %s3, 5
      %p92 = pnand %p90, %p91
      %p93 = pneg %p92
      // Predicated region
      $region47: #{custom-call.10} parent=5 // pred_check
        _
      $region48: #{custom-call.10} parent=5 // pred_check_branch
        %95 = sbr.rel (%p92) target = $region50
      $region49: #{custom-call.10} parent=5 // pred_region
        #allocation4 [shape = 'f32[3,3]{1,0}', space=vmem, size = 0x1000, scoped, tag = 'rescaled input a']
        %s96 = ssub.s32 %s3, 1
        %s97 = sand.u32 %s8, 1
        %s98 = sand.u32 %s8, 1
        %s99 = smul.addr %s98, 4
        %s100 = scalar_lea.vmem [#allocation1], %s99
        %s101 = sand.u32 %s8, 1
        %s102 = sand.u32 %s8, 1
        %s103 = smul.addr %s102, 4
        %s104 = scalar_lea.vmem [#allocation1], %s103
        %s105 = sand.u32 %s8, 1
        %s106 = sand.u32 %s8, 1
        %s107 = smul.addr %s106, 4
        %s108 = scalar_lea.vmem [#allocation3], %s107
        %s110 = ssub.s32 16, 1
        %v111 = vld [vmem:[%s104] sm:%s110]
        %112 = vst [vmem:[#allocation0] sm:%s110] %v111
        %v113 = vlaneseq
        %v114 = vand.u32 %v113, 127
        %vm115 = vcmp.lt.s32.totalorder %v114, 3
        %v116 = vlaneseq
        %v117 = vshrl.u32 %v116, 7
        %vm119 = vcmp.eq.s32.totalorder %v117, %v114
        %v120 = vld [vmem:[#allocation0] sm:$0xff]
        %v121 = vsel %vm119, %v120, 0.0
        %122 = vadd.xlane.f32.xlu0 %v121
        %v123 = vpop.xlane.xlu0 %122
        %vm124 = vcmp.ge.s32.totalorder %v117, %v114
        %vm125 = vmand %vm124, %vm115
        %v126 = vsel %vm125, %v120, 0.0
        %v127 = vrcp.pop %v123
        %v128 = vmul.f32 %v123, %v127
        %v129 = vsub.f32 1.0, %v128
        %v130 = vmul.f32 %v127, %v129
        %v131 = vadd.f32 %v127, %v130
        %vm132 = vweird.f32 %v123
        %vm133 = vweird.f32 %v127
        %vm134 = vmor %vm132, %vm133
        %v135 = vsel %vm134, %v127, %v131
        %v136 = vand.u32 2147483647, %v123
        %vm137 = vcmp.eq.f32.partialorder %v136, 8.507059e+37
        %v138 = vand.u32 %v123, 2147483648
        %v139 = vor.u32 1.1754944e-38, %v138
        %v140 = vsel %vm137, %v139, %v135
        %v141 = vmul.f32 %v126, %v140
        %142 = vst [vmem:[#allocation4] sm:$0xff] %v141
        %v143 = vlaneseq
        %v144 = vand.u32 %v143, 127
        %v145 = vlaneseq
        %v146 = vshrl.u32 %v145, 7
        %vm148 = vcmp.eq.s32.totalorder %v144, %v146
        %v149 = vlaneseq
        %v150 = vand.u32 %v149, 127
        %vm151 = vcmp.eq.s32.totalorder %v150, 0
        %v152 = vsel %vm151, 1.0, -1.0
        %v153 = vsel %vm148, %v152, 0.0
        %s154 = scalar_lea.vmem [#allocation4], 1
        %v155 = vld [vmem:[%s154] ss:$0 sm:$0xff]
        %v156 = vxor.u32 %v155, 2147483648
        %v157 = vlaneseq
        %v158 = vand.u32 %v157, 127
        %vm159 = vcmp.eq.s32.totalorder %v158, 1
        %v160 = vmul.f32 %v156, %v153
        %161 = vadd.xlane.f32.xlu0 %v160
        %v162 = vpop.xlane.xlu0 %161
        %v163 = vsel %vm159, %v162, %v153
        %s164 = scalar_lea.vmem [#allocation4], 2
        %v165 = vld [vmem:[%s164] ss:$0 sm:$0xff]
        %v166 = vxor.u32 %v165, 2147483648
        %v167 = vlaneseq
        %v168 = vand.u32 %v167, 127
        %vm169 = vcmp.eq.s32.totalorder %v168, 2
        %v170 = vmul.f32 %v166, %v163
        %171 = vadd.xlane.f32.xlu0 %v170
        %v172 = vpop.xlane.xlu0 %171
        %v173 = vsel %vm169, %v172, %v163
        %v174 = vrcp.pop %v123
        %v175 = vmul.f32 %v123, %v174
        %v176 = vsub.f32 1.0, %v175
        %v177 = vmul.f32 %v174, %v176
        %v178 = vadd.f32 %v174, %v177
        %vm179 = vweird.f32 %v123
        %vm180 = vweird.f32 %v174
        %vm181 = vmor %vm179, %vm180
        %v182 = vsel %vm181, %v174, %v178
        %v183 = vand.u32 2147483647, %v123
        %vm184 = vcmp.eq.f32.partialorder %v183, 8.507059e+37
        %v185 = vand.u32 %v123, 2147483648
        %v186 = vor.u32 1.1754944e-38, %v185
        %v187 = vsel %vm184, %v186, %v182
        %v188 = vmul.f32 %v173, %v187
        %vm189 = vweird.f32 %v123
        %v190 = vsel %vm189, %v173, %v188
        %191 = vst [vmem:[#allocation2] sm:$0xff] %v190
        %s193 = ssub.s32 16, 1
        %v194 = vld [vmem:[#allocation2] sm:%s193]
        %s196 = ssub.s32 16, 1
        %197 = vst [vmem:[%s108] sm:%s196] %v194
        %s198 = sand.u32 %s8, 1
        %s199 = sand.u32 %s8, 1
        %s200 = smul.addr %s199, 4
        %s201 = scalar_lea.vmem [#allocation3], %s200
        %s202 = sadd.s32 %s17, %s16
        %s203 = sadd.s32 %s202, %s15
        %s204 = sadd.s32 %s203, %s14
        %s205 = smul.addr %s204, 4
        %s206 = scalar_lea.vmem %s1, %s205
        // Predicated region
        $region51: #{custom-call.10} parent=49 // pred_check
          _
        $region52: #{custom-call.10} parent=49 // pred_check_branch
          %208 = sbr.rel (0) target = $region54
        $region53: #{custom-call.10} parent=49 // pred_region
          // Predicated region
          $region55: #{custom-call.10} parent=53 // pred_check
            _
          $region56: #{custom-call.10} parent=53 // pred_check_branch
            %210 = sbr.rel target = $region58
          $region57: #{custom-call.10} parent=53 // pred_region
            // Predicated region
            $region70: #{custom-call.10} parent=57 // pred_check
              _
            $region71: #{custom-call.10} parent=57 // pred_check_branch
              %226 = sbr.rel (0) target = $region73
            $region72: #{custom-call.10} parent=57 // pred_region
              %s228 = ssub.s32 16, 1
              loop: start=0, step=1, limit=1
              $region74: #{custom-call.10} parent=72 // loop_pre_header
                _
              $region75: #{custom-call.10} parent=72 // loop_header
                %s230 = sphi 0, %s234
                %p231 = scmp.ge.s32.totalorder %s230, 1
                %s235 = sphi %s201, %s201
                %s236 = sphi %s206, %s206
              $region76: #{custom-call.10} parent=72 // loop_header_branch
                %233 = sbr.rel (%p231) target = $region80
              $region77: #{custom-call.10} parent=72 // loop_body
                %v237 = vld [vmem:[%s235] sm:%s228]
                %238 = vst [vmem:[%s236] sm:%s228] %v237
              $region78: #{custom-call.10} parent=72 // loop_footer
                %s234 = sadd.s32 1, %s230
              $region79: #{custom-call.10} parent=72 // loop_footer_branch
                %229 = sbr.rel target = $region75
              $region80: #{custom-call.10} parent=72 // loop_exit
                _
            $region73: #{custom-call.10} parent=57 // pred_fallthru
              _
          $region58: #{custom-call.10} parent=53 // pred_fallthru
            _
          // Predicated region
          $region59: #{custom-call.10} parent=53 // pred_check
            _
          $region60: #{custom-call.10} parent=53 // pred_check_branch
            %212 = sbr.rel (0) target = $region62
          $region61: #{custom-call.10} parent=53 // pred_region
            %s214 = ssub.s32 16, 1
            loop: start=0, step=1, limit=1
            $region63: #{custom-call.10} parent=61 // loop_pre_header
              _
            $region64: #{custom-call.10} parent=61 // loop_header
              %s216 = sphi 0, %s220
              %p217 = scmp.ge.s32.totalorder %s216, 1
              %s221 = sphi %s201, %s201
              %s222 = sphi %s206, %s206
            $region65: #{custom-call.10} parent=61 // loop_header_branch
              %219 = sbr.rel (%p217) target = $region69
            $region66: #{custom-call.10} parent=61 // loop_body
              %v223 = vld [vmem:[%s221] sm:%s214]
              %224 = vst [vmem:[%s222] sm:%s214] %v223
            $region67: #{custom-call.10} parent=61 // loop_footer
              %s220 = sadd.s32 1, %s216
            $region68: #{custom-call.10} parent=61 // loop_footer_branch
              %215 = sbr.rel target = $region64
            $region69: #{custom-call.10} parent=61 // loop_exit
              _
          $region62: #{custom-call.10} parent=53 // pred_fallthru
            _
        $region54: #{custom-call.10} parent=49 // pred_fallthru
          _
        %239 = vnop
      $region50: #{custom-call.10} parent=5 // pred_fallthru
        _
      %p240 = scmp.le.s32.totalorder 2, %s3
      // Predicated region
      $region81: #{custom-call.10} parent=5 // pred_check
        %p241 = pneg %p240
      $region82: #{custom-call.10} parent=5 // pred_check_branch
        %243 = sbr.rel (%p241) target = $region84
      $region83: #{custom-call.10} parent=5 // pred_region
        %s244 = ssub.s32 %s3, 2
        %s245 = sand.u32 %s9, 1
        %s246 = sand.u32 %s9, 1
        %s247 = smul.addr %s246, 4
        %s248 = scalar_lea.vmem [#allocation3], %s247
      $region84: #{custom-call.10} parent=5 // pred_fallthru
        _
    $region6: #{custom-call.10} parent=1 // loop_footer
      %s7 = sadd.s32 1, %s3
    $region7: #{custom-call.10} parent=1 // loop_footer_branch
      %2 = sbr.rel target = $region3
    $region8: #{custom-call.10} parent=1 // loop_exit
      _

// kernel: aligned_psnr.3
$region0: #{aligned_psnr.3}
  #allocation0 [shape = 'u32[]', space=smem, size = 0x4, offset = 0x4, fixed_abs, tag = 'smem constant byte address 0x4 - core index']
  #allocation1 [shape = 'u32[72,128]{1,0:T(1,128)}', space=vmem, size = 0x9000, scoped, tag = 'internal scratch']
  #allocation2 [shape = 's32[1]{0}', space=sflag, size = 0x4, scoped, tag = 'scoped memory for aligned_psnr.3']
  #allocation3 [shape = 'u8[512]{0}', space=smem, size = 0x200, scoped, tag = 'prefetched SMEM operand 0']
  %s0 = inlined_call_operand.vmem [shape: f32[36], index: 0, kind: input, shape index: {}]
  %s1 = inlined_call_operand.vmem [shape: f32[4,3,128,128], index: 1, kind: input, shape index: {}]
  %s2 = inlined_call_operand.vmem [shape: f32[4,3,128,128], index: 2, kind: input, shape index: {}]
  %s3 = inlined_call_operand.vmem [shape: bf16[4,128,128], index: 3, kind: input, shape index: {}]
  %s4 = inlined_call_operand.vmem [shape: f32[2,1,128], index: 4, kind: output, shape index: {}]
  %s5 = sld [smem:[#allocation0]]
  $region45: #{aligned_psnr.3} parent=0
    _
  %s7 = ssub.s32 1, %s5
  %s8 = scalar_select 0, %s7, %s5
  %s10 = sshll.u32 %s0, 4
  %s11 = int_to_ptr.vmem [resolvable:$true] %s10
  %13 = dma.vmem_to_smem %s11, 16, [#allocation3], [#allocation2]
  %15 = dma.done [#allocation2], 16
  %16 = sfence
  loop: start=0, step=1, limit=4
  $region2: #{aligned_psnr.3} parent=0 // loop_pre_header
    _
  $region3: #{aligned_psnr.3} parent=0 // loop_header
    %s18 = sphi 0, %s22
    %p19 = scmp.ge.s32.totalorder %s18, 4
    %s28 = sphi 0, %s30
    %s31 = sphi 0, %s28
    %s32 = sphi 0, %s31
    %s48 = sphi 0, %s32
    %s54 = sphi 0, %s56
    %s57 = sphi 0, %s54
    %s58 = sphi 0, %s57
    %s74 = sphi 0, %s58
    %s80 = sphi 0, %s82
    %s83 = sphi 0, %s80
    %s84 = sphi 0, %s83
    %s100 = sphi 0, %s84
    %s106 = sphi 0, %s108
    %s109 = sphi 0, %s106
    %s110 = sphi 0, %s109
    %s126 = sphi 0, %s110
  $region4: #{aligned_psnr.3} parent=0 // loop_header_branch
    %21 = sbr.rel (%p19) target = $region8
  $region5: #{aligned_psnr.3} parent=0 // loop_body
    %s23 = ssub.s32 %s18, 1
    %s24 = ssub.s32 %s18, 2
    %s25 = sadd.s32 %s18, 1
    %s26 = ssub.s32 %s18, %s25
    %p27 = scmp.eq.s32.totalorder %s26, 0
    %s29 = sadd.s32 %s28, 1
    %s30 = scalar_select %p27, %s28, %s29
    %p33 = pneg %p27
    %p34 = scmp.eq.s32.totalorder %s18, 1
    %p35 = por %p33, %p34
    %p36 = scmp.ne.s32.totalorder %s28, %s31
    %p37 = scmp.eq.s32.totalorder %s18, 0
    %p38 = por %p36, %p37
    %p39 = scmp.ne.s32.totalorder %s28, %s31
    %p40 = scmp.eq.s32.totalorder %s23, 1
    %p41 = por %p39, %p40
    %p42 = scmp.ne.s32.totalorder %s31, %s32
    %p43 = scmp.eq.s32.totalorder %s23, 0
    %p44 = por %p42, %p43
    %p45 = scmp.ne.s32.totalorder %s31, %s32
    %p46 = scmp.eq.s32.totalorder %s24, 1
    %p47 = por %p45, %p46
    %p49 = scmp.ne.s32.totalorder %s32, %s48
    %p50 = scmp.eq.s32.totalorder %s24, 0
    %p51 = por %p49, %p50
    %s52 = ssub.s32 %s18, %s25
    %p53 = scmp.eq.s32.totalorder %s52, 0
    %s55 = sadd.s32 %s54, 1
    %s56 = scalar_select %p53, %s54, %s55
    %p59 = pneg %p53
    %p60 = scmp.eq.s32.totalorder %s18, 1
    %p61 = por %p59, %p60
    %p62 = scmp.ne.s32.totalorder %s54, %s57
    %p63 = scmp.eq.s32.totalorder %s18, 0
    %p64 = por %p62, %p63
    %p65 = scmp.ne.s32.totalorder %s54, %s57
    %p66 = scmp.eq.s32.totalorder %s23, 1
    %p67 = por %p65, %p66
    %p68 = scmp.ne.s32.totalorder %s57, %s58
    %p69 = scmp.eq.s32.totalorder %s23, 0
    %p70 = por %p68, %p69
    %p71 = scmp.ne.s32.totalorder %s57, %s58
    %p72 = scmp.eq.s32.totalorder %s24, 1
    %p73 = por %p71, %p72
    %p75 = scmp.ne.s32.totalorder %s58, %s74
    %p76 = scmp.eq.s32.totalorder %s24, 0
    %p77 = por %p75, %p76
    %s78 = ssub.s32 %s18, %s25
    %p79 = scmp.eq.s32.totalorder %s78, 0
    %s81 = sadd.s32 %s80, 1
    %s82 = scalar_select %p79, %s80, %s81
    %p85 = pneg %p79
    %p86 = scmp.eq.s32.totalorder %s18, 1
    %p87 = por %p85, %p86
    %p88 = scmp.ne.s32.totalorder %s80, %s83
    %p89 = scmp.eq.s32.totalorder %s18, 0
    %p90 = por %p88, %p89
    %p91 = scmp.ne.s32.totalorder %s80, %s83
    %p92 = scmp.eq.s32.totalorder %s23, 1
    %p93 = por %p91, %p92
    %p94 = scmp.ne.s32.totalorder %s83, %s84
    %p95 = scmp.eq.s32.totalorder %s23, 0
    %p96 = por %p94, %p95
    %p97 = scmp.ne.s32.totalorder %s83, %s84
    %p98 = scmp.eq.s32.totalorder %s24, 1
    %p99 = por %p97, %p98
    %p101 = scmp.ne.s32.totalorder %s84, %s100
    %p102 = scmp.eq.s32.totalorder %s24, 0
    %p103 = por %p101, %p102
    %s104 = ssub.s32 %s18, %s25
    %p105 = scmp.eq.s32.totalorder %s104, 0
    %s107 = sadd.s32 %s106, 1
    %s108 = scalar_select %p105, %s106, %s107
    %p111 = pneg %p105
    %p112 = scmp.eq.s32.totalorder %s18, 1
    %p113 = por %p111, %p112
    %p114 = scmp.ne.s32.totalorder %s106, %s109
    %p115 = scmp.eq.s32.totalorder %s18, 0
    %p116 = por %p114, %p115
    %p117 = scmp.ne.s32.totalorder %s106, %s109
    %p118 = scmp.eq.s32.totalorder %s23, 1
    %p119 = por %p117, %p118
    %p120 = scmp.ne.s32.totalorder %s109, %s110
    %p121 = scmp.eq.s32.totalorder %s23, 0
    %p122 = por %p120, %p121
    %p123 = scmp.ne.s32.totalorder %s109, %s110
    %p124 = scmp.eq.s32.totalorder %s24, 1
    %p125 = por %p123, %p124
    %p127 = scmp.ne.s32.totalorder %s110, %s126
    %p128 = scmp.eq.s32.totalorder %s24, 0
    %p129 = por %p127, %p128
    %p130 = scmp.le.s32.totalorder 1, %s18
    %p131 = scmp.lt.s32.totalorder %s18, 3
    %p132 = pnand %p130, %p131
    %p133 = pneg %p132
    // Predicated region
    $region9: #{aligned_psnr.3} parent=5 // pred_check
      _
    $region10: #{aligned_psnr.3} parent=5 // pred_check_branch
      %135 = sbr.rel (%p132) target = $region12
    $region11: #{aligned_psnr.3} parent=5 // pred_region
      %s136 = ssub.s32 %s18, 1
    $region12: #{aligned_psnr.3} parent=5 // pred_fallthru
      _
    %p137 = scmp.lt.s32.totalorder %s18, 2
    // Predicated region
    $region13: #{aligned_psnr.3} parent=5 // pred_check
      %p138 = pneg %p137
    $region14: #{aligned_psnr.3} parent=5 // pred_check_branch
      %140 = sbr.rel (%p138) target = $region16
    $region15: #{aligned_psnr.3} parent=5 // pred_region
      // Predicated region
      $region17: #{aligned_psnr.3} parent=15 // pred_check
        %p141 = pneg %p38
      $region18: #{aligned_psnr.3} parent=15 // pred_check_branch
        %143 = sbr.rel (%p141) target = $region20
      $region19: #{aligned_psnr.3} parent=15 // pred_region
        %s144 = smul.u32 2, %s18
        %p145 = scmp.lt.s32.totalorder %s144, 3
        %s146 = scalar_select %p145, %s144, 3
        %s147 = smul.addr %s146, 48
        %s148 = smul.addr %s147, 8
        %s149 = scalar_lea.vmem %s1, %s148
        %s150 = smul.u32 2, %s18
      $region20: #{aligned_psnr.3} parent=15 // pred_fallthru
        _
      // Predicated region
      $region21: #{aligned_psnr.3} parent=15 // pred_check
        %p151 = pneg %p64
      $region22: #{aligned_psnr.3} parent=15 // pred_check_branch
        %153 = sbr.rel (%p151) target = $region24
      $region23: #{aligned_psnr.3} parent=15 // pred_region
        %s154 = smul.u32 2, %s18
        %p155 = scmp.lt.s32.totalorder %s154, 3
        %s156 = scalar_select %p155, %s154, 3
        %s157 = smul.addr %s156, 48
        %s158 = smul.addr %s157, 8
        %s159 = scalar_lea.vmem %s2, %s158
        %s160 = smul.u32 2, %s18
      $region24: #{aligned_psnr.3} parent=15 // pred_fallthru
        _
      // Predicated region
      $region25: #{aligned_psnr.3} parent=15 // pred_check
        %p161 = pneg %p90
      $region26: #{aligned_psnr.3} parent=15 // pred_check_branch
        %163 = sbr.rel (%p161) target = $region28
      $region27: #{aligned_psnr.3} parent=15 // pred_region
        %s164 = smul.u32 2, %s18
        %p165 = scmp.lt.s32.totalorder %s164, 3
        %s166 = scalar_select %p165, %s164, 3
        %s167 = smul.addr %s166, 16
        %s168 = smul.addr %s167, 4
        %s169 = scalar_lea.vmem %s3, %s168
        %s170 = smul.u32 2, %s18
      $region28: #{aligned_psnr.3} parent=15 // pred_fallthru
        _
    $region16: #{aligned_psnr.3} parent=5 // pred_fallthru
      _
    %p171 = scmp.le.s32.totalorder 1, %s18
    %p172 = scmp.lt.s32.totalorder %s18, 3
    %p173 = pnand %p171, %p172
    %p174 = pneg %p173
    // Predicated region
    $region29: #{aligned_psnr.3} parent=5 // pred_check
      _
    $region30: #{aligned_psnr.3} parent=5 // pred_check_branch
      %176 = sbr.rel (%p173) target = $region32
    $region31: #{aligned_psnr.3} parent=5 // pred_region
      %s177 = ssub.s32 %s18, 1
      %s178 = smul.u32 2, %s23
      %p179 = scmp.lt.s32.totalorder %s178, 3
      %s180 = scalar_select %p179, %s178, 3
      %s181 = smul.addr %s180, 48
      %s182 = smul.addr %s181, 8
      %s183 = scalar_lea.vmem %s1, %s182
      %p184 = pneg %p44
      %p185 = pneg %p41
      %s186 = smul.u32 2, %s23
      %p187 = scmp.lt.s32.totalorder %s186, 3
      %s188 = scalar_select %p187, %s186, 3
      %s189 = smul.addr %s188, 48
      %s190 = smul.addr %s189, 8
      %s191 = scalar_lea.vmem %s2, %s190
      %p192 = pneg %p70
      %p193 = pneg %p67
      %s194 = smul.u32 2, %s23
      %p195 = scmp.lt.s32.totalorder %s194, 3
      %s196 = scalar_select %p195, %s194, 3
      %s197 = smul.addr %s196, 16
      %s198 = smul.addr %s197, 4
      %s199 = scalar_lea.vmem %s3, %s198
      %p200 = pneg %p96
      %p201 = pneg %p93
      %p202 = pneg %p122
      %p203 = pneg %p119
      %p204 = scmp.lt.s32.totalorder %s23, 1
      %s205 = scalar_select %p204, %s23, 1
      %s206 = scalar_lea.vmem %s4, %s205
      %s207 = smul.u32 2, %s23
      %p208 = scmp.lt.s32.totalorder %s207, 3
      %s209 = scalar_select %p208, %s207, 3
      %s210 = smul.addr %s209, 48
      %s211 = smul.addr %s210, 8
      %s212 = scalar_lea.vmem %s1, %s211
      %s213 = smul.u32 2, %s23
      %s214 = smul.u32 2, %s23
      %p215 = scmp.lt.s32.totalorder %s214, 3
      %s216 = scalar_select %p215, %s214, 3
      %s217 = smul.addr %s216, 48
      %s218 = smul.addr %s217, 8
      %s219 = scalar_lea.vmem %s2, %s218
      %s220 = smul.u32 2, %s23
      %s221 = smul.u32 2, %s23
      %p222 = scmp.lt.s32.totalorder %s221, 3
      %s223 = scalar_select %p222, %s221, 3
      %s224 = smul.addr %s223, 16
      %s225 = smul.addr %s224, 4
      %s226 = scalar_lea.vmem %s3, %s225
      %s227 = smul.u32 2, %s23
      %p228 = scmp.lt.s32.totalorder %s23, 1
      %s229 = scalar_select %p228, %s23, 1
      %s230 = scalar_lea.vmem %s4, %s229
      %v231 = vlaneseq
      %v232 = vand.u32 %v231, 127
      %s233 = smul.u32 %s23, 18
      %s234 = sld [smem:[#allocation3 + %s233]]
      %s235 = sadd.s32 %s233, 1
      %s236 = sld [smem:[#allocation3 + %s235]]
      %s237 = sadd.s32 %s233, 2
      %s238 = sld [smem:[#allocation3 + %s237]]
      %s239 = sadd.s32 %s233, 3
      %s240 = sld [smem:[#allocation3 + %s239]]
      %s241 = sadd.s32 %s233, 4
      %s242 = sld [smem:[#allocation3 + %s241]]
      %s243 = sadd.s32 %s233, 5
      %s244 = sld [smem:[#allocation3 + %s243]]
      %s245 = sadd.s32 %s233, 6
      %s246 = sld [smem:[#allocation3 + %s245]]
      %s247 = sadd.s32 %s233, 7
      %s248 = sld [smem:[#allocation3 + %s247]]
      %s249 = sadd.s32 %s233, 8
      %s250 = sld [smem:[#allocation3 + %s249]]
      %v251 = vld [vmem:[%s212] sm:$0xff]
      %v252 = vld [vmem:[%s212 + $0x8] sm:$0xff]
      %v253 = vld [vmem:[%s212 + $0x10] sm:$0xff]
      %v254 = vld [vmem:[%s212 + $0x18] sm:$0xff]
      %v255 = vld [vmem:[%s212 + $0x20] sm:$0xff]
      %v256 = vld [vmem:[%s212 + $0x28] sm:$0xff]
      %v257 = vld [vmem:[%s212 + $0x30] sm:$0xff]
      %v258 = vld [vmem:[%s212 + $0x38] sm:$0xff]
      %v259 = vld [vmem:[%s212 + $0x40] sm:$0xff]
      %v260 = vld [vmem:[%s212 + $0x48] sm:$0xff]
      %v261 = vld [vmem:[%s212 + $0x50] sm:$0xff]
      %v262 = vld [vmem:[%s212 + $0x58] sm:$0xff]
      %v263 = vld [vmem:[%s212 + $0x60] sm:$0xff]
      %v264 = vld [vmem:[%s212 + $0x68] sm:$0xff]
      %v265 = vld [vmem:[%s212 + $0x70] sm:$0xff]
      %v266 = vld [vmem:[%s212 + $0x78] sm:$0xff]
      %s267 = scalar_lea.vmem %s212, 128
      %v268 = vld [vmem:[%s267] sm:$0xff]
      %v269 = vld [vmem:[%s267 + $0x8] sm:$0xff]
      %v270 = vld [vmem:[%s267 + $0x10] sm:$0xff]
      %v271 = vld [vmem:[%s267 + $0x18] sm:$0xff]
      %v272 = vld [vmem:[%s267 + $0x20] sm:$0xff]
      %v273 = vld [vmem:[%s267 + $0x28] sm:$0xff]
      %v274 = vld [vmem:[%s267 + $0x30] sm:$0xff]
      %v275 = vld [vmem:[%s267 + $0x38] sm:$0xff]
      %v276 = vld [vmem:[%s267 + $0x40] sm:$0xff]
      %v277 = vld [vmem:[%s267 + $0x48] sm:$0xff]
      %v278 = vld [vmem:[%s267 + $0x50] sm:$0xff]
      %v279 = vld [vmem:[%s267 + $0x58] sm:$0xff]
      %v280 = vld [vmem:[%s267 + $0x60] sm:$0xff]
      %v281 = vld [vmem:[%s267 + $0x68] sm:$0xff]
      %v282 = vld [vmem:[%s267 + $0x70] sm:$0xff]
      %v283 = vld [vmem:[%s267 + $0x78] sm:$0xff]
      %s284 = scalar_lea.vmem %s212, 256
      %v285 = vld [vmem:[%s284] sm:$0xff]
      %v286 = vld [vmem:[%s284 + $0x8] sm:$0xff]
      %v287 = vld [vmem:[%s284 + $0x10] sm:$0xff]
      %v288 = vld [vmem:[%s284 + $0x18] sm:$0xff]
      %v289 = vld [vmem:[%s284 + $0x20] sm:$0xff]
      %v290 = vld [vmem:[%s284 + $0x28] sm:$0xff]
      %v291 = vld [vmem:[%s284 + $0x30] sm:$0xff]
      %v292 = vld [vmem:[%s284 + $0x38] sm:$0xff]
      %v293 = vld [vmem:[%s284 + $0x40] sm:$0xff]
      %v294 = vld [vmem:[%s284 + $0x48] sm:$0xff]
      %v295 = vld [vmem:[%s284 + $0x50] sm:$0xff]
      %v296 = vld [vmem:[%s284 + $0x58] sm:$0xff]
      %v297 = vld [vmem:[%s284 + $0x60] sm:$0xff]
      %v298 = vld [vmem:[%s284 + $0x68] sm:$0xff]
      %v299 = vld [vmem:[%s284 + $0x70] sm:$0xff]
      %v300 = vld [vmem:[%s284 + $0x78] sm:$0xff]
      %v301 = vld [vmem:[%s226] sm:$0xf]
      %v302 = vld [vmem:[%s226 + $0x4] sm:$0xf]
      %v303 = vld [vmem:[%s226 + $0x8] sm:$0xf]
      %v304 = vld [vmem:[%s226 + $0xc] sm:$0xf]
      %v305 = vld [vmem:[%s226 + $0x10] sm:$0xf]
      %v306 = vld [vmem:[%s226 + $0x14] sm:$0xf]
      %v307 = vld [vmem:[%s226 + $0x18] sm:$0xf]
      %v308 = vld [vmem:[%s226 + $0x1c] sm:$0xf]
      %v309 = vld [vmem:[%s226 + $0x20] sm:$0xf]
      %v310 = vld [vmem:[%s226 + $0x24] sm:$0xf]
      %v311 = vld [vmem:[%s226 + $0x28] sm:$0xf]
      %v312 = vld [vmem:[%s226 + $0x2c] sm:$0xf]
      %v313 = vld [vmem:[%s226 + $0x30] sm:$0xf]
      %v314 = vld [vmem:[%s226 + $0x34] sm:$0xf]
      %v315 = vld [vmem:[%s226 + $0x38] sm:$0xf]
      %v316 = vld [vmem:[%s226 + $0x3c] sm:$0xf]
      %v317 = vunpack.c.l.bf16 %v301
      %v318 = vunpack.c.l.bf16 %v302
      %v319 = vunpack.c.l.bf16 %v303
      %v320 = vunpack.c.l.bf16 %v304
      %v321 = vunpack.c.l.bf16 %v305
      %v322 = vunpack.c.l.bf16 %v306
      %v323 = vunpack.c.l.bf16 %v307
      %v324 = vunpack.c.l.bf16 %v308
      %v325 = vunpack.c.l.bf16 %v309
      %v326 = vunpack.c.l.bf16 %v310
      %v327 = vunpack.c.l.bf16 %v311
      %v328 = vunpack.c.l.bf16 %v312
      %v329 = vunpack.c.l.bf16 %v313
      %v330 = vunpack.c.l.bf16 %v314
      %v331 = vunpack.c.l.bf16 %v315
      %v332 = vunpack.c.l.bf16 %v316
      %v333 = vstv %s234
      %v334 = vmul.f32 %v333, %v251
      %v335 = vmul.f32 %v333, %v252
      %v336 = vmul.f32 %v333, %v253
      %v337 = vmul.f32 %v333, %v254
      %v338 = vmul.f32 %v333, %v255
      %v339 = vmul.f32 %v333, %v256
      %v340 = vmul.f32 %v333, %v257
      %v341 = vmul.f32 %v333, %v258
      %v342 = vmul.f32 %v333, %v259
      %v343 = vmul.f32 %v333, %v260
      %v344 = vmul.f32 %v333, %v261
      %v345 = vmul.f32 %v333, %v262
      %v346 = vmul.f32 %v333, %v263
      %v347 = vmul.f32 %v333, %v264
      %v348 = vmul.f32 %v333, %v265
      %v349 = vmul.f32 %v333, %v266
      %v350 = vstv %s240
      %v351 = vmul.f32 %v350, %v268
      %v352 = vmul.f32 %v350, %v269
      %v353 = vmul.f32 %v350, %v270
      %v354 = vmul.f32 %v350, %v271
      %v355 = vmul.f32 %v350, %v272
      %v356 = vmul.f32 %v350, %v273
      %v357 = vmul.f32 %v350, %v274
      %v358 = vmul.f32 %v350, %v275
      %v359 = vmul.f32 %v350, %v276
      %v360 = vmul.f32 %v350, %v277
      %v361 = vmul.f32 %v350, %v278
      %v362 = vmul.f32 %v350, %v279
      %v363 = vmul.f32 %v350, %v280
      %v364 = vmul.f32 %v350, %v281
      %v365 = vmul.f32 %v350, %v282
      %v366 = vmul.f32 %v350, %v283
      %v367 = vadd.f32 %v334, %v351
      %v368 = vadd.f32 %v335, %v352
      %v369 = vadd.f32 %v336, %v353
      %v370 = vadd.f32 %v337, %v354
      %v371 = vadd.f32 %v338, %v355
      %v372 = vadd.f32 %v339, %v356
      %v373 = vadd.f32 %v340, %v357
      %v374 = vadd.f32 %v341, %v358
      %v375 = vadd.f32 %v342, %v359
      %v376 = vadd.f32 %v343, %v360
      %v377 = vadd.f32 %v344, %v361
      %v378 = vadd.f32 %v345, %v362
      %v379 = vadd.f32 %v346, %v363
      %v380 = vadd.f32 %v347, %v364
      %v381 = vadd.f32 %v348, %v365
      %v382 = vadd.f32 %v349, %v366
      %v383 = vstv %s246
      %v384 = vmul.f32 %v383, %v285
      %v385 = vmul.f32 %v383, %v286
      %v386 = vmul.f32 %v383, %v287
      %v387 = vmul.f32 %v383, %v288
      %v388 = vmul.f32 %v383, %v289
      %v389 = vmul.f32 %v383, %v290
      %v390 = vmul.f32 %v383, %v291
      %v391 = vmul.f32 %v383, %v292
      %v392 = vmul.f32 %v383, %v293
      %v393 = vmul.f32 %v383, %v294
      %v394 = vmul.f32 %v383, %v295
      %v395 = vmul.f32 %v383, %v296
      %v396 = vmul.f32 %v383, %v297
      %v397 = vmul.f32 %v383, %v298
      %v398 = vmul.f32 %v383, %v299
      %v399 = vmul.f32 %v383, %v300
      %v400 = vadd.f32 %v367, %v384
      %v401 = vadd.f32 %v368, %v385
      %v402 = vadd.f32 %v369, %v386
      %v403 = vadd.f32 %v370, %v387
      %v404 = vadd.f32 %v371, %v388
      %v405 = vadd.f32 %v372, %v389
      %v406 = vadd.f32 %v373, %v390
      %v407 = vadd.f32 %v374, %v391
      %v408 = vadd.f32 %v375, %v392
      %v409 = vadd.f32 %v376, %v393
      %v410 = vadd.f32 %v377, %v394
      %v411 = vadd.f32 %v378, %v395
      %v412 = vadd.f32 %v379, %v396
      %v413 = vadd.f32 %v380, %v397
      %v414 = vadd.f32 %v381, %v398
      %v415 = vadd.f32 %v382, %v399
      %v416 = vld [vmem:[%s219] sm:$0xff]
      %v417 = vld [vmem:[%s219 + $0x8] sm:$0xff]
      %v418 = vld [vmem:[%s219 + $0x10] sm:$0xff]
      %v419 = vld [vmem:[%s219 + $0x18] sm:$0xff]
      %v420 = vld [vmem:[%s219 + $0x20] sm:$0xff]
      %v421 = vld [vmem:[%s219 + $0x28] sm:$0xff]
      %v422 = vld [vmem:[%s219 + $0x30] sm:$0xff]
      %v423 = vld [vmem:[%s219 + $0x38] sm:$0xff]
      %v424 = vld [vmem:[%s219 + $0x40] sm:$0xff]
      %v425 = vld [vmem:[%s219 + $0x48] sm:$0xff]
      %v426 = vld [vmem:[%s219 + $0x50] sm:$0xff]
      %v427 = vld [vmem:[%s219 + $0x58] sm:$0xff]
      %v428 = vld [vmem:[%s219 + $0x60] sm:$0xff]
      %v429 = vld [vmem:[%s219 + $0x68] sm:$0xff]
      %v430 = vld [vmem:[%s219 + $0x70] sm:$0xff]
      %v431 = vld [vmem:[%s219 + $0x78] sm:$0xff]
      %v432 = vsub.f32 %v400, %v416
      %v433 = vsub.f32 %v401, %v417
      %v434 = vsub.f32 %v402, %v418
      %v435 = vsub.f32 %v403, %v419
      %v436 = vsub.f32 %v404, %v420
      %v437 = vsub.f32 %v405, %v421
      %v438 = vsub.f32 %v406, %v422
      %v439 = vsub.f32 %v407, %v423
      %v440 = vsub.f32 %v408, %v424
      %v441 = vsub.f32 %v409, %v425
      %v442 = vsub.f32 %v410, %v426
      %v443 = vsub.f32 %v411, %v427
      %v444 = vsub.f32 %v412, %v428
      %v445 = vsub.f32 %v413, %v429
      %v446 = vsub.f32 %v414, %v430
      %v447 = vsub.f32 %v415, %v431
      %v448 = vmul.f32 %v432, %v432
      %v449 = vmul.f32 %v433, %v433
      %v450 = vmul.f32 %v434, %v434
      %v451 = vmul.f32 %v435, %v435
      %v452 = vmul.f32 %v436, %v436
      %v453 = vmul.f32 %v437, %v437
      %v454 = vmul.f32 %v438, %v438
      %v455 = vmul.f32 %v439, %v439
      %v456 = vmul.f32 %v440, %v440
      %v457 = vmul.f32 %v441, %v441
      %v458 = vmul.f32 %v442, %v442
      %v459 = vmul.f32 %v443, %v443
      %v460 = vmul.f32 %v444, %v444
      %v461 = vmul.f32 %v445, %v445
      %v462 = vmul.f32 %v446, %v446
      %v463 = vmul.f32 %v447, %v447
      %v464 = vstv %s236
      %v465 = vmul.f32 %v464, %v251
      %v466 = vmul.f32 %v464, %v252
      %v467 = vmul.f32 %v464, %v253
      %v468 = vmul.f32 %v464, %v254
      %v469 = vmul.f32 %v464, %v255
      %v470 = vmul.f32 %v464, %v256
      %v471 = vmul.f32 %v464, %v257
      %v472 = vmul.f32 %v464, %v258
      %v473 = vmul.f32 %v464, %v259
      %v474 = vmul.f32 %v464, %v260
      %v475 = vmul.f32 %v464, %v261
      %v476 = vmul.f32 %v464, %v262
      %v477 = vmul.f32 %v464, %v263
      %v478 = vmul.f32 %v464, %v264
      %v479 = vmul.f32 %v464, %v265
      %v480 = vmul.f32 %v464, %v266
      %v481 = vstv %s242
      %v482 = vmul.f32 %v481, %v268
      %v483 = vmul.f32 %v481, %v269
      %v484 = vmul.f32 %v481, %v270
      %v485 = vmul.f32 %v481, %v271
      %v486 = vmul.f32 %v481, %v272
      %v487 = vmul.f32 %v481, %v273
      %v488 = vmul.f32 %v481, %v274
      %v489 = vmul.f32 %v481, %v275
      %v490 = vmul.f32 %v481, %v276
      %v491 = vmul.f32 %v481, %v277
      %v492 = vmul.f32 %v481, %v278
      %v493 = vmul.f32 %v481, %v279
      %v494 = vmul.f32 %v481, %v280
      %v495 = vmul.f32 %v481, %v281
      %v496 = vmul.f32 %v481, %v282
      %v497 = vmul.f32 %v481, %v283
      %v498 = vadd.f32 %v465, %v482
      %v499 = vadd.f32 %v466, %v483
      %v500 = vadd.f32 %v467, %v484
      %v501 = vadd.f32 %v468, %v485
      %v502 = vadd.f32 %v469, %v486
      %v503 = vadd.f32 %v470, %v487
      %v504 = vadd.f32 %v471, %v488
      %v505 = vadd.f32 %v472, %v489
      %v506 = vadd.f32 %v473, %v490
      %v507 = vadd.f32 %v474, %v491
      %v508 = vadd.f32 %v475, %v492
      %v509 = vadd.f32 %v476, %v493
      %v510 = vadd.f32 %v477, %v494
      %v511 = vadd.f32 %v478, %v495
      %v512 = vadd.f32 %v479, %v496
      %v513 = vadd.f32 %v480, %v497
      %v514 = vstv %s248
      %v515 = vmul.f32 %v514, %v285
      %v516 = vmul.f32 %v514, %v286
      %v517 = vmul.f32 %v514, %v287
      %v518 = vmul.f32 %v514, %v288
      %v519 = vmul.f32 %v514, %v289
      %v520 = vmul.f32 %v514, %v290
      %v521 = vmul.f32 %v514, %v291
      %v522 = vmul.f32 %v514, %v292
      %v523 = vmul.f32 %v514, %v293
      %v524 = vmul.f32 %v514, %v294
      %v525 = vmul.f32 %v514, %v295
      %v526 = vmul.f32 %v514, %v296
      %v527 = vmul.f32 %v514, %v297
      %v528 = vmul.f32 %v514, %v298
      %v529 = vmul.f32 %v514, %v299
      %v530 = vmul.f32 %v514, %v300
      %v531 = vadd.f32 %v498, %v515
      %v532 = vadd.f32 %v499, %v516
      %v533 = vadd.f32 %v500, %v517
      %v534 = vadd.f32 %v501, %v518
      %v535 = vadd.f32 %v502, %v519
      %v536 = vadd.f32 %v503, %v520
      %v537 = vadd.f32 %v504, %v521
      %v538 = vadd.f32 %v505, %v522
      %v539 = vadd.f32 %v506, %v523
      %v540 = vadd.f32 %v507, %v524
      %v541 = vadd.f32 %v508, %v525
      %v542 = vadd.f32 %v509, %v526
      %v543 = vadd.f32 %v510, %v527
      %v544 = vadd.f32 %v511, %v528
      %v545 = vadd.f32 %v512, %v529
      %v546 = vadd.f32 %v513, %v530
      %s547 = scalar_lea.vmem %s219, 128
      %v548 = vld [vmem:[%s547] sm:$0xff]
      %v549 = vld [vmem:[%s547 + $0x8] sm:$0xff]
      %v550 = vld [vmem:[%s547 + $0x10] sm:$0xff]
      %v551 = vld [vmem:[%s547 + $0x18] sm:$0xff]
      %v552 = vld [vmem:[%s547 + $0x20] sm:$0xff]
      %v553 = vld [vmem:[%s547 + $0x28] sm:$0xff]
      %v554 = vld [vmem:[%s547 + $0x30] sm:$0xff]
      %v555 = vld [vmem:[%s547 + $0x38] sm:$0xff]
      %v556 = vld [vmem:[%s547 + $0x40] sm:$0xff]
      %v557 = vld [vmem:[%s547 + $0x48] sm:$0xff]
      %v558 = vld [vmem:[%s547 + $0x50] sm:$0xff]
      %v559 = vld [vmem:[%s547 + $0x58] sm:$0xff]
      %v560 = vld [vmem:[%s547 + $0x60] sm:$0xff]
      %v561 = vld [vmem:[%s547 + $0x68] sm:$0xff]
      %v562 = vld [vmem:[%s547 + $0x70] sm:$0xff]
      %v563 = vld [vmem:[%s547 + $0x78] sm:$0xff]
      %v564 = vsub.f32 %v531, %v548
      %v565 = vsub.f32 %v532, %v549
      %v566 = vsub.f32 %v533, %v550
      %v567 = vsub.f32 %v534, %v551
      %v568 = vsub.f32 %v535, %v552
      %v569 = vsub.f32 %v536, %v553
      %v570 = vsub.f32 %v537, %v554
      %v571 = vsub.f32 %v538, %v555
      %v572 = vsub.f32 %v539, %v556
      %v573 = vsub.f32 %v540, %v557
      %v574 = vsub.f32 %v541, %v558
      %v575 = vsub.f32 %v542, %v559
      %v576 = vsub.f32 %v543, %v560
      %v577 = vsub.f32 %v544, %v561
      %v578 = vsub.f32 %v545, %v562
      %v579 = vsub.f32 %v546, %v563
      %v580 = vmul.f32 %v564, %v564
      %v581 = vmul.f32 %v565, %v565
      %v582 = vmul.f32 %v566, %v566
      %v583 = vmul.f32 %v567, %v567
      %v584 = vmul.f32 %v568, %v568
      %v585 = vmul.f32 %v569, %v569
      %v586 = vmul.f32 %v570, %v570
      %v587 = vmul.f32 %v571, %v571
      %v588 = vmul.f32 %v572, %v572
      %v589 = vmul.f32 %v573, %v573
      %v590 = vmul.f32 %v574, %v574
      %v591 = vmul.f32 %v575, %v575
      %v592 = vmul.f32 %v576, %v576
      %v593 = vmul.f32 %v577, %v577
      %v594 = vmul.f32 %v578, %v578
      %v595 = vmul.f32 %v579, %v579
      %v596 = vadd.f32 %v448, %v580
      %v597 = vadd.f32 %v449, %v581
      %v598 = vadd.f32 %v450, %v582
      %v599 = vadd.f32 %v451, %v583
      %v600 = vadd.f32 %v452, %v584
      %v601 = vadd.f32 %v453, %v585
      %v602 = vadd.f32 %v454, %v586
      %v603 = vadd.f32 %v455, %v587
      %v604 = vadd.f32 %v456, %v588
      %v605 = vadd.f32 %v457, %v589
      %v606 = vadd.f32 %v458, %v590
      %v607 = vadd.f32 %v459, %v591
      %v608 = vadd.f32 %v460, %v592
      %v609 = vadd.f32 %v461, %v593
      %v610 = vadd.f32 %v462, %v594
      %v611 = vadd.f32 %v463, %v595
      %v612 = vstv %s238
      %v613 = vmul.f32 %v612, %v251
      %v614 = vmul.f32 %v612, %v252
      %v615 = vmul.f32 %v612, %v253
      %v616 = vmul.f32 %v612, %v254
      %v617 = vmul.f32 %v612, %v255
      %v618 = vmul.f32 %v612, %v256
      %v619 = vmul.f32 %v612, %v257
      %v620 = vmul.f32 %v612, %v258
      %v621 = vmul.f32 %v612, %v259
      %v622 = vmul.f32 %v612, %v260
      %v623 = vmul.f32 %v612, %v261
      %v624 = vmul.f32 %v612, %v262
      %v625 = vmul.f32 %v612, %v263
      %v626 = vmul.f32 %v612, %v264
      %v627 = vmul.f32 %v612, %v265
      %v628 = vmul.f32 %v612, %v266
      %v629 = vstv %s244
      %v630 = vmul.f32 %v629, %v268
      %v631 = vmul.f32 %v629, %v269
      %v632 = vmul.f32 %v629, %v270
      %v633 = vmul.f32 %v629, %v271
      %v634 = vmul.f32 %v629, %v272
      %v635 = vmul.f32 %v629, %v273
      %v636 = vmul.f32 %v629, %v274
      %v637 = vmul.f32 %v629, %v275
      %v638 = vmul.f32 %v629, %v276
      %v639 = vmul.f32 %v629, %v277
      %v640 = vmul.f32 %v629, %v278
      %v641 = vmul.f32 %v629, %v279
      %v642 = vmul.f32 %v629, %v280
      %v643 = vmul.f32 %v629, %v281
      %v644 = vmul.f32 %v629, %v282
      %v645 = vmul.f32 %v629, %v283
      %v646 = vadd.f32 %v613, %v630
      %v647 = vadd.f32 %v614, %v631
      %v648 = vadd.f32 %v615, %v632
      %v649 = vadd.f32 %v616, %v633
      %v650 = vadd.f32 %v617, %v634
      %v651 = vadd.f32 %v618, %v635
      %v652 = vadd.f32 %v619, %v636
      %v653 = vadd.f32 %v620, %v637
      %v654 = vadd.f32 %v621, %v638
      %v655 = vadd.f32 %v622, %v639
      %v656 = vadd.f32 %v623, %v640
      %v657 = vadd.f32 %v624, %v641
      %v658 = vadd.f32 %v625, %v642
      %v659 = vadd.f32 %v626, %v643
      %v660 = vadd.f32 %v627, %v644
      %v661 = vadd.f32 %v628, %v645
      %v662 = vstv %s250
      %v663 = vmul.f32 %v662, %v285
      %v664 = vmul.f32 %v662, %v286
      %v665 = vmul.f32 %v662, %v287
      %v666 = vmul.f32 %v662, %v288
      %v667 = vmul.f32 %v662, %v289
      %v668 = vmul.f32 %v662, %v290
      %v669 = vmul.f32 %v662, %v291
      %v670 = vmul.f32 %v662, %v292
      %v671 = vmul.f32 %v662, %v293
      %v672 = vmul.f32 %v662, %v294
      %v673 = vmul.f32 %v662, %v295
      %v674 = vmul.f32 %v662, %v296
      %v675 = vmul.f32 %v662, %v297
      %v676 = vmul.f32 %v662, %v298
      %v677 = vmul.f32 %v662, %v299
      %v678 = vmul.f32 %v662, %v300
      %v679 = vadd.f32 %v646, %v663
      %v680 = vadd.f32 %v647, %v664
      %v681 = vadd.f32 %v648, %v665
      %v682 = vadd.f32 %v649, %v666
      %v683 = vadd.f32 %v650, %v667
      %v684 = vadd.f32 %v651, %v668
      %v685 = vadd.f32 %v652, %v669
      %v686 = vadd.f32 %v653, %v670
      %v687 = vadd.f32 %v654, %v671
      %v688 = vadd.f32 %v655, %v672
      %v689 = vadd.f32 %v656, %v673
      %v690 = vadd.f32 %v657, %v674
      %v691 = vadd.f32 %v658, %v675
      %v692 = vadd.f32 %v659, %v676
      %v693 = vadd.f32 %v660, %v677
      %v694 = vadd.f32 %v661, %v678
      %s695 = scalar_lea.vmem %s219, 256
      %v696 = vld [vmem:[%s695] sm:$0xff]
      %v697 = vld [vmem:[%s695 + $0x8] sm:$0xff]
      %v698 = vld [vmem:[%s695 + $0x10] sm:$0xff]
      %v699 = vld [vmem:[%s695 + $0x18] sm:$0xff]
      %v700 = vld [vmem:[%s695 + $0x20] sm:$0xff]
      %v701 = vld [vmem:[%s695 + $0x28] sm:$0xff]
      %v702 = vld [vmem:[%s695 + $0x30] sm:$0xff]
      %v703 = vld [vmem:[%s695 + $0x38] sm:$0xff]
      %v704 = vld [vmem:[%s695 + $0x40] sm:$0xff]
      %v705 = vld [vmem:[%s695 + $0x48] sm:$0xff]
      %v706 = vld [vmem:[%s695 + $0x50] sm:$0xff]
      %v707 = vld [vmem:[%s695 + $0x58] sm:$0xff]
      %v708 = vld [vmem:[%s695 + $0x60] sm:$0xff]
      %v709 = vld [vmem:[%s695 + $0x68] sm:$0xff]
      %v710 = vld [vmem:[%s695 + $0x70] sm:$0xff]
      %v711 = vld [vmem:[%s695 + $0x78] sm:$0xff]
      %v712 = vsub.f32 %v679, %v696
      %v713 = vsub.f32 %v680, %v697
      %v714 = vsub.f32 %v681, %v698
      %v715 = vsub.f32 %v682, %v699
      %v716 = vsub.f32 %v683, %v700
      %v717 = vsub.f32 %v684, %v701
      %v718 = vsub.f32 %v685, %v702
      %v719 = vsub.f32 %v686, %v703
      %v720 = vsub.f32 %v687, %v704
      %v721 = vsub.f32 %v688, %v705
      %v722 = vsub.f32 %v689, %v706
      %v723 = vsub.f32 %v690, %v707
      %v724 = vsub.f32 %v691, %v708
      %v725 = vsub.f32 %v692, %v709
      %v726 = vsub.f32 %v693, %v710
      %v727 = vsub.f32 %v694, %v711
      %v728 = vmul.f32 %v712, %v712
      %v729 = vmul.f32 %v713, %v713
      %v730 = vmul.f32 %v714, %v714
      %v731 = vmul.f32 %v715, %v715
      %v732 = vmul.f32 %v716, %v716
      %v733 = vmul.f32 %v717, %v717
      %v734 = vmul.f32 %v718, %v718
      %v735 = vmul.f32 %v719, %v719
      %v736 = vmul.f32 %v720, %v720
      %v737 = vmul.f32 %v721, %v721
      %v738 = vmul.f32 %v722, %v722
      %v739 = vmul.f32 %v723, %v723
      %v740 = vmul.f32 %v724, %v724
      %v741 = vmul.f32 %v725, %v725
      %v742 = vmul.f32 %v726, %v726
      %v743 = vmul.f32 %v727, %v727
      %v744 = vadd.f32 %v596, %v728
      %v745 = vadd.f32 %v597, %v729
      %v746 = vadd.f32 %v598, %v730
      %v747 = vadd.f32 %v599, %v731
      %v748 = vadd.f32 %v600, %v732
      %v749 = vadd.f32 %v601, %v733
      %v750 = vadd.f32 %v602, %v734
      %v751 = vadd.f32 %v603, %v735
      %v752 = vadd.f32 %v604, %v736
      %v753 = vadd.f32 %v605, %v737
      %v754 = vadd.f32 %v606, %v738
      %v755 = vadd.f32 %v607, %v739
      %v756 = vadd.f32 %v608, %v740
      %v757 = vadd.f32 %v609, %v741
      %v758 = vadd.f32 %v610, %v742
      %v759 = vadd.f32 %v611, %v743
      %v760 = vmul.f32 %v744, %v317
      %v761 = vmul.f32 %v745, %v318
      %v762 = vmul.f32 %v746, %v319
      %v763 = vmul.f32 %v747, %v320
      %v764 = vmul.f32 %v748, %v321
      %v765 = vmul.f32 %v749, %v322
      %v766 = vmul.f32 %v750, %v323
      %v767 = vmul.f32 %v751, %v324
      %v768 = vmul.f32 %v752, %v325
      %v769 = vmul.f32 %v753, %v326
      %v770 = vmul.f32 %v754, %v327
      %v771 = vmul.f32 %v755, %v328
      %v772 = vmul.f32 %v756, %v329
      %v773 = vmul.f32 %v757, %v330
      %v774 = vmul.f32 %v758, %v331
      %v775 = vmul.f32 %v759, %v332
      %v776 = vadd.f32 %v760, %v761
      %v777 = vadd.f32 %v776, %v762
      %v778 = vadd.f32 %v777, %v763
      %v779 = vadd.f32 %v778, %v764
      %v780 = vadd.f32 %v779, %v765
      %v781 = vadd.f32 %v780, %v766
      %v782 = vadd.f32 %v781, %v767
      %v783 = vadd.f32 %v782, %v768
      %v784 = vadd.f32 %v783, %v769
      %v785 = vadd.f32 %v784, %v770
      %v786 = vadd.f32 %v785, %v771
      %v787 = vadd.f32 %v786, %v772
      %v788 = vadd.f32 %v787, %v773
      %v789 = vadd.f32 %v788, %v774
      %v790 = vadd.f32 %v789, %v775
      %791 = vadd.xlane.f32.xlu0 %v790
      %v792 = vpop.xlane.xlu0 %791
      %v793 = vrot.slane %v792, 4
      %v794 = vadd.f32 %v792, %v793
      %v795 = vrot.slane %v794, 2
      %v796 = vadd.f32 %v794, %v795
      %v797 = vrot.slane %v796, 1
      %v798 = vadd.f32 %v796, %v797
      %s799 = vtos %v798
      %v800 = vadd.f32 %v317, %v318
      %v801 = vadd.f32 %v800, %v319
      %v802 = vadd.f32 %v801, %v320
      %v803 = vadd.f32 %v802, %v321
      %v804 = vadd.f32 %v803, %v322
      %v805 = vadd.f32 %v804, %v323
      %v806 = vadd.f32 %v805, %v324
      %v807 = vadd.f32 %v806, %v325
      %v808 = vadd.f32 %v807, %v326
      %v809 = vadd.f32 %v808, %v327
      %v810 = vadd.f32 %v809, %v328
      %v811 = vadd.f32 %v810, %v329
      %v812 = vadd.f32 %v811, %v330
      %v813 = vadd.f32 %v812, %v331
      %v814 = vadd.f32 %v813, %v332
      %815 = vadd.xlane.f32.xlu0 %v814
      %v816 = vpop.xlane.xlu0 %815
      %v817 = vrot.slane %v816, 4
      %v818 = vadd.f32 %v816, %v817
      %v819 = vrot.slane %v818, 2
      %v820 = vadd.f32 %v818, %v819
      %v821 = vrot.slane %v820, 1
      %v822 = vadd.f32 %v820, %v821
      %s823 = vtos %v822
      %vm824 = vcmp.eq.s32.totalorder %v232, 0
      %v825 = vstv %s799
      %v826 = vsel %vm824, %v825, 0.0
      %v827 = vadd.f32 %v826, 0.0
      %vm828 = vcmp.eq.s32.totalorder %v232, 1
      %v829 = vstv %s823
      %v830 = vsel %vm828, %v829, 0.0
      %v831 = vadd.f32 %v827, %v830
      %s832 = smul.u32 %s23, 2
      %s833 = sadd.s32 %s832, 1
      %s834 = smul.u32 %s833, 9
      %s835 = sld [smem:[#allocation3 + %s834]]
      %s836 = sadd.s32 %s834, 1
      %s837 = sld [smem:[#allocation3 + %s836]]
      %s838 = sadd.s32 %s834, 2
      %s839 = sld [smem:[#allocation3 + %s838]]
      %s840 = sadd.s32 %s834, 3
      %s841 = sld [smem:[#allocation3 + %s840]]
      %s842 = sadd.s32 %s834, 4
      %s843 = sld [smem:[#allocation3 + %s842]]
      %s844 = sadd.s32 %s834, 5
      %s845 = sld [smem:[#allocation3 + %s844]]
      %s846 = sadd.s32 %s834, 6
      %s847 = sld [smem:[#allocation3 + %s846]]
      %s848 = sadd.s32 %s834, 7
      %s849 = sld [smem:[#allocation3 + %s848]]
      %s850 = sadd.s32 %s834, 8
      %s851 = sld [smem:[#allocation3 + %s850]]
      %s852 = scalar_lea.vmem %s212, 384
      %v853 = vld [vmem:[%s852] sm:$0xff]
      %v854 = vld [vmem:[%s852 + $0x8] sm:$0xff]
      %v855 = vld [vmem:[%s852 + $0x10] sm:$0xff]
      %v856 = vld [vmem:[%s852 + $0x18] sm:$0xff]
      %v857 = vld [vmem:[%s852 + $0x20] sm:$0xff]
      %v858 = vld [vmem:[%s852 + $0x28] sm:$0xff]
      %v859 = vld [vmem:[%s852 + $0x30] sm:$0xff]
      %v860 = vld [vmem:[%s852 + $0x38] sm:$0xff]
      %v861 = vld [vmem:[%s852 + $0x40] sm:$0xff]
      %v862 = vld [vmem:[%s852 + $0x48] sm:$0xff]
      %v863 = vld [vmem:[%s852 + $0x50] sm:$0xff]
      %v864 = vld [vmem:[%s852 + $0x58] sm:$0xff]
      %v865 = vld [vmem:[%s852 + $0x60] sm:$0xff]
      %v866 = vld [vmem:[%s852 + $0x68] sm:$0xff]
      %v867 = vld [vmem:[%s852 + $0x70] sm:$0xff]
      %v868 = vld [vmem:[%s852 + $0x78] sm:$0xff]
      %s869 = scalar_lea.vmem %s212, 512
      %v870 = vld [vmem:[%s869] sm:$0xff]
      %v871 = vld [vmem:[%s869 + $0x8] sm:$0xff]
      %v872 = vld [vmem:[%s869 + $0x10] sm:$0xff]
      %v873 = vld [vmem:[%s869 + $0x18] sm:$0xff]
      %v874 = vld [vmem:[%s869 + $0x20] sm:$0xff]
      %v875 = vld [vmem:[%s869 + $0x28] sm:$0xff]
      %v876 = vld [vmem:[%s869 + $0x30] sm:$0xff]
      %v877 = vld [vmem:[%s869 + $0x38] sm:$0xff]
      %v878 = vld [vmem:[%s869 + $0x40] sm:$0xff]
      %v879 = vld [vmem:[%s869 + $0x48] sm:$0xff]
      %v880 = vld [vmem:[%s869 + $0x50] sm:$0xff]
      %v881 = vld [vmem:[%s869 + $0x58] sm:$0xff]
      %v882 = vld [vmem:[%s869 + $0x60] sm:$0xff]
      %v883 = vld [vmem:[%s869 + $0x68] sm:$0xff]
      %v884 = vld [vmem:[%s869 + $0x70] sm:$0xff]
      %v885 = vld [vmem:[%s869 + $0x78] sm:$0xff]
      %s886 = scalar_lea.vmem %s212, 640
      %v887 = vld [vmem:[%s886] sm:$0xff]
      %v888 = vld [vmem:[%s886 + $0x8] sm:$0xff]
      %v889 = vld [vmem:[%s886 + $0x10] sm:$0xff]
      %v890 = vld [vmem:[%s886 + $0x18] sm:$0xff]
      %v891 = vld [vmem:[%s886 + $0x20] sm:$0xff]
      %v892 = vld [vmem:[%s886 + $0x28] sm:$0xff]
      %v893 = vld [vmem:[%s886 + $0x30] sm:$0xff]
      %v894 = vld [vmem:[%s886 + $0x38] sm:$0xff]
      %v895 = vld [vmem:[%s886 + $0x40] sm:$0xff]
      %v896 = vld [vmem:[%s886 + $0x48] sm:$0xff]
      %v897 = vld [vmem:[%s886 + $0x50] sm:$0xff]
      %v898 = vld [vmem:[%s886 + $0x58] sm:$0xff]
      %v899 = vld [vmem:[%s886 + $0x60] sm:$0xff]
      %v900 = vld [vmem:[%s886 + $0x68] sm:$0xff]
      %v901 = vld [vmem:[%s886 + $0x70] sm:$0xff]
      %v902 = vld [vmem:[%s886 + $0x78] sm:$0xff]
      %s903 = scalar_lea.vmem %s226, 64
      %v904 = vld [vmem:[%s903] sm:$0xf]
      %v905 = vld [vmem:[%s903 + $0x4] sm:$0xf]
      %v906 = vld [vmem:[%s903 + $0x8] sm:$0xf]
      %v907 = vld [vmem:[%s903 + $0xc] sm:$0xf]
      %v908 = vld [vmem:[%s903 + $0x10] sm:$0xf]
      %v909 = vld [vmem:[%s903 + $0x14] sm:$0xf]
      %v910 = vld [vmem:[%s903 + $0x18] sm:$0xf]
      %v911 = vld [vmem:[%s903 + $0x1c] sm:$0xf]
      %v912 = vld [vmem:[%s903 + $0x20] sm:$0xf]
      %v913 = vld [vmem:[%s903 + $0x24] sm:$0xf]
      %v914 = vld [vmem:[%s903 + $0x28] sm:$0xf]
      %v915 = vld [vmem:[%s903 + $0x2c] sm:$0xf]
      %v916 = vld [vmem:[%s903 + $0x30] sm:$0xf]
      %v917 = vld [vmem:[%s903 + $0x34] sm:$0xf]
      %v918 = vld [vmem:[%s903 + $0x38] sm:$0xf]
      %v919 = vld [vmem:[%s903 + $0x3c] sm:$0xf]
      %v920 = vunpack.c.l.bf16 %v904
      %v921 = vunpack.c.l.bf16 %v905
      %v922 = vunpack.c.l.bf16 %v906
      %v923 = vunpack.c.l.bf16 %v907
      %v924 = vunpack.c.l.bf16 %v908
      %v925 = vunpack.c.l.bf16 %v909
      %v926 = vunpack.c.l.bf16 %v910
      %v927 = vunpack.c.l.bf16 %v911
      %v928 = vunpack.c.l.bf16 %v912
      %v929 = vunpack.c.l.bf16 %v913
      %v930 = vunpack.c.l.bf16 %v914
      %v931 = vunpack.c.l.bf16 %v915
      %v932 = vunpack.c.l.bf16 %v916
      %v933 = vunpack.c.l.bf16 %v917
      %v934 = vunpack.c.l.bf16 %v918
      %v935 = vunpack.c.l.bf16 %v919
      %v936 = vstv %s835
      %v937 = vmul.f32 %v936, %v853
      %v938 = vmul.f32 %v936, %v854
      %v939 = vmul.f32 %v936, %v855
      %v940 = vmul.f32 %v936, %v856
      %v941 = vmul.f32 %v936, %v857
      %v942 = vmul.f32 %v936, %v858
      %v943 = vmul.f32 %v936, %v859
      %v944 = vmul.f32 %v936, %v860
      %v945 = vmul.f32 %v936, %v861
      %v946 = vmul.f32 %v936, %v862
      %v947 = vmul.f32 %v936, %v863
      %v948 = vmul.f32 %v936, %v864
      %v949 = vmul.f32 %v936, %v865
      %v950 = vmul.f32 %v936, %v866
      %v951 = vmul.f32 %v936, %v867
      %v952 = vmul.f32 %v936, %v868
      %v953 = vstv %s841
      %v954 = vmul.f32 %v953, %v870
      %v955 = vmul.f32 %v953, %v871
      %v956 = vmul.f32 %v953, %v872
      %v957 = vmul.f32 %v953, %v873
      %v958 = vmul.f32 %v953, %v874
      %v959 = vmul.f32 %v953, %v875
      %v960 = vmul.f32 %v953, %v876
      %v961 = vmul.f32 %v953, %v877
      %v962 = vmul.f32 %v953, %v878
      %v963 = vmul.f32 %v953, %v879
      %v964 = vmul.f32 %v953, %v880
      %v965 = vmul.f32 %v953, %v881
      %v966 = vmul.f32 %v953, %v882
      %v967 = vmul.f32 %v953, %v883
      %v968 = vmul.f32 %v953, %v884
      %v969 = vmul.f32 %v953, %v885
      %v970 = vadd.f32 %v937, %v954
      %v971 = vadd.f32 %v938, %v955
      %v972 = vadd.f32 %v939, %v956
      %v973 = vadd.f32 %v940, %v957
      %v974 = vadd.f32 %v941, %v958
      %v975 = vadd.f32 %v942, %v959
      %v976 = vadd.f32 %v943, %v960
      %v977 = vadd.f32 %v944, %v961
      %v978 = vadd.f32 %v945, %v962
      %v979 = vadd.f32 %v946, %v963
      %v980 = vadd.f32 %v947, %v964
      %v981 = vadd.f32 %v948, %v965
      %v982 = vadd.f32 %v949, %v966
      %v983 = vadd.f32 %v950, %v967
      %v984 = vadd.f32 %v951, %v968
      %v985 = vadd.f32 %v952, %v969
      %v986 = vstv %s847
      %v987 = vmul.f32 %v986, %v887
      %v988 = vmul.f32 %v986, %v888
      %v989 = vmul.f32 %v986, %v889
      %v990 = vmul.f32 %v986, %v890
      %v991 = vmul.f32 %v986, %v891
      %v992 = vmul.f32 %v986, %v892
      %v993 = vmul.f32 %v986, %v893
      %v994 = vmul.f32 %v986, %v894
      %v995 = vmul.f32 %v986, %v895
      %v996 = vmul.f32 %v986, %v896
      %v997 = vmul.f32 %v986, %v897
      %v998 = vmul.f32 %v986, %v898
      %v999 = vmul.f32 %v986, %v899
      %v1000 = vmul.f32 %v986, %v900
      %v1001 = vmul.f32 %v986, %v901
      %v1002 = vmul.f32 %v986, %v902
      %v1003 = vadd.f32 %v970, %v987
      %v1004 = vadd.f32 %v971, %v988
      %v1005 = vadd.f32 %v972, %v989
      %v1006 = vadd.f32 %v973, %v990
      %v1007 = vadd.f32 %v974, %v991
      %v1008 = vadd.f32 %v975, %v992
      %v1009 = vadd.f32 %v976, %v993
      %v1010 = vadd.f32 %v977, %v994
      %v1011 = vadd.f32 %v978, %v995
      %v1012 = vadd.f32 %v979, %v996
      %v1013 = vadd.f32 %v980, %v997
      %v1014 = vadd.f32 %v981, %v998
      %v1015 = vadd.f32 %v982, %v999
      %v1016 = vadd.f32 %v983, %v1000
      %v1017 = vadd.f32 %v984, %v1001
      %v1018 = vadd.f32 %v985, %v1002
      %s1019 = scalar_lea.vmem %s219, 384
      %v1020 = vld [vmem:[%s1019] sm:$0xff]
      %v1021 = vld [vmem:[%s1019 + $0x8] sm:$0xff]
      %v1022 = vld [vmem:[%s1019 + $0x10] sm:$0xff]
      %v1023 = vld [vmem:[%s1019 + $0x18] sm:$0xff]
      %v1024 = vld [vmem:[%s1019 + $0x20] sm:$0xff]
      %v1025 = vld [vmem:[%s1019 + $0x28] sm:$0xff]
      %v1026 = vld [vmem:[%s1019 + $0x30] sm:$0xff]
      %v1027 = vld [vmem:[%s1019 + $0x38] sm:$0xff]
      %v1028 = vld [vmem:[%s1019 + $0x40] sm:$0xff]
      %v1029 = vld [vmem:[%s1019 + $0x48] sm:$0xff]
      %v1030 = vld [vmem:[%s1019 + $0x50] sm:$0xff]
      %v1031 = vld [vmem:[%s1019 + $0x58] sm:$0xff]
      %v1032 = vld [vmem:[%s1019 + $0x60] sm:$0xff]
      %v1033 = vld [vmem:[%s1019 + $0x68] sm:$0xff]
      %v1034 = vld [vmem:[%s1019 + $0x70] sm:$0xff]
      %v1035 = vld [vmem:[%s1019 + $0x78] sm:$0xff]
      %v1036 = vsub.f32 %v1003, %v1020
      %v1037 = vsub.f32 %v1004, %v1021
      %v1038 = vsub.f32 %v1005, %v1022
      %v1039 = vsub.f32 %v1006, %v1023
      %v1040 = vsub.f32 %v1007, %v1024
      %v1041 = vsub.f32 %v1008, %v1025
      %v1042 = vsub.f32 %v1009, %v1026
      %v1043 = vsub.f32 %v1010, %v1027
      %v1044 = vsub.f32 %v1011, %v1028
      %v1045 = vsub.f32 %v1012, %v1029
      %v1046 = vsub.f32 %v1013, %v1030
      %v1047 = vsub.f32 %v1014, %v1031
      %v1048 = vsub.f32 %v1015, %v1032
      %v1049 = vsub.f32 %v1016, %v1033
      %v1050 = vsub.f32 %v1017, %v1034
      %v1051 = vsub.f32 %v1018, %v1035
      %v1052 = vmul.f32 %v1036, %v1036
      %v1053 = vmul.f32 %v1037, %v1037
      %v1054 = vmul.f32 %v1038, %v1038
      %v1055 = vmul.f32 %v1039, %v1039
      %v1056 = vmul.f32 %v1040, %v1040
      %v1057 = vmul.f32 %v1041, %v1041
      %v1058 = vmul.f32 %v1042, %v1042
      %v1059 = vmul.f32 %v1043, %v1043
      %v1060 = vmul.f32 %v1044, %v1044
      %v1061 = vmul.f32 %v1045, %v1045
      %v1062 = vmul.f32 %v1046, %v1046
      %v1063 = vmul.f32 %v1047, %v1047
      %v1064 = vmul.f32 %v1048, %v1048
      %v1065 = vmul.f32 %v1049, %v1049
      %v1066 = vmul.f32 %v1050, %v1050
      %v1067 = vmul.f32 %v1051, %v1051
      %v1068 = vstv %s837
      %v1069 = vmul.f32 %v1068, %v853
      %v1070 = vmul.f32 %v1068, %v854
      %v1071 = vmul.f32 %v1068, %v855
      %v1072 = vmul.f32 %v1068, %v856
      %v1073 = vmul.f32 %v1068, %v857
      %v1074 = vmul.f32 %v1068, %v858
      %v1075 = vmul.f32 %v1068, %v859
      %v1076 = vmul.f32 %v1068, %v860
      %v1077 = vmul.f32 %v1068, %v861
      %v1078 = vmul.f32 %v1068, %v862
      %v1079 = vmul.f32 %v1068, %v863
      %v1080 = vmul.f32 %v1068, %v864
      %v1081 = vmul.f32 %v1068, %v865
      %v1082 = vmul.f32 %v1068, %v866
      %v1083 = vmul.f32 %v1068, %v867
      %v1084 = vmul.f32 %v1068, %v868
      %v1085 = vstv %s843
      %v1086 = vmul.f32 %v1085, %v870
      %v1087 = vmul.f32 %v1085, %v871
      %v1088 = vmul.f32 %v1085, %v872
      %v1089 = vmul.f32 %v1085, %v873
      %v1090 = vmul.f32 %v1085, %v874
      %v1091 = vmul.f32 %v1085, %v875
      %v1092 = vmul.f32 %v1085, %v876
      %v1093 = vmul.f32 %v1085, %v877
      %v1094 = vmul.f32 %v1085, %v878
      %v1095 = vmul.f32 %v1085, %v879
      %v1096 = vmul.f32 %v1085, %v880
      %v1097 = vmul.f32 %v1085, %v881
      %v1098 = vmul.f32 %v1085, %v882
      %v1099 = vmul.f32 %v1085, %v883
      %v1100 = vmul.f32 %v1085, %v884
      %v1101 = vmul.f32 %v1085, %v885
      %v1102 = vadd.f32 %v1069, %v1086
      %v1103 = vadd.f32 %v1070, %v1087
      %v1104 = vadd.f32 %v1071, %v1088
      %v1105 = vadd.f32 %v1072, %v1089
      %v1106 = vadd.f32 %v1073, %v1090
      %v1107 = vadd.f32 %v1074, %v1091
      %v1108 = vadd.f32 %v1075, %v1092
      %v1109 = vadd.f32 %v1076, %v1093
      %v1110 = vadd.f32 %v1077, %v1094
      %v1111 = vadd.f32 %v1078, %v1095
      %v1112 = vadd.f32 %v1079, %v1096
      %v1113 = vadd.f32 %v1080, %v1097
      %v1114 = vadd.f32 %v1081, %v1098
      %v1115 = vadd.f32 %v1082, %v1099
      %v1116 = vadd.f32 %v1083, %v1100
      %v1117 = vadd.f32 %v1084, %v1101
      %v1118 = vstv %s849
      %v1119 = vmul.f32 %v1118, %v887
      %v1120 = vmul.f32 %v1118, %v888
      %v1121 = vmul.f32 %v1118, %v889
      %v1122 = vmul.f32 %v1118, %v890
      %v1123 = vmul.f32 %v1118, %v891
      %v1124 = vmul.f32 %v1118, %v892
      %v1125 = vmul.f32 %v1118, %v893
      %v1126 = vmul.f32 %v1118, %v894
      %v1127 = vmul.f32 %v1118, %v895
      %v1128 = vmul.f32 %v1118, %v896
      %v1129 = vmul.f32 %v1118, %v897
      %v1130 = vmul.f32 %v1118, %v898
      %v1131 = vmul.f32 %v1118, %v899
      %v1132 = vmul.f32 %v1118, %v900
      %v1133 = vmul.f32 %v1118, %v901
      %v1134 = vmul.f32 %v1118, %v902
      %v1135 = vadd.f32 %v1102, %v1119
      %v1136 = vadd.f32 %v1103, %v1120
      %v1137 = vadd.f32 %v1104, %v1121
      %v1138 = vadd.f32 %v1105, %v1122
      %v1139 = vadd.f32 %v1106, %v1123
      %v1140 = vadd.f32 %v1107, %v1124
      %v1141 = vadd.f32 %v1108, %v1125
      %v1142 = vadd.f32 %v1109, %v1126
      %v1143 = vadd.f32 %v1110, %v1127
      %v1144 = vadd.f32 %v1111, %v1128
      %v1145 = vadd.f32 %v1112, %v1129
      %v1146 = vadd.f32 %v1113, %v1130
      %v1147 = vadd.f32 %v1114, %v1131
      %v1148 = vadd.f32 %v1115, %v1132
      %v1149 = vadd.f32 %v1116, %v1133
      %v1150 = vadd.f32 %v1117, %v1134
      %s1151 = scalar_lea.vmem %s219, 512
      %v1152 = vld [vmem:[%s1151] sm:$0xff]
      %v1153 = vld [vmem:[%s1151 + $0x8] sm:$0xff]
      %v1154 = vld [vmem:[%s1151 + $0x10] sm:$0xff]
      %v1155 = vld [vmem:[%s1151 + $0x18] sm:$0xff]
      %v1156 = vld [vmem:[%s1151 + $0x20] sm:$0xff]
      %v1157 = vld [vmem:[%s1151 + $0x28] sm:$0xff]
      %v1158 = vld [vmem:[%s1151 + $0x30] sm:$0xff]
      %v1159 = vld [vmem:[%s1151 + $0x38] sm:$0xff]
      %v1160 = vld [vmem:[%s1151 + $0x40] sm:$0xff]
      %v1161 = vld [vmem:[%s1151 + $0x48] sm:$0xff]
      %v1162 = vld [vmem:[%s1151 + $0x50] sm:$0xff]
      %v1163 = vld [vmem:[%s1151 + $0x58] sm:$0xff]
      %v1164 = vld [vmem:[%s1151 + $0x60] sm:$0xff]
      %v1165 = vld [vmem:[%s1151 + $0x68] sm:$0xff]
      %v1166 = vld [vmem:[%s1151 + $0x70] sm:$0xff]
      %v1167 = vld [vmem:[%s1151 + $0x78] sm:$0xff]
      %v1168 = vsub.f32 %v1135, %v1152
      %v1169 = vsub.f32 %v1136, %v1153
      %v1170 = vsub.f32 %v1137, %v1154
      %v1171 = vsub.f32 %v1138, %v1155
      %v1172 = vsub.f32 %v1139, %v1156
      %v1173 = vsub.f32 %v1140, %v1157
      %v1174 = vsub.f32 %v1141, %v1158
      %v1175 = vsub.f32 %v1142, %v1159
      %v1176 = vsub.f32 %v1143, %v1160
      %v1177 = vsub.f32 %v1144, %v1161
      %v1178 = vsub.f32 %v1145, %v1162
      %v1179 = vsub.f32 %v1146, %v1163
      %v1180 = vsub.f32 %v1147, %v1164
      %v1181 = vsub.f32 %v1148, %v1165
      %v1182 = vsub.f32 %v1149, %v1166
      %v1183 = vsub.f32 %v1150, %v1167
      %v1184 = vmul.f32 %v1168, %v1168
      %v1185 = vmul.f32 %v1169, %v1169
      %v1186 = vmul.f32 %v1170, %v1170
      %v1187 = vmul.f32 %v1171, %v1171
      %v1188 = vmul.f32 %v1172, %v1172
      %v1189 = vmul.f32 %v1173, %v1173
      %v1190 = vmul.f32 %v1174, %v1174
      %v1191 = vmul.f32 %v1175, %v1175
      %v1192 = vmul.f32 %v1176, %v1176
      %v1193 = vmul.f32 %v1177, %v1177
      %v1194 = vmul.f32 %v1178, %v1178
      %v1195 = vmul.f32 %v1179, %v1179
      %v1196 = vmul.f32 %v1180, %v1180
      %v1197 = vmul.f32 %v1181, %v1181
      %v1198 = vmul.f32 %v1182, %v1182
      %v1199 = vmul.f32 %v1183, %v1183
      %v1200 = vadd.f32 %v1052, %v1184
      %v1201 = vadd.f32 %v1053, %v1185
      %v1202 = vadd.f32 %v1054, %v1186
      %v1203 = vadd.f32 %v1055, %v1187
      %v1204 = vadd.f32 %v1056, %v1188
      %v1205 = vadd.f32 %v1057, %v1189
      %v1206 = vadd.f32 %v1058, %v1190
      %v1207 = vadd.f32 %v1059, %v1191
      %v1208 = vadd.f32 %v1060, %v1192
      %v1209 = vadd.f32 %v1061, %v1193
      %v1210 = vadd.f32 %v1062, %v1194
      %v1211 = vadd.f32 %v1063, %v1195
      %v1212 = vadd.f32 %v1064, %v1196
      %v1213 = vadd.f32 %v1065, %v1197
      %v1214 = vadd.f32 %v1066, %v1198
      %v1215 = vadd.f32 %v1067, %v1199
      %v1216 = vstv %s839
      %v1217 = vmul.f32 %v1216, %v853
      %v1218 = vmul.f32 %v1216, %v854
      %v1219 = vmul.f32 %v1216, %v855
      %v1220 = vmul.f32 %v1216, %v856
      %v1221 = vmul.f32 %v1216, %v857
      %v1222 = vmul.f32 %v1216, %v858
      %v1223 = vmul.f32 %v1216, %v859
      %v1224 = vmul.f32 %v1216, %v860
      %v1225 = vmul.f32 %v1216, %v861
      %v1226 = vmul.f32 %v1216, %v862
      %v1227 = vmul.f32 %v1216, %v863
      %v1228 = vmul.f32 %v1216, %v864
      %v1229 = vmul.f32 %v1216, %v865
      %v1230 = vmul.f32 %v1216, %v866
      %v1231 = vmul.f32 %v1216, %v867
      %v1232 = vmul.f32 %v1216, %v868
      %v1233 = vstv %s845
      %v1234 = vmul.f32 %v1233, %v870
      %v1235 = vmul.f32 %v1233, %v871
      %v1236 = vmul.f32 %v1233, %v872
      %v1237 = vmul.f32 %v1233, %v873
      %v1238 = vmul.f32 %v1233, %v874
      %v1239 = vmul.f32 %v1233, %v875
      %v1240 = vmul.f32 %v1233, %v876
      %v1241 = vmul.f32 %v1233, %v877
      %v1242 = vmul.f32 %v1233, %v878
      %v1243 = vmul.f32 %v1233, %v879
      %v1244 = vmul.f32 %v1233, %v880
      %v1245 = vmul.f32 %v1233, %v881
      %v1246 = vmul.f32 %v1233, %v882
      %v1247 = vmul.f32 %v1233, %v883
      %v1248 = vmul.f32 %v1233, %v884
      %v1249 = vmul.f32 %v1233, %v885
      %v1250 = vadd.f32 %v1217, %v1234
      %v1251 = vadd.f32 %v1218, %v1235
      %v1252 = vadd.f32 %v1219, %v1236
      %v1253 = vadd.f32 %v1220, %v1237
      %v1254 = vadd.f32 %v1221, %v1238
      %v1255 = vadd.f32 %v1222, %v1239
      %v1256 = vadd.f32 %v1223, %v1240
      %v1257 = vadd.f32 %v1224, %v1241
      %v1258 = vadd.f32 %v1225, %v1242
      %v1259 = vadd.f32 %v1226, %v1243
      %v1260 = vadd.f32 %v1227, %v1244
      %v1261 = vadd.f32 %v1228, %v1245
      %v1262 = vadd.f32 %v1229, %v1246
      %v1263 = vadd.f32 %v1230, %v1247
      %v1264 = vadd.f32 %v1231, %v1248
      %v1265 = vadd.f32 %v1232, %v1249
      %v1266 = vstv %s851
      %v1267 = vmul.f32 %v1266, %v887
      %v1268 = vmul.f32 %v1266, %v888
      %v1269 = vmul.f32 %v1266, %v889
      %v1270 = vmul.f32 %v1266, %v890
      %v1271 = vmul.f32 %v1266, %v891
      %v1272 = vmul.f32 %v1266, %v892
      %v1273 = vmul.f32 %v1266, %v893
      %v1274 = vmul.f32 %v1266, %v894
      %v1275 = vmul.f32 %v1266, %v895
      %v1276 = vmul.f32 %v1266, %v896
      %v1277 = vmul.f32 %v1266, %v897
      %v1278 = vmul.f32 %v1266, %v898
      %v1279 = vmul.f32 %v1266, %v899
      %v1280 = vmul.f32 %v1266, %v900
      %v1281 = vmul.f32 %v1266, %v901
      %v1282 = vmul.f32 %v1266, %v902
      %v1283 = vadd.f32 %v1250, %v1267
      %v1284 = vadd.f32 %v1251, %v1268
      %v1285 = vadd.f32 %v1252, %v1269
      %v1286 = vadd.f32 %v1253, %v1270
      %v1287 = vadd.f32 %v1254, %v1271
      %v1288 = vadd.f32 %v1255, %v1272
      %v1289 = vadd.f32 %v1256, %v1273
      %v1290 = vadd.f32 %v1257, %v1274
      %v1291 = vadd.f32 %v1258, %v1275
      %v1292 = vadd.f32 %v1259, %v1276
      %v1293 = vadd.f32 %v1260, %v1277
      %v1294 = vadd.f32 %v1261, %v1278
      %v1295 = vadd.f32 %v1262, %v1279
      %v1296 = vadd.f32 %v1263, %v1280
      %v1297 = vadd.f32 %v1264, %v1281
      %v1298 = vadd.f32 %v1265, %v1282
      %s1299 = scalar_lea.vmem %s219, 640
      %v1300 = vld [vmem:[%s1299] sm:$0xff]
      %v1301 = vld [vmem:[%s1299 + $0x8] sm:$0xff]
      %v1302 = vld [vmem:[%s1299 + $0x10] sm:$0xff]
      %v1303 = vld [vmem:[%s1299 + $0x18] sm:$0xff]
      %v1304 = vld [vmem:[%s1299 + $0x20] sm:$0xff]
      %v1305 = vld [vmem:[%s1299 + $0x28] sm:$0xff]
      %v1306 = vld [vmem:[%s1299 + $0x30] sm:$0xff]
      %v1307 = vld [vmem:[%s1299 + $0x38] sm:$0xff]
      %v1308 = vld [vmem:[%s1299 + $0x40] sm:$0xff]
      %v1309 = vld [vmem:[%s1299 + $0x48] sm:$0xff]
      %v1310 = vld [vmem:[%s1299 + $0x50] sm:$0xff]
      %v1311 = vld [vmem:[%s1299 + $0x58] sm:$0xff]
      %v1312 = vld [vmem:[%s1299 + $0x60] sm:$0xff]
      %v1313 = vld [vmem:[%s1299 + $0x68] sm:$0xff]
      %v1314 = vld [vmem:[%s1299 + $0x70] sm:$0xff]
      %v1315 = vld [vmem:[%s1299 + $0x78] sm:$0xff]
      %v1316 = vsub.f32 %v1283, %v1300
      %v1317 = vsub.f32 %v1284, %v1301
      %v1318 = vsub.f32 %v1285, %v1302
      %v1319 = vsub.f32 %v1286, %v1303
      %v1320 = vsub.f32 %v1287, %v1304
      %v1321 = vsub.f32 %v1288, %v1305
      %v1322 = vsub.f32 %v1289, %v1306
      %v1323 = vsub.f32 %v1290, %v1307
      %v1324 = vsub.f32 %v1291, %v1308
      %v1325 = vsub.f32 %v1292, %v1309
      %v1326 = vsub.f32 %v1293, %v1310
      %v1327 = vsub.f32 %v1294, %v1311
      %v1328 = vsub.f32 %v1295, %v1312
      %v1329 = vsub.f32 %v1296, %v1313
      %v1330 = vsub.f32 %v1297, %v1314
      %v1331 = vsub.f32 %v1298, %v1315
      %v1332 = vmul.f32 %v1316, %v1316
      %v1333 = vmul.f32 %v1317, %v1317
      %v1334 = vmul.f32 %v1318, %v1318
      %v1335 = vmul.f32 %v1319, %v1319
      %v1336 = vmul.f32 %v1320, %v1320
      %v1337 = vmul.f32 %v1321, %v1321
      %v1338 = vmul.f32 %v1322, %v1322
      %v1339 = vmul.f32 %v1323, %v1323
      %v1340 = vmul.f32 %v1324, %v1324
      %v1341 = vmul.f32 %v1325, %v1325
      %v1342 = vmul.f32 %v1326, %v1326
      %v1343 = vmul.f32 %v1327, %v1327
      %v1344 = vmul.f32 %v1328, %v1328
      %v1345 = vmul.f32 %v1329, %v1329
      %v1346 = vmul.f32 %v1330, %v1330
      %v1347 = vmul.f32 %v1331, %v1331
      %v1348 = vadd.f32 %v1200, %v1332
      %v1349 = vadd.f32 %v1201, %v1333
      %v1350 = vadd.f32 %v1202, %v1334
      %v1351 = vadd.f32 %v1203, %v1335
      %v1352 = vadd.f32 %v1204, %v1336
      %v1353 = vadd.f32 %v1205, %v1337
      %v1354 = vadd.f32 %v1206, %v1338
      %v1355 = vadd.f32 %v1207, %v1339
      %v1356 = vadd.f32 %v1208, %v1340
      %v1357 = vadd.f32 %v1209, %v1341
      %v1358 = vadd.f32 %v1210, %v1342
      %v1359 = vadd.f32 %v1211, %v1343
      %v1360 = vadd.f32 %v1212, %v1344
      %v1361 = vadd.f32 %v1213, %v1345
      %v1362 = vadd.f32 %v1214, %v1346
      %v1363 = vadd.f32 %v1215, %v1347
      %v1364 = vmul.f32 %v1348, %v920
      %v1365 = vmul.f32 %v1349, %v921
      %v1366 = vmul.f32 %v1350, %v922
      %v1367 = vmul.f32 %v1351, %v923
      %v1368 = vmul.f32 %v1352, %v924
      %v1369 = vmul.f32 %v1353, %v925
      %v1370 = vmul.f32 %v1354, %v926
      %v1371 = vmul.f32 %v1355, %v927
      %v1372 = vmul.f32 %v1356, %v928
      %v1373 = vmul.f32 %v1357, %v929
      %v1374 = vmul.f32 %v1358, %v930
      %v1375 = vmul.f32 %v1359, %v931
      %v1376 = vmul.f32 %v1360, %v932
      %v1377 = vmul.f32 %v1361, %v933
      %v1378 = vmul.f32 %v1362, %v934
      %v1379 = vmul.f32 %v1363, %v935
      %v1380 = vadd.f32 %v1364, %v1365
      %v1381 = vadd.f32 %v1380, %v1366
      %v1382 = vadd.f32 %v1381, %v1367
      %v1383 = vadd.f32 %v1382, %v1368
      %v1384 = vadd.f32 %v1383, %v1369
      %v1385 = vadd.f32 %v1384, %v1370
      %v1386 = vadd.f32 %v1385, %v1371
      %v1387 = vadd.f32 %v1386, %v1372
      %v1388 = vadd.f32 %v1387, %v1373
      %v1389 = vadd.f32 %v1388, %v1374
      %v1390 = vadd.f32 %v1389, %v1375
      %v1391 = vadd.f32 %v1390, %v1376
      %v1392 = vadd.f32 %v1391, %v1377
      %v1393 = vadd.f32 %v1392, %v1378
      %v1394 = vadd.f32 %v1393, %v1379
      %1395 = vadd.xlane.f32.xlu0 %v1394
      %v1396 = vpop.xlane.xlu0 %1395
      %v1397 = vrot.slane %v1396, 4
      %v1398 = vadd.f32 %v1396, %v1397
      %v1399 = vrot.slane %v1398, 2
      %v1400 = vadd.f32 %v1398, %v1399
      %v1401 = vrot.slane %v1400, 1
      %v1402 = vadd.f32 %v1400, %v1401
      %s1403 = vtos %v1402
      %v1404 = vadd.f32 %v920, %v921
      %v1405 = vadd.f32 %v1404, %v922
      %v1406 = vadd.f32 %v1405, %v923
      %v1407 = vadd.f32 %v1406, %v924
      %v1408 = vadd.f32 %v1407, %v925
      %v1409 = vadd.f32 %v1408, %v926
      %v1410 = vadd.f32 %v1409, %v927
      %v1411 = vadd.f32 %v1410, %v928
      %v1412 = vadd.f32 %v1411, %v929
      %v1413 = vadd.f32 %v1412, %v930
      %v1414 = vadd.f32 %v1413, %v931
      %v1415 = vadd.f32 %v1414, %v932
      %v1416 = vadd.f32 %v1415, %v933
      %v1417 = vadd.f32 %v1416, %v934
      %v1418 = vadd.f32 %v1417, %v935
      %1419 = vadd.xlane.f32.xlu0 %v1418
      %v1420 = vpop.xlane.xlu0 %1419
      %v1421 = vrot.slane %v1420, 4
      %v1422 = vadd.f32 %v1420, %v1421
      %v1423 = vrot.slane %v1422, 2
      %v1424 = vadd.f32 %v1422, %v1423
      %v1425 = vrot.slane %v1424, 1
      %v1426 = vadd.f32 %v1424, %v1425
      %s1427 = vtos %v1426
      %vm1428 = vcmp.eq.s32.totalorder %v232, 2
      %v1429 = vstv %s1403
      %v1430 = vsel %vm1428, %v1429, 0.0
      %v1431 = vadd.f32 %v831, %v1430
      %vm1432 = vcmp.eq.s32.totalorder %v232, 3
      %v1433 = vstv %s1427
      %v1434 = vsel %vm1432, %v1433, 0.0
      %v1435 = vadd.f32 %v1431, %v1434
      %1436 = vst [vmem:[%s230] sm:$0x1] %v1435
      %p1437 = scmp.lt.s32.totalorder %s23, 1
      %s1438 = scalar_select %p1437, %s23, 1
      %s1439 = scalar_lea.vmem %s4, %s1438
      // Predicated region
      $region33: #{aligned_psnr.3} parent=31 // pred_check
        %p1440 = pneg %p119
      $region34: #{aligned_psnr.3} parent=31 // pred_check_branch
        %1442 = sbr.rel (%p1440) target = $region36
      $region35: #{aligned_psnr.3} parent=31 // pred_region
        _
      $region36: #{aligned_psnr.3} parent=31 // pred_fallthru
        _
    $region32: #{aligned_psnr.3} parent=5 // pred_fallthru
      _
    %p1443 = scmp.le.s32.totalorder 2, %s18
    // Predicated region
    $region37: #{aligned_psnr.3} parent=5 // pred_check
      %p1444 = pneg %p1443
    $region38: #{aligned_psnr.3} parent=5 // pred_check_branch
      %1446 = sbr.rel (%p1444) target = $region40
    $region39: #{aligned_psnr.3} parent=5 // pred_region
      %s1447 = ssub.s32 %s18, 2
      // Predicated region
      $region41: #{aligned_psnr.3} parent=39 // pred_check
        %p1448 = pneg %p125
      $region42: #{aligned_psnr.3} parent=39 // pred_check_branch
        %1450 = sbr.rel (%p1448) target = $region44
      $region43: #{aligned_psnr.3} parent=39 // pred_region
        %p1451 = scmp.lt.s32.totalorder %s24, 1
        %s1452 = scalar_select %p1451, %s24, 1
        %s1453 = scalar_lea.vmem %s4, %s1452
      $region44: #{aligned_psnr.3} parent=39 // pred_fallthru
        _
    $region40: #{aligned_psnr.3} parent=5 // pred_fallthru
      _
  $region6: #{aligned_psnr.3} parent=0 // loop_footer
    %s22 = sadd.s32 1, %s18
  $region7: #{aligned_psnr.3} parent=0 // loop_footer_branch
    %17 = sbr.rel target = $region3
  $region8: #{aligned_psnr.3} parent=0 // loop_exit
    _

</llo_original>
